<compile_context>
chip_gen: v7x
topology: tpu7x:2x2x1
jax: 0.10.0
libtpu: 0.0.40
codegen_flags: <defaults>
</compile_context>

<pallas_src>
import functools

import jax
import jax.numpy as jnp
from jax import lax
from jax.experimental import pallas as pl
from jax.experimental.pallas import tpu as pltpu

BP = 8     # padded batch: one full sublane group
GP = 128   # lanes per LSTM gate: one full lane group


def _ball_lstm_kernel(x2d_ref,                       # (T*BP, D)  time-major, batch-padded
                      wih1_ref, whh1_ref, b1_ref,    # (D,4GP), (GP,4GP), (1,4GP)
                      wih2_ref, whh2_ref, b2_ref,    # (GP,4GP), (GP,4GP), (1,4GP)
                      wfc1_ref, bfc1_ref,            # (GP,GP), (1,GP)
                      wfc2_ref, bfc2_ref,            # (GP,GP), (1,GP)
                      out_ref,                       # (BP, GP)
                      *, T):
    f32 = jnp.float32

    # Hoisted weight loads (read once, reused across all timesteps).
    whh1 = whh1_ref[...]
    wih2 = wih2_ref[...]
    whh2 = whh2_ref[...]

    # Layer-1 input projection for ALL timesteps in a single MXU pass (no
    # serial dependence on the recurrence); bias folded in here, once.
    xw1 = (jnp.dot(x2d_ref[...], wih1_ref[...], preferred_element_type=f32)
           + b1_ref[...])                            # (T*BP, 4GP)

    # Hoist the layer-2 bias broadcast out of the loop (JAX does not CSE it).
    b2b = jnp.broadcast_to(b2_ref[...], (BP, 4 * GP))

    # Recurrent state stays in the loop carry (vregs), never in VMEM scratch.
    # PyTorch default initial state: h0 = c0 = 0.  Padded lanes/rows stay
    # self-consistent (zero-padded weights) and are sliced away in the wrapper.
    h1 = jnp.zeros((BP, GP), f32)
    c1 = jnp.zeros((BP, GP), f32)
    h2 = jnp.zeros((BP, GP), f32)
    c2 = jnp.zeros((BP, GP), f32)

    # TODO(synk): pre-stage whh1 / (wih2, whh2) on the MXU once via
    # pltpu.matmul_push_rhs + matmul_acc_lhs/matmul_pop so the recurrent
    # weights are not re-streamed through the systolic array every step;
    # kept on jnp.dot here for compile robustness.

    # T is small and static: fully unroll so MXU / EUP / VPU work from
    # adjacent timesteps can interleave.  Gate order matches PyTorch:
    # [i, f, g, o]; each gate owns its own 128-lane block, so the slices
    # below are vreg-aligned (no lane rotation on the serial chain).
    for t in range(T):
        # ---- LSTM layer 1 (only the recurrent matmul is per-step) ----
        g1 = (xw1[t * BP:(t + 1) * BP, :]
              + jnp.dot(h1, whh1, preferred_element_type=f32))        # (BP, 4GP)
        i1 = jax.nn.sigmoid(g1[:, 0 * GP:1 * GP])
        f1 = jax.nn.sigmoid(g1[:, 1 * GP:2 * GP])
        gg1 = jnp.tanh(g1[:, 2 * GP:3 * GP])
        o1 = jax.nn.sigmoid(g1[:, 3 * GP:4 * GP])
        c1 = f1 * c1 + i1 * gg1
        h1 = o1 * jnp.tanh(c1)

        # ---- LSTM layer 2: two independent MXU pushes, no per-step concat.
        # (dropout between layers is identity at inference)
        g2 = (jnp.dot(h1, wih2, preferred_element_type=f32)
              + jnp.dot(h2, whh2, preferred_element_type=f32) + b2b)  # (BP, 4GP)
        i2 = jax.nn.sigmoid(g2[:, 0 * GP:1 * GP])
        f2 = jax.nn.sigmoid(g2[:, 1 * GP:2 * GP])
        gg2 = jnp.tanh(g2[:, 2 * GP:3 * GP])
        o2 = jax.nn.sigmoid(g2[:, 3 * GP:4 * GP])
        c2 = f2 * c2 + i2 * gg2
        h2 = o2 * jnp.tanh(c2)

    # ---- head: Linear -> ReLU -> Linear on final h2 (dropout = identity).
    # Output written as a lane-dense (8,128) block; (B,2) sliced in wrapper.
    hid = jnp.maximum(
        jnp.dot(h2, wfc1_ref[...], preferred_element_type=f32) + bfc1_ref[...], 0.0)
    out_ref[...] = (jnp.dot(hid, wfc2_ref[...], preferred_element_type=f32)
                    + bfc2_ref[...])


# --------------------------- one-time weight prep ---------------------------

def _pad_gate_cols(w, h):
    """(..., 4*h) -> (..., 4*GP): give each LSTM gate its own 128-lane block."""
    assert h <= GP
    lead = [(0, 0)] * (w.ndim - 1)
    blocks = [jnp.pad(w[..., g * h:(g + 1) * h], lead + [(0, GP - h)])
              for g in range(4)]
    return jnp.concatenate(blocks, axis=-1)


def _pad_rows(w):
    return jnp.pad(w, ((0, GP - w.shape[0]), (0, 0)))


def prepare_params(params):
    """One-time parameter layout prep (kept off the per-call dispatch path).

    - each LSTM gate gets its own 128-lane block (vreg-aligned gate slices)
    - recurrent / inter-layer weight rows zero-padded to 128 (match padded h)
    - fc head padded so the output block is a lane-dense (8,128) store
    Zero padding keeps the real lanes numerically identical to the reference.
    """
    H1 = params["whh1"].shape[0]
    H2 = params["whh2"].shape[0]
    return {
        "wih1": _pad_gate_cols(params["wih1"], H1),                       # (D, 4GP)
        "whh1": _pad_rows(_pad_gate_cols(params["whh1"], H1)),            # (GP, 4GP)
        "b1":   _pad_gate_cols(params["b1"], H1),                         # (1, 4GP)
        "wih2": _pad_rows(_pad_gate_cols(params["wih2"], H2)),            # (GP, 4GP)
        "whh2": _pad_rows(_pad_gate_cols(params["whh2"], H2)),            # (GP, 4GP)
        "b2":   _pad_gate_cols(params["b2"], H2),                         # (1, 4GP)
        "wfc1": jnp.pad(params["wfc1"],
                        ((0, GP - params["wfc1"].shape[0]),
                         (0, GP - params["wfc1"].shape[1]))),             # (GP, GP)
        "bfc1": jnp.pad(params["bfc1"],
                        ((0, 0), (0, GP - params["bfc1"].shape[1]))),     # (1, GP)
        "wfc2": jnp.pad(params["wfc2"],
                        ((0, GP - params["wfc2"].shape[0]),
                         (0, GP - params["wfc2"].shape[1]))),             # (GP, GP)
        "bfc2": jnp.pad(params["bfc2"],
                        ((0, 0), (0, GP - params["bfc2"].shape[1]))),     # (1, GP)
    }


# --------------------------------- wrapper ----------------------------------

def ball_predictor_forward(x, prepped):
    """x: (B, T, D) batch-first (PyTorch convention). Returns (B, 2).

    `prepped` must come from prepare_params (one-time layout prep); the only
    per-call host-side work is the tiny x relayout, which XLA may fuse into
    the pallas_call input.
    """
    B, T, D = x.shape
    assert B <= BP, "for B > 8 add a batch grid axis (see TODO below)"

    # Time-major, batch padded to a full sublane group, flattened to (T*BP, D)
    # so the layer-1 input projection is one MXU matmul inside the kernel.
    x_tm = jnp.transpose(x.astype(jnp.float32), (1, 0, 2))         # (T, B, D)
    x2d = jnp.pad(x_tm, ((0, 0), (0, BP - B), (0, 0))).reshape(T * BP, D)

    inputs = (
        x2d,
        prepped["wih1"], prepped["whh1"], prepped["b1"],
        prepped["wih2"], prepped["whh2"], prepped["b2"],
        prepped["wfc1"], prepped["bfc1"], prepped["wfc2"], prepped["bfc2"],
    )
    vmem = pl.BlockSpec(memory_space=pltpu.MemorySpace.VMEM)

    # Single block, everything resident in VMEM (~0.5 MB working set): no grid
    # on any generation (v5e/v6e/v7x) — grid steps would be pure overhead.
    # TODO(synk): if B grows well beyond 8, add a leading grid axis over padded
    # batch blocks with dimension_semantics=("parallel",) so v7x's two
    # TensorCores each run an independent batch slice (time stays serial).
    out_pad = pl.pallas_call(
        functools.partial(_ball_lstm_kernel, T=T),
        out_shape=jax.ShapeDtypeStruct((BP, GP), jnp.float32),
        in_specs=[vmem] * len(inputs),
        out_specs=vmem,
        compiler_params=pltpu.CompilerParams(
            allow_input_fusion=[True] + [False] * (len(inputs) - 1)),
    )(*inputs)
    return out_pad[:B, :2]


# ------------------------------ synthetic init ------------------------------

def init_params(key, input_size, hidden_size):
    """Deterministic synthetic parameters matching BallPredictorLSTM shapes.

    Weights are stored pre-transposed to (in, out); LSTM biases are the sum
    b_ih + b_hh (mathematically equivalent to PyTorch's two biases).
    """
    H1 = hidden_size
    H2 = hidden_size // 2
    ks = jax.random.split(key, 12)
    s = 0.1
    return {
        "wih1": jax.random.normal(ks[0], (input_size, 4 * H1), jnp.float32) * s,
        "whh1": jax.random.normal(ks[1], (H1, 4 * H1), jnp.float32) * s,
        "b1":   jax.random.normal(ks[2], (1, 4 * H1), jnp.float32) * s,
        "wih2": jax.random.normal(ks[3], (H1, 4 * H2), jnp.float32) * s,
        "whh2": jax.random.normal(ks[4], (H2, 4 * H2), jnp.float32) * s,
        "b2":   jax.random.normal(ks[5], (1, 4 * H2), jnp.float32) * s,
        "wfc1": jax.random.normal(ks[6], (H2, 32), jnp.float32) * s,
        "bfc1": jax.random.normal(ks[7], (1, 32), jnp.float32) * s,
        "wfc2": jax.random.normal(ks[8], (32, 2), jnp.float32) * s,
        "bfc2": jax.random.normal(ks[9], (1, 2), jnp.float32) * s,
    }


# ------------------------------ pure-JAX reference ---------------------------

def reference_forward(x, params):
    """Pure-JAX reference (matches PyTorch eval-mode forward)."""
    B, T, D = x.shape
    H1 = params["whh1"].shape[0]
    H2 = params["whh2"].shape[0]

    def lstm_layer(seq, wih, whh, b, H):
        def step(carry, x_t):
            h, c = carry
            g = x_t @ wih + h @ whh + b
            i = jax.nn.sigmoid(g[:, 0 * H:1 * H])
            f = jax.nn.sigmoid(g[:, 1 * H:2 * H])
            gg = jnp.tanh(g[:, 2 * H:3 * H])
            o = jax.nn.sigmoid(g[:, 3 * H:4 * H])
            c = f * c + i * gg
            h = o * jnp.tanh(c)
            return (h, c), h
        init = (jnp.zeros((B, H), jnp.float32), jnp.zeros((B, H), jnp.float32))
        (_, _), hs = lax.scan(step, init, jnp.transpose(seq, (1, 0, 2)))
        return jnp.transpose(hs, (1, 0, 2))

    out = lstm_layer(x, params["wih1"], params["whh1"], params["b1"], H1)
    out = lstm_layer(out, params["wih2"], params["whh2"], params["b2"], H2)
    last = out[:, -1, :]
    hid = jnp.maximum(last @ params["wfc1"] + params["bfc1"], 0.0)
    return hid @ params["wfc2"] + params["bfc2"]


if __name__ == "__main__":
    key = jax.random.PRNGKey(0)
    k_x, k_p = jax.random.split(key)

    B, T, D = 2, 8, 8          # batch, sequence length, input_size
    HIDDEN = 32                # hidden_size -> lstm2 hidden = 16

    x = jax.random.normal(k_x, (B, T, D), jnp.float32)
    params = init_params(k_p, D, HIDDEN)

    # One-time parameter layout prep (kept off the per-call dispatch path).
    prepped = jax.block_until_ready(prepare_params(params))

    fwd = jax.jit(ball_predictor_forward)
    out = jax.block_until_ready(fwd(x, prepped))
    ref = jax.block_until_ready(reference_forward(x, params))

    assert out.shape == (B, 2), out.shape
    assert jnp.allclose(out, ref, atol=1e-4, rtol=1e-4), (out, ref)
    print("KERNEL_OK")
</pallas_src>

<mosaic_0001>
module attributes {stable_mosaic.version = 11 : i64} {
  func.func @_ball_lstm_kernel(%arg0: memref<64x8xf32, #tpu.memory_space<vmem>>, %arg1: memref<8x512xf32, #tpu.memory_space<vmem>>, %arg2: memref<128x512xf32, #tpu.memory_space<vmem>>, %arg3: memref<1x512xf32, #tpu.memory_space<vmem>>, %arg4: memref<128x512xf32, #tpu.memory_space<vmem>>, %arg5: memref<128x512xf32, #tpu.memory_space<vmem>>, %arg6: memref<1x512xf32, #tpu.memory_space<vmem>>, %arg7: memref<128x128xf32, #tpu.memory_space<vmem>>, %arg8: memref<1x128xf32, #tpu.memory_space<vmem>>, %arg9: memref<128x128xf32, #tpu.memory_space<vmem>>, %arg10: memref<1x128xf32, #tpu.memory_space<vmem>>, %arg11: memref<8x128xf32, #tpu.memory_space<vmem>>) attributes {dimension_semantics = [], scalar_prefetch = 0 : i64, scratch_operands = 0 : i64, tpu.core_type = #tpu.core_type<tc>} {
    %c0 = arith.constant 0 : index
    %c0_0 = arith.constant 0 : index
    %0 = vector.load %arg2[%c0, %c0_0] : memref<128x512xf32, #tpu.memory_space<vmem>>, vector<128x512xf32>
    %c0_1 = arith.constant 0 : index
    %c0_2 = arith.constant 0 : index
    %1 = vector.load %arg4[%c0_1, %c0_2] : memref<128x512xf32, #tpu.memory_space<vmem>>, vector<128x512xf32>
    %c0_3 = arith.constant 0 : index
    %c0_4 = arith.constant 0 : index
    %2 = vector.load %arg5[%c0_3, %c0_4] : memref<128x512xf32, #tpu.memory_space<vmem>>, vector<128x512xf32>
    %c0_5 = arith.constant 0 : index
    %c0_6 = arith.constant 0 : index
    %3 = vector.load %arg0[%c0_5, %c0_6] : memref<64x8xf32, #tpu.memory_space<vmem>>, vector<64x8xf32>
    %c0_7 = arith.constant 0 : index
    %c0_8 = arith.constant 0 : index
    %4 = vector.load %arg1[%c0_7, %c0_8] : memref<8x512xf32, #tpu.memory_space<vmem>>, vector<8x512xf32>
    %cst = arith.constant dense<0.000000e+00> : vector<64x512xf32>
    %5 = tpu.matmul %3, %4, %cst {dimension_numbers = #tpu.dot_dimension_numbers<[1], [0], [0], [1], [0, 0, 1, 1], [], []>} : vector<64x8xf32>, vector<8x512xf32>, vector<64x512xf32> -> vector<64x512xf32>
    %c0_9 = arith.constant 0 : index
    %c0_10 = arith.constant 0 : index
    %6 = vector.load %arg3[%c0_9, %c0_10] : memref<1x512xf32, #tpu.memory_space<vmem>>, vector<1x512xf32>
    %7 = vector.broadcast %6 : vector<1x512xf32> to vector<64x512xf32>
    %8 = arith.addf %5, %7 : vector<64x512xf32>
    %c0_11 = arith.constant 0 : index
    %c0_12 = arith.constant 0 : index
    %9 = vector.load %arg6[%c0_11, %c0_12] : memref<1x512xf32, #tpu.memory_space<vmem>>, vector<1x512xf32>
    %10 = vector.shape_cast %9 : vector<1x512xf32> to vector<1x512xf32>
    %11 = vector.broadcast %10 : vector<1x512xf32> to vector<8x512xf32>
    %cst_13 = arith.constant 0.000000e+00 : f32
    %12 = vector.broadcast %cst_13 : f32 to vector<8x128xf32>
    %cst_14 = arith.constant 0.000000e+00 : f32
    %13 = vector.broadcast %cst_14 : f32 to vector<8x128xf32>
    %cst_15 = arith.constant 0.000000e+00 : f32
    %14 = vector.broadcast %cst_15 : f32 to vector<8x128xf32>
    %cst_16 = arith.constant 0.000000e+00 : f32
    %15 = vector.broadcast %cst_16 : f32 to vector<8x128xf32>
    %16 = vector.extract_strided_slice %8 {offsets = [0, 0], sizes = [8, 512], strides = [1, 1]} : vector<64x512xf32> to vector<8x512xf32>
    %cst_17 = arith.constant dense<0.000000e+00> : vector<8x512xf32>
    %17 = tpu.matmul %12, %0, %cst_17 {dimension_numbers = #tpu.dot_dimension_numbers<[1], [0], [0], [1], [0, 0, 1, 1], [], []>} : vector<8x128xf32>, vector<128x512xf32>, vector<8x512xf32> -> vector<8x512xf32>
    %18 = arith.addf %16, %17 : vector<8x512xf32>
    %19 = vector.extract_strided_slice %18 {offsets = [0, 0], sizes = [8, 128], strides = [1, 1]} : vector<8x512xf32> to vector<8x128xf32>
    %20 = arith.negf %19 : vector<8x128xf32>
    %21 = math.exp %20 : vector<8x128xf32>
    %cst_18 = arith.constant 1.000000e+00 : f32
    %22 = vector.broadcast %cst_18 : f32 to vector<8x128xf32>
    %23 = arith.addf %22, %21 : vector<8x128xf32>
    %24 = arith.divf %22, %23 : vector<8x128xf32>
    %25 = vector.extract_strided_slice %18 {offsets = [0, 128], sizes = [8, 128], strides = [1, 1]} : vector<8x512xf32> to vector<8x128xf32>
    %26 = arith.negf %25 : vector<8x128xf32>
    %27 = math.exp %26 : vector<8x128xf32>
    %cst_19 = arith.constant 1.000000e+00 : f32
    %28 = vector.broadcast %cst_19 : f32 to vector<8x128xf32>
    %29 = arith.addf %28, %27 : vector<8x128xf32>
    %30 = arith.divf %28, %29 : vector<8x128xf32>
    %31 = vector.extract_strided_slice %18 {offsets = [0, 256], sizes = [8, 128], strides = [1, 1]} : vector<8x512xf32> to vector<8x128xf32>
    %32 = math.tanh %31 : vector<8x128xf32>
    %33 = vector.extract_strided_slice %18 {offsets = [0, 384], sizes = [8, 128], strides = [1, 1]} : vector<8x512xf32> to vector<8x128xf32>
    %34 = arith.negf %33 : vector<8x128xf32>
    %35 = math.exp %34 : vector<8x128xf32>
    %cst_20 = arith.constant 1.000000e+00 : f32
    %36 = vector.broadcast %cst_20 : f32 to vector<8x128xf32>
    %37 = arith.addf %36, %35 : vector<8x128xf32>
    %38 = arith.divf %36, %37 : vector<8x128xf32>
    %39 = arith.mulf %30, %13 : vector<8x128xf32>
    %40 = arith.mulf %24, %32 : vector<8x128xf32>
    %41 = arith.addf %39, %40 : vector<8x128xf32>
    %42 = math.tanh %41 : vector<8x128xf32>
    %43 = arith.mulf %38, %42 : vector<8x128xf32>
    %cst_21 = arith.constant dense<0.000000e+00> : vector<8x512xf32>
    %44 = tpu.matmul %43, %1, %cst_21 {dimension_numbers = #tpu.dot_dimension_numbers<[1], [0], [0], [1], [0, 0, 1, 1], [], []>} : vector<8x128xf32>, vector<128x512xf32>, vector<8x512xf32> -> vector<8x512xf32>
    %cst_22 = arith.constant dense<0.000000e+00> : vector<8x512xf32>
    %45 = tpu.matmul %14, %2, %cst_22 {dimension_numbers = #tpu.dot_dimension_numbers<[1], [0], [0], [1], [0, 0, 1, 1], [], []>} : vector<8x128xf32>, vector<128x512xf32>, vector<8x512xf32> -> vector<8x512xf32>
    %46 = arith.addf %44, %45 : vector<8x512xf32>
    %47 = arith.addf %46, %11 : vector<8x512xf32>
    %48 = vector.extract_strided_slice %47 {offsets = [0, 0], sizes = [8, 128], strides = [1, 1]} : vector<8x512xf32> to vector<8x128xf32>
    %49 = arith.negf %48 : vector<8x128xf32>
    %50 = math.exp %49 : vector<8x128xf32>
    %cst_23 = arith.constant 1.000000e+00 : f32
    %51 = vector.broadcast %cst_23 : f32 to vector<8x128xf32>
    %52 = arith.addf %51, %50 : vector<8x128xf32>
    %53 = arith.divf %51, %52 : vector<8x128xf32>
    %54 = vector.extract_strided_slice %47 {offsets = [0, 128], sizes = [8, 128], strides = [1, 1]} : vector<8x512xf32> to vector<8x128xf32>
    %55 = arith.negf %54 : vector<8x128xf32>
    %56 = math.exp %55 : vector<8x128xf32>
    %cst_24 = arith.constant 1.000000e+00 : f32
    %57 = vector.broadcast %cst_24 : f32 to vector<8x128xf32>
    %58 = arith.addf %57, %56 : vector<8x128xf32>
    %59 = arith.divf %57, %58 : vector<8x128xf32>
    %60 = vector.extract_strided_slice %47 {offsets = [0, 256], sizes = [8, 128], strides = [1, 1]} : vector<8x512xf32> to vector<8x128xf32>
    %61 = math.tanh %60 : vector<8x128xf32>
    %62 = vector.extract_strided_slice %47 {offsets = [0, 384], sizes = [8, 128], strides = [1, 1]} : vector<8x512xf32> to vector<8x128xf32>
    %63 = arith.negf %62 : vector<8x128xf32>
    %64 = math.exp %63 : vector<8x128xf32>
    %cst_25 = arith.constant 1.000000e+00 : f32
    %65 = vector.broadcast %cst_25 : f32 to vector<8x128xf32>
    %66 = arith.addf %65, %64 : vector<8x128xf32>
    %67 = arith.divf %65, %66 : vector<8x128xf32>
    %68 = arith.mulf %59, %15 : vector<8x128xf32>
    %69 = arith.mulf %53, %61 : vector<8x128xf32>
    %70 = arith.addf %68, %69 : vector<8x128xf32>
    %71 = math.tanh %70 : vector<8x128xf32>
    %72 = arith.mulf %67, %71 : vector<8x128xf32>
    %73 = vector.extract_strided_slice %8 {offsets = [8, 0], sizes = [8, 512], strides = [1, 1]} : vector<64x512xf32> to vector<8x512xf32>
    %cst_26 = arith.constant dense<0.000000e+00> : vector<8x512xf32>
    %74 = tpu.matmul %43, %0, %cst_26 {dimension_numbers = #tpu.dot_dimension_numbers<[1], [0], [0], [1], [0, 0, 1, 1], [], []>} : vector<8x128xf32>, vector<128x512xf32>, vector<8x512xf32> -> vector<8x512xf32>
    %75 = arith.addf %73, %74 : vector<8x512xf32>
    %76 = vector.extract_strided_slice %75 {offsets = [0, 0], sizes = [8, 128], strides = [1, 1]} : vector<8x512xf32> to vector<8x128xf32>
    %77 = arith.negf %76 : vector<8x128xf32>
    %78 = math.exp %77 : vector<8x128xf32>
    %cst_27 = arith.constant 1.000000e+00 : f32
    %79 = vector.broadcast %cst_27 : f32 to vector<8x128xf32>
    %80 = arith.addf %79, %78 : vector<8x128xf32>
    %81 = arith.divf %79, %80 : vector<8x128xf32>
    %82 = vector.extract_strided_slice %75 {offsets = [0, 128], sizes = [8, 128], strides = [1, 1]} : vector<8x512xf32> to vector<8x128xf32>
    %83 = arith.negf %82 : vector<8x128xf32>
    %84 = math.exp %83 : vector<8x128xf32>
    %cst_28 = arith.constant 1.000000e+00 : f32
    %85 = vector.broadcast %cst_28 : f32 to vector<8x128xf32>
    %86 = arith.addf %85, %84 : vector<8x128xf32>
    %87 = arith.divf %85, %86 : vector<8x128xf32>
    %88 = vector.extract_strided_slice %75 {offsets = [0, 256], sizes = [8, 128], strides = [1, 1]} : vector<8x512xf32> to vector<8x128xf32>
    %89 = math.tanh %88 : vector<8x128xf32>
    %90 = vector.extract_strided_slice %75 {offsets = [0, 384], sizes = [8, 128], strides = [1, 1]} : vector<8x512xf32> to vector<8x128xf32>
    %91 = arith.negf %90 : vector<8x128xf32>
    %92 = math.exp %91 : vector<8x128xf32>
    %cst_29 = arith.constant 1.000000e+00 : f32
    %93 = vector.broadcast %cst_29 : f32 to vector<8x128xf32>
    %94 = arith.addf %93, %92 : vector<8x128xf32>
    %95 = arith.divf %93, %94 : vector<8x128xf32>
    %96 = arith.mulf %87, %41 : vector<8x128xf32>
    %97 = arith.mulf %81, %89 : vector<8x128xf32>
    %98 = arith.addf %96, %97 : vector<8x128xf32>
    %99 = math.tanh %98 : vector<8x128xf32>
    %100 = arith.mulf %95, %99 : vector<8x128xf32>
    %cst_30 = arith.constant dense<0.000000e+00> : vector<8x512xf32>
    %101 = tpu.matmul %100, %1, %cst_30 {dimension_numbers = #tpu.dot_dimension_numbers<[1], [0], [0], [1], [0, 0, 1, 1], [], []>} : vector<8x128xf32>, vector<128x512xf32>, vector<8x512xf32> -> vector<8x512xf32>
    %cst_31 = arith.constant dense<0.000000e+00> : vector<8x512xf32>
    %102 = tpu.matmul %72, %2, %cst_31 {dimension_numbers = #tpu.dot_dimension_numbers<[1], [0], [0], [1], [0, 0, 1, 1], [], []>} : vector<8x128xf32>, vector<128x512xf32>, vector<8x512xf32> -> vector<8x512xf32>
    %103 = arith.addf %101, %102 : vector<8x512xf32>
    %104 = arith.addf %103, %11 : vector<8x512xf32>
    %105 = vector.extract_strided_slice %104 {offsets = [0, 0], sizes = [8, 128], strides = [1, 1]} : vector<8x512xf32> to vector<8x128xf32>
    %106 = arith.negf %105 : vector<8x128xf32>
    %107 = math.exp %106 : vector<8x128xf32>
    %cst_32 = arith.constant 1.000000e+00 : f32
    %108 = vector.broadcast %cst_32 : f32 to vector<8x128xf32>
    %109 = arith.addf %108, %107 : vector<8x128xf32>
    %110 = arith.divf %108, %109 : vector<8x128xf32>
    %111 = vector.extract_strided_slice %104 {offsets = [0, 128], sizes = [8, 128], strides = [1, 1]} : vector<8x512xf32> to vector<8x128xf32>
    %112 = arith.negf %111 : vector<8x128xf32>
    %113 = math.exp %112 : vector<8x128xf32>
    %cst_33 = arith.constant 1.000000e+00 : f32
    %114 = vector.broadcast %cst_33 : f32 to vector<8x128xf32>
    %115 = arith.addf %114, %113 : vector<8x128xf32>
    %116 = arith.divf %114, %115 : vector<8x128xf32>
    %117 = vector.extract_strided_slice %104 {offsets = [0, 256], sizes = [8, 128], strides = [1, 1]} : vector<8x512xf32> to vector<8x128xf32>
    %118 = math.tanh %117 : vector<8x128xf32>
    %119 = vector.extract_strided_slice %104 {offsets = [0, 384], sizes = [8, 128], strides = [1, 1]} : vector<8x512xf32> to vector<8x128xf32>
    %120 = arith.negf %119 : vector<8x128xf32>
    %121 = math.exp %120 : vector<8x128xf32>
    %cst_34 = arith.constant 1.000000e+00 : f32
    %122 = vector.broadcast %cst_34 : f32 to vector<8x128xf32>
    %123 = arith.addf %122, %121 : vector<8x128xf32>
    %124 = arith.divf %122, %123 : vector<8x128xf32>
    %125 = arith.mulf %116, %70 : vector<8x128xf32>
    %126 = arith.mulf %110, %118 : vector<8x128xf32>
    %127 = arith.addf %125, %126 : vector<8x128xf32>
    %128 = math.tanh %127 : vector<8x128xf32>
    %129 = arith.mulf %124, %128 : vector<8x128xf32>
    %130 = vector.extract_strided_slice %8 {offsets = [16, 0], sizes = [8, 512], strides = [1, 1]} : vector<64x512xf32> to vector<8x512xf32>
    %cst_35 = arith.constant dense<0.000000e+00> : vector<8x512xf32>
    %131 = tpu.matmul %100, %0, %cst_35 {dimension_numbers = #tpu.dot_dimension_numbers<[1], [0], [0], [1], [0, 0, 1, 1], [], []>} : vector<8x128xf32>, vector<128x512xf32>, vector<8x512xf32> -> vector<8x512xf32>
    %132 = arith.addf %130, %131 : vector<8x512xf32>
    %133 = vector.extract_strided_slice %132 {offsets = [0, 0], sizes = [8, 128], strides = [1, 1]} : vector<8x512xf32> to vector<8x128xf32>
    %134 = arith.negf %133 : vector<8x128xf32>
    %135 = math.exp %134 : vector<8x128xf32>
    %cst_36 = arith.constant 1.000000e+00 : f32
    %136 = vector.broadcast %cst_36 : f32 to vector<8x128xf32>
    %137 = arith.addf %136, %135 : vector<8x128xf32>
    %138 = arith.divf %136, %137 : vector<8x128xf32>
    %139 = vector.extract_strided_slice %132 {offsets = [0, 128], sizes = [8, 128], strides = [1, 1]} : vector<8x512xf32> to vector<8x128xf32>
    %140 = arith.negf %139 : vector<8x128xf32>
    %141 = math.exp %140 : vector<8x128xf32>
    %cst_37 = arith.constant 1.000000e+00 : f32
    %142 = vector.broadcast %cst_37 : f32 to vector<8x128xf32>
    %143 = arith.addf %142, %141 : vector<8x128xf32>
    %144 = arith.divf %142, %143 : vector<8x128xf32>
    %145 = vector.extract_strided_slice %132 {offsets = [0, 256], sizes = [8, 128], strides = [1, 1]} : vector<8x512xf32> to vector<8x128xf32>
    %146 = math.tanh %145 : vector<8x128xf32>
    %147 = vector.extract_strided_slice %132 {offsets = [0, 384], sizes = [8, 128], strides = [1, 1]} : vector<8x512xf32> to vector<8x128xf32>
    %148 = arith.negf %147 : vector<8x128xf32>
    %149 = math.exp %148 : vector<8x128xf32>
    %cst_38 = arith.constant 1.000000e+00 : f32
    %150 = vector.broadcast %cst_38 : f32 to vector<8x128xf32>
    %151 = arith.addf %150, %149 : vector<8x128xf32>
    %152 = arith.divf %150, %151 : vector<8x128xf32>
    %153 = arith.mulf %144, %98 : vector<8x128xf32>
    %154 = arith.mulf %138, %146 : vector<8x128xf32>
    %155 = arith.addf %153, %154 : vector<8x128xf32>
    %156 = math.tanh %155 : vector<8x128xf32>
    %157 = arith.mulf %152, %156 : vector<8x128xf32>
    %cst_39 = arith.constant dense<0.000000e+00> : vector<8x512xf32>
    %158 = tpu.matmul %157, %1, %cst_39 {dimension_numbers = #tpu.dot_dimension_numbers<[1], [0], [0], [1], [0, 0, 1, 1], [], []>} : vector<8x128xf32>, vector<128x512xf32>, vector<8x512xf32> -> vector<8x512xf32>
    %cst_40 = arith.constant dense<0.000000e+00> : vector<8x512xf32>
    %159 = tpu.matmul %129, %2, %cst_40 {dimension_numbers = #tpu.dot_dimension_numbers<[1], [0], [0], [1], [0, 0, 1, 1], [], []>} : vector<8x128xf32>, vector<128x512xf32>, vector<8x512xf32> -> vector<8x512xf32>
    %160 = arith.addf %158, %159 : vector<8x512xf32>
    %161 = arith.addf %160, %11 : vector<8x512xf32>
    %162 = vector.extract_strided_slice %161 {offsets = [0, 0], sizes = [8, 128], strides = [1, 1]} : vector<8x512xf32> to vector<8x128xf32>
    %163 = arith.negf %162 : vector<8x128xf32>
    %164 = math.exp %163 : vector<8x128xf32>
    %cst_41 = arith.constant 1.000000e+00 : f32
    %165 = vector.broadcast %cst_41 : f32 to vector<8x128xf32>
    %166 = arith.addf %165, %164 : vector<8x128xf32>
    %167 = arith.divf %165, %166 : vector<8x128xf32>
    %168 = vector.extract_strided_slice %161 {offsets = [0, 128], sizes = [8, 128], strides = [1, 1]} : vector<8x512xf32> to vector<8x128xf32>
    %169 = arith.negf %168 : vector<8x128xf32>
    %170 = math.exp %169 : vector<8x128xf32>
    %cst_42 = arith.constant 1.000000e+00 : f32
    %171 = vector.broadcast %cst_42 : f32 to vector<8x128xf32>
    %172 = arith.addf %171, %170 : vector<8x128xf32>
    %173 = arith.divf %171, %172 : vector<8x128xf32>
    %174 = vector.extract_strided_slice %161 {offsets = [0, 256], sizes = [8, 128], strides = [1, 1]} : vector<8x512xf32> to vector<8x128xf32>
    %175 = math.tanh %174 : vector<8x128xf32>
    %176 = vector.extract_strided_slice %161 {offsets = [0, 384], sizes = [8, 128], strides = [1, 1]} : vector<8x512xf32> to vector<8x128xf32>
    %177 = arith.negf %176 : vector<8x128xf32>
    %178 = math.exp %177 : vector<8x128xf32>
    %cst_43 = arith.constant 1.000000e+00 : f32
    %179 = vector.broadcast %cst_43 : f32 to vector<8x128xf32>
    %180 = arith.addf %179, %178 : vector<8x128xf32>
    %181 = arith.divf %179, %180 : vector<8x128xf32>
    %182 = arith.mulf %173, %127 : vector<8x128xf32>
    %183 = arith.mulf %167, %175 : vector<8x128xf32>
    %184 = arith.addf %182, %183 : vector<8x128xf32>
    %185 = math.tanh %184 : vector<8x128xf32>
    %186 = arith.mulf %181, %185 : vector<8x128xf32>
    %187 = vector.extract_strided_slice %8 {offsets = [24, 0], sizes = [8, 512], strides = [1, 1]} : vector<64x512xf32> to vector<8x512xf32>
    %cst_44 = arith.constant dense<0.000000e+00> : vector<8x512xf32>
    %188 = tpu.matmul %157, %0, %cst_44 {dimension_numbers = #tpu.dot_dimension_numbers<[1], [0], [0], [1], [0, 0, 1, 1], [], []>} : vector<8x128xf32>, vector<128x512xf32>, vector<8x512xf32> -> vector<8x512xf32>
    %189 = arith.addf %187, %188 : vector<8x512xf32>
    %190 = vector.extract_strided_slice %189 {offsets = [0, 0], sizes = [8, 128], strides = [1, 1]} : vector<8x512xf32> to vector<8x128xf32>
    %191 = arith.negf %190 : vector<8x128xf32>
    %192 = math.exp %191 : vector<8x128xf32>
    %cst_45 = arith.constant 1.000000e+00 : f32
    %193 = vector.broadcast %cst_45 : f32 to vector<8x128xf32>
    %194 = arith.addf %193, %192 : vector<8x128xf32>
    %195 = arith.divf %193, %194 : vector<8x128xf32>
    %196 = vector.extract_strided_slice %189 {offsets = [0, 128], sizes = [8, 128], strides = [1, 1]} : vector<8x512xf32> to vector<8x128xf32>
    %197 = arith.negf %196 : vector<8x128xf32>
    %198 = math.exp %197 : vector<8x128xf32>
    %cst_46 = arith.constant 1.000000e+00 : f32
    %199 = vector.broadcast %cst_46 : f32 to vector<8x128xf32>
    %200 = arith.addf %199, %198 : vector<8x128xf32>
    %201 = arith.divf %199, %200 : vector<8x128xf32>
    %202 = vector.extract_strided_slice %189 {offsets = [0, 256], sizes = [8, 128], strides = [1, 1]} : vector<8x512xf32> to vector<8x128xf32>
    %203 = math.tanh %202 : vector<8x128xf32>
    %204 = vector.extract_strided_slice %189 {offsets = [0, 384], sizes = [8, 128], strides = [1, 1]} : vector<8x512xf32> to vector<8x128xf32>
    %205 = arith.negf %204 : vector<8x128xf32>
    %206 = math.exp %205 : vector<8x128xf32>
    %cst_47 = arith.constant 1.000000e+00 : f32
    %207 = vector.broadcast %cst_47 : f32 to vector<8x128xf32>
    %208 = arith.addf %207, %206 : vector<8x128xf32>
    %209 = arith.divf %207, %208 : vector<8x128xf32>
    %210 = arith.mulf %201, %155 : vector<8x128xf32>
    %211 = arith.mulf %195, %203 : vector<8x128xf32>
    %212 = arith.addf %210, %211 : vector<8x128xf32>
    %213 = math.tanh %212 : vector<8x128xf32>
    %214 = arith.mulf %209, %213 : vector<8x128xf32>
    %cst_48 = arith.constant dense<0.000000e+00> : vector<8x512xf32>
    %215 = tpu.matmul %214, %1, %cst_48 {dimension_numbers = #tpu.dot_dimension_numbers<[1], [0], [0], [1], [0, 0, 1, 1], [], []>} : vector<8x128xf32>, vector<128x512xf32>, vector<8x512xf32> -> vector<8x512xf32>
    %cst_49 = arith.constant dense<0.000000e+00> : vector<8x512xf32>
    %216 = tpu.matmul %186, %2, %cst_49 {dimension_numbers = #tpu.dot_dimension_numbers<[1], [0], [0], [1], [0, 0, 1, 1], [], []>} : vector<8x128xf32>, vector<128x512xf32>, vector<8x512xf32> -> vector<8x512xf32>
    %217 = arith.addf %215, %216 : vector<8x512xf32>
    %218 = arith.addf %217, %11 : vector<8x512xf32>
    %219 = vector.extract_strided_slice %218 {offsets = [0, 0], sizes = [8, 128], strides = [1, 1]} : vector<8x512xf32> to vector<8x128xf32>
    %220 = arith.negf %219 : vector<8x128xf32>
    %221 = math.exp %220 : vector<8x128xf32>
    %cst_50 = arith.constant 1.000000e+00 : f32
    %222 = vector.broadcast %cst_50 : f32 to vector<8x128xf32>
    %223 = arith.addf %222, %221 : vector<8x128xf32>
    %224 = arith.divf %222, %223 : vector<8x128xf32>
    %225 = vector.extract_strided_slice %218 {offsets = [0, 128], sizes = [8, 128], strides = [1, 1]} : vector<8x512xf32> to vector<8x128xf32>
    %226 = arith.negf %225 : vector<8x128xf32>
    %227 = math.exp %226 : vector<8x128xf32>
    %cst_51 = arith.constant 1.000000e+00 : f32
    %228 = vector.broadcast %cst_51 : f32 to vector<8x128xf32>
    %229 = arith.addf %228, %227 : vector<8x128xf32>
    %230 = arith.divf %228, %229 : vector<8x128xf32>
    %231 = vector.extract_strided_slice %218 {offsets = [0, 256], sizes = [8, 128], strides = [1, 1]} : vector<8x512xf32> to vector<8x128xf32>
    %232 = math.tanh %231 : vector<8x128xf32>
    %233 = vector.extract_strided_slice %218 {offsets = [0, 384], sizes = [8, 128], strides = [1, 1]} : vector<8x512xf32> to vector<8x128xf32>
    %234 = arith.negf %233 : vector<8x128xf32>
    %235 = math.exp %234 : vector<8x128xf32>
    %cst_52 = arith.constant 1.000000e+00 : f32
    %236 = vector.broadcast %cst_52 : f32 to vector<8x128xf32>
    %237 = arith.addf %236, %235 : vector<8x128xf32>
    %238 = arith.divf %236, %237 : vector<8x128xf32>
    %239 = arith.mulf %230, %184 : vector<8x128xf32>
    %240 = arith.mulf %224, %232 : vector<8x128xf32>
    %241 = arith.addf %239, %240 : vector<8x128xf32>
    %242 = math.tanh %241 : vector<8x128xf32>
    %243 = arith.mulf %238, %242 : vector<8x128xf32>
    %244 = vector.extract_strided_slice %8 {offsets = [32, 0], sizes = [8, 512], strides = [1, 1]} : vector<64x512xf32> to vector<8x512xf32>
    %cst_53 = arith.constant dense<0.000000e+00> : vector<8x512xf32>
    %245 = tpu.matmul %214, %0, %cst_53 {dimension_numbers = #tpu.dot_dimension_numbers<[1], [0], [0], [1], [0, 0, 1, 1], [], []>} : vector<8x128xf32>, vector<128x512xf32>, vector<8x512xf32> -> vector<8x512xf32>
    %246 = arith.addf %244, %245 : vector<8x512xf32>
    %247 = vector.extract_strided_slice %246 {offsets = [0, 0], sizes = [8, 128], strides = [1, 1]} : vector<8x512xf32> to vector<8x128xf32>
    %248 = arith.negf %247 : vector<8x128xf32>
    %249 = math.exp %248 : vector<8x128xf32>
    %cst_54 = arith.constant 1.000000e+00 : f32
    %250 = vector.broadcast %cst_54 : f32 to vector<8x128xf32>
    %251 = arith.addf %250, %249 : vector<8x128xf32>
    %252 = arith.divf %250, %251 : vector<8x128xf32>
    %253 = vector.extract_strided_slice %246 {offsets = [0, 128], sizes = [8, 128], strides = [1, 1]} : vector<8x512xf32> to vector<8x128xf32>
    %254 = arith.negf %253 : vector<8x128xf32>
    %255 = math.exp %254 : vector<8x128xf32>
    %cst_55 = arith.constant 1.000000e+00 : f32
    %256 = vector.broadcast %cst_55 : f32 to vector<8x128xf32>
    %257 = arith.addf %256, %255 : vector<8x128xf32>
    %258 = arith.divf %256, %257 : vector<8x128xf32>
    %259 = vector.extract_strided_slice %246 {offsets = [0, 256], sizes = [8, 128], strides = [1, 1]} : vector<8x512xf32> to vector<8x128xf32>
    %260 = math.tanh %259 : vector<8x128xf32>
    %261 = vector.extract_strided_slice %246 {offsets = [0, 384], sizes = [8, 128], strides = [1, 1]} : vector<8x512xf32> to vector<8x128xf32>
    %262 = arith.negf %261 : vector<8x128xf32>
    %263 = math.exp %262 : vector<8x128xf32>
    %cst_56 = arith.constant 1.000000e+00 : f32
    %264 = vector.broadcast %cst_56 : f32 to vector<8x128xf32>
    %265 = arith.addf %264, %263 : vector<8x128xf32>
    %266 = arith.divf %264, %265 : vector<8x128xf32>
    %267 = arith.mulf %258, %212 : vector<8x128xf32>
    %268 = arith.mulf %252, %260 : vector<8x128xf32>
    %269 = arith.addf %267, %268 : vector<8x128xf32>
    %270 = math.tanh %269 : vector<8x128xf32>
    %271 = arith.mulf %266, %270 : vector<8x128xf32>
    %cst_57 = arith.constant dense<0.000000e+00> : vector<8x512xf32>
    %272 = tpu.matmul %271, %1, %cst_57 {dimension_numbers = #tpu.dot_dimension_numbers<[1], [0], [0], [1], [0, 0, 1, 1], [], []>} : vector<8x128xf32>, vector<128x512xf32>, vector<8x512xf32> -> vector<8x512xf32>
    %cst_58 = arith.constant dense<0.000000e+00> : vector<8x512xf32>
    %273 = tpu.matmul %243, %2, %cst_58 {dimension_numbers = #tpu.dot_dimension_numbers<[1], [0], [0], [1], [0, 0, 1, 1], [], []>} : vector<8x128xf32>, vector<128x512xf32>, vector<8x512xf32> -> vector<8x512xf32>
    %274 = arith.addf %272, %273 : vector<8x512xf32>
    %275 = arith.addf %274, %11 : vector<8x512xf32>
    %276 = vector.extract_strided_slice %275 {offsets = [0, 0], sizes = [8, 128], strides = [1, 1]} : vector<8x512xf32> to vector<8x128xf32>
    %277 = arith.negf %276 : vector<8x128xf32>
    %278 = math.exp %277 : vector<8x128xf32>
    %cst_59 = arith.constant 1.000000e+00 : f32
    %279 = vector.broadcast %cst_59 : f32 to vector<8x128xf32>
    %280 = arith.addf %279, %278 : vector<8x128xf32>
    %281 = arith.divf %279, %280 : vector<8x128xf32>
    %282 = vector.extract_strided_slice %275 {offsets = [0, 128], sizes = [8, 128], strides = [1, 1]} : vector<8x512xf32> to vector<8x128xf32>
    %283 = arith.negf %282 : vector<8x128xf32>
    %284 = math.exp %283 : vector<8x128xf32>
    %cst_60 = arith.constant 1.000000e+00 : f32
    %285 = vector.broadcast %cst_60 : f32 to vector<8x128xf32>
    %286 = arith.addf %285, %284 : vector<8x128xf32>
    %287 = arith.divf %285, %286 : vector<8x128xf32>
    %288 = vector.extract_strided_slice %275 {offsets = [0, 256], sizes = [8, 128], strides = [1, 1]} : vector<8x512xf32> to vector<8x128xf32>
    %289 = math.tanh %288 : vector<8x128xf32>
    %290 = vector.extract_strided_slice %275 {offsets = [0, 384], sizes = [8, 128], strides = [1, 1]} : vector<8x512xf32> to vector<8x128xf32>
    %291 = arith.negf %290 : vector<8x128xf32>
    %292 = math.exp %291 : vector<8x128xf32>
    %cst_61 = arith.constant 1.000000e+00 : f32
    %293 = vector.broadcast %cst_61 : f32 to vector<8x128xf32>
    %294 = arith.addf %293, %292 : vector<8x128xf32>
    %295 = arith.divf %293, %294 : vector<8x128xf32>
    %296 = arith.mulf %287, %241 : vector<8x128xf32>
    %297 = arith.mulf %281, %289 : vector<8x128xf32>
    %298 = arith.addf %296, %297 : vector<8x128xf32>
    %299 = math.tanh %298 : vector<8x128xf32>
    %300 = arith.mulf %295, %299 : vector<8x128xf32>
    %301 = vector.extract_strided_slice %8 {offsets = [40, 0], sizes = [8, 512], strides = [1, 1]} : vector<64x512xf32> to vector<8x512xf32>
    %cst_62 = arith.constant dense<0.000000e+00> : vector<8x512xf32>
    %302 = tpu.matmul %271, %0, %cst_62 {dimension_numbers = #tpu.dot_dimension_numbers<[1], [0], [0], [1], [0, 0, 1, 1], [], []>} : vector<8x128xf32>, vector<128x512xf32>, vector<8x512xf32> -> vector<8x512xf32>
    %303 = arith.addf %301, %302 : vector<8x512xf32>
    %304 = vector.extract_strided_slice %303 {offsets = [0, 0], sizes = [8, 128], strides = [1, 1]} : vector<8x512xf32> to vector<8x128xf32>
    %305 = arith.negf %304 : vector<8x128xf32>
    %306 = math.exp %305 : vector<8x128xf32>
    %cst_63 = arith.constant 1.000000e+00 : f32
    %307 = vector.broadcast %cst_63 : f32 to vector<8x128xf32>
    %308 = arith.addf %307, %306 : vector<8x128xf32>
    %309 = arith.divf %307, %308 : vector<8x128xf32>
    %310 = vector.extract_strided_slice %303 {offsets = [0, 128], sizes = [8, 128], strides = [1, 1]} : vector<8x512xf32> to vector<8x128xf32>
    %311 = arith.negf %310 : vector<8x128xf32>
    %312 = math.exp %311 : vector<8x128xf32>
    %cst_64 = arith.constant 1.000000e+00 : f32
    %313 = vector.broadcast %cst_64 : f32 to vector<8x128xf32>
    %314 = arith.addf %313, %312 : vector<8x128xf32>
    %315 = arith.divf %313, %314 : vector<8x128xf32>
    %316 = vector.extract_strided_slice %303 {offsets = [0, 256], sizes = [8, 128], strides = [1, 1]} : vector<8x512xf32> to vector<8x128xf32>
    %317 = math.tanh %316 : vector<8x128xf32>
    %318 = vector.extract_strided_slice %303 {offsets = [0, 384], sizes = [8, 128], strides = [1, 1]} : vector<8x512xf32> to vector<8x128xf32>
    %319 = arith.negf %318 : vector<8x128xf32>
    %320 = math.exp %319 : vector<8x128xf32>
    %cst_65 = arith.constant 1.000000e+00 : f32
    %321 = vector.broadcast %cst_65 : f32 to vector<8x128xf32>
    %322 = arith.addf %321, %320 : vector<8x128xf32>
    %323 = arith.divf %321, %322 : vector<8x128xf32>
    %324 = arith.mulf %315, %269 : vector<8x128xf32>
    %325 = arith.mulf %309, %317 : vector<8x128xf32>
    %326 = arith.addf %324, %325 : vector<8x128xf32>
    %327 = math.tanh %326 : vector<8x128xf32>
    %328 = arith.mulf %323, %327 : vector<8x128xf32>
    %cst_66 = arith.constant dense<0.000000e+00> : vector<8x512xf32>
    %329 = tpu.matmul %328, %1, %cst_66 {dimension_numbers = #tpu.dot_dimension_numbers<[1], [0], [0], [1], [0, 0, 1, 1], [], []>} : vector<8x128xf32>, vector<128x512xf32>, vector<8x512xf32> -> vector<8x512xf32>
    %cst_67 = arith.constant dense<0.000000e+00> : vector<8x512xf32>
    %330 = tpu.matmul %300, %2, %cst_67 {dimension_numbers = #tpu.dot_dimension_numbers<[1], [0], [0], [1], [0, 0, 1, 1], [], []>} : vector<8x128xf32>, vector<128x512xf32>, vector<8x512xf32> -> vector<8x512xf32>
    %331 = arith.addf %329, %330 : vector<8x512xf32>
    %332 = arith.addf %331, %11 : vector<8x512xf32>
    %333 = vector.extract_strided_slice %332 {offsets = [0, 0], sizes = [8, 128], strides = [1, 1]} : vector<8x512xf32> to vector<8x128xf32>
    %334 = arith.negf %333 : vector<8x128xf32>
    %335 = math.exp %334 : vector<8x128xf32>
    %cst_68 = arith.constant 1.000000e+00 : f32
    %336 = vector.broadcast %cst_68 : f32 to vector<8x128xf32>
    %337 = arith.addf %336, %335 : vector<8x128xf32>
    %338 = arith.divf %336, %337 : vector<8x128xf32>
    %339 = vector.extract_strided_slice %332 {offsets = [0, 128], sizes = [8, 128], strides = [1, 1]} : vector<8x512xf32> to vector<8x128xf32>
    %340 = arith.negf %339 : vector<8x128xf32>
    %341 = math.exp %340 : vector<8x128xf32>
    %cst_69 = arith.constant 1.000000e+00 : f32
    %342 = vector.broadcast %cst_69 : f32 to vector<8x128xf32>
    %343 = arith.addf %342, %341 : vector<8x128xf32>
    %344 = arith.divf %342, %343 : vector<8x128xf32>
    %345 = vector.extract_strided_slice %332 {offsets = [0, 256], sizes = [8, 128], strides = [1, 1]} : vector<8x512xf32> to vector<8x128xf32>
    %346 = math.tanh %345 : vector<8x128xf32>
    %347 = vector.extract_strided_slice %332 {offsets = [0, 384], sizes = [8, 128], strides = [1, 1]} : vector<8x512xf32> to vector<8x128xf32>
    %348 = arith.negf %347 : vector<8x128xf32>
    %349 = math.exp %348 : vector<8x128xf32>
    %cst_70 = arith.constant 1.000000e+00 : f32
    %350 = vector.broadcast %cst_70 : f32 to vector<8x128xf32>
    %351 = arith.addf %350, %349 : vector<8x128xf32>
    %352 = arith.divf %350, %351 : vector<8x128xf32>
    %353 = arith.mulf %344, %298 : vector<8x128xf32>
    %354 = arith.mulf %338, %346 : vector<8x128xf32>
    %355 = arith.addf %353, %354 : vector<8x128xf32>
    %356 = math.tanh %355 : vector<8x128xf32>
    %357 = arith.mulf %352, %356 : vector<8x128xf32>
    %358 = vector.extract_strided_slice %8 {offsets = [48, 0], sizes = [8, 512], strides = [1, 1]} : vector<64x512xf32> to vector<8x512xf32>
    %cst_71 = arith.constant dense<0.000000e+00> : vector<8x512xf32>
    %359 = tpu.matmul %328, %0, %cst_71 {dimension_numbers = #tpu.dot_dimension_numbers<[1], [0], [0], [1], [0, 0, 1, 1], [], []>} : vector<8x128xf32>, vector<128x512xf32>, vector<8x512xf32> -> vector<8x512xf32>
    %360 = arith.addf %358, %359 : vector<8x512xf32>
    %361 = vector.extract_strided_slice %360 {offsets = [0, 0], sizes = [8, 128], strides = [1, 1]} : vector<8x512xf32> to vector<8x128xf32>
    %362 = arith.negf %361 : vector<8x128xf32>
    %363 = math.exp %362 : vector<8x128xf32>
    %cst_72 = arith.constant 1.000000e+00 : f32
    %364 = vector.broadcast %cst_72 : f32 to vector<8x128xf32>
    %365 = arith.addf %364, %363 : vector<8x128xf32>
    %366 = arith.divf %364, %365 : vector<8x128xf32>
    %367 = vector.extract_strided_slice %360 {offsets = [0, 128], sizes = [8, 128], strides = [1, 1]} : vector<8x512xf32> to vector<8x128xf32>
    %368 = arith.negf %367 : vector<8x128xf32>
    %369 = math.exp %368 : vector<8x128xf32>
    %cst_73 = arith.constant 1.000000e+00 : f32
    %370 = vector.broadcast %cst_73 : f32 to vector<8x128xf32>
    %371 = arith.addf %370, %369 : vector<8x128xf32>
    %372 = arith.divf %370, %371 : vector<8x128xf32>
    %373 = vector.extract_strided_slice %360 {offsets = [0, 256], sizes = [8, 128], strides = [1, 1]} : vector<8x512xf32> to vector<8x128xf32>
    %374 = math.tanh %373 : vector<8x128xf32>
    %375 = vector.extract_strided_slice %360 {offsets = [0, 384], sizes = [8, 128], strides = [1, 1]} : vector<8x512xf32> to vector<8x128xf32>
    %376 = arith.negf %375 : vector<8x128xf32>
    %377 = math.exp %376 : vector<8x128xf32>
    %cst_74 = arith.constant 1.000000e+00 : f32
    %378 = vector.broadcast %cst_74 : f32 to vector<8x128xf32>
    %379 = arith.addf %378, %377 : vector<8x128xf32>
    %380 = arith.divf %378, %379 : vector<8x128xf32>
    %381 = arith.mulf %372, %326 : vector<8x128xf32>
    %382 = arith.mulf %366, %374 : vector<8x128xf32>
    %383 = arith.addf %381, %382 : vector<8x128xf32>
    %384 = math.tanh %383 : vector<8x128xf32>
    %385 = arith.mulf %380, %384 : vector<8x128xf32>
    %cst_75 = arith.constant dense<0.000000e+00> : vector<8x512xf32>
    %386 = tpu.matmul %385, %1, %cst_75 {dimension_numbers = #tpu.dot_dimension_numbers<[1], [0], [0], [1], [0, 0, 1, 1], [], []>} : vector<8x128xf32>, vector<128x512xf32>, vector<8x512xf32> -> vector<8x512xf32>
    %cst_76 = arith.constant dense<0.000000e+00> : vector<8x512xf32>
    %387 = tpu.matmul %357, %2, %cst_76 {dimension_numbers = #tpu.dot_dimension_numbers<[1], [0], [0], [1], [0, 0, 1, 1], [], []>} : vector<8x128xf32>, vector<128x512xf32>, vector<8x512xf32> -> vector<8x512xf32>
    %388 = arith.addf %386, %387 : vector<8x512xf32>
    %389 = arith.addf %388, %11 : vector<8x512xf32>
    %390 = vector.extract_strided_slice %389 {offsets = [0, 0], sizes = [8, 128], strides = [1, 1]} : vector<8x512xf32> to vector<8x128xf32>
    %391 = arith.negf %390 : vector<8x128xf32>
    %392 = math.exp %391 : vector<8x128xf32>
    %cst_77 = arith.constant 1.000000e+00 : f32
    %393 = vector.broadcast %cst_77 : f32 to vector<8x128xf32>
    %394 = arith.addf %393, %392 : vector<8x128xf32>
    %395 = arith.divf %393, %394 : vector<8x128xf32>
    %396 = vector.extract_strided_slice %389 {offsets = [0, 128], sizes = [8, 128], strides = [1, 1]} : vector<8x512xf32> to vector<8x128xf32>
    %397 = arith.negf %396 : vector<8x128xf32>
    %398 = math.exp %397 : vector<8x128xf32>
    %cst_78 = arith.constant 1.000000e+00 : f32
    %399 = vector.broadcast %cst_78 : f32 to vector<8x128xf32>
    %400 = arith.addf %399, %398 : vector<8x128xf32>
    %401 = arith.divf %399, %400 : vector<8x128xf32>
    %402 = vector.extract_strided_slice %389 {offsets = [0, 256], sizes = [8, 128], strides = [1, 1]} : vector<8x512xf32> to vector<8x128xf32>
    %403 = math.tanh %402 : vector<8x128xf32>
    %404 = vector.extract_strided_slice %389 {offsets = [0, 384], sizes = [8, 128], strides = [1, 1]} : vector<8x512xf32> to vector<8x128xf32>
    %405 = arith.negf %404 : vector<8x128xf32>
    %406 = math.exp %405 : vector<8x128xf32>
    %cst_79 = arith.constant 1.000000e+00 : f32
    %407 = vector.broadcast %cst_79 : f32 to vector<8x128xf32>
    %408 = arith.addf %407, %406 : vector<8x128xf32>
    %409 = arith.divf %407, %408 : vector<8x128xf32>
    %410 = arith.mulf %401, %355 : vector<8x128xf32>
    %411 = arith.mulf %395, %403 : vector<8x128xf32>
    %412 = arith.addf %410, %411 : vector<8x128xf32>
    %413 = math.tanh %412 : vector<8x128xf32>
    %414 = arith.mulf %409, %413 : vector<8x128xf32>
    %415 = vector.extract_strided_slice %8 {offsets = [56, 0], sizes = [8, 512], strides = [1, 1]} : vector<64x512xf32> to vector<8x512xf32>
    %cst_80 = arith.constant dense<0.000000e+00> : vector<8x512xf32>
    %416 = tpu.matmul %385, %0, %cst_80 {dimension_numbers = #tpu.dot_dimension_numbers<[1], [0], [0], [1], [0, 0, 1, 1], [], []>} : vector<8x128xf32>, vector<128x512xf32>, vector<8x512xf32> -> vector<8x512xf32>
    %417 = arith.addf %415, %416 : vector<8x512xf32>
    %418 = vector.extract_strided_slice %417 {offsets = [0, 0], sizes = [8, 128], strides = [1, 1]} : vector<8x512xf32> to vector<8x128xf32>
    %419 = arith.negf %418 : vector<8x128xf32>
    %420 = math.exp %419 : vector<8x128xf32>
    %cst_81 = arith.constant 1.000000e+00 : f32
    %421 = vector.broadcast %cst_81 : f32 to vector<8x128xf32>
    %422 = arith.addf %421, %420 : vector<8x128xf32>
    %423 = arith.divf %421, %422 : vector<8x128xf32>
    %424 = vector.extract_strided_slice %417 {offsets = [0, 128], sizes = [8, 128], strides = [1, 1]} : vector<8x512xf32> to vector<8x128xf32>
    %425 = arith.negf %424 : vector<8x128xf32>
    %426 = math.exp %425 : vector<8x128xf32>
    %cst_82 = arith.constant 1.000000e+00 : f32
    %427 = vector.broadcast %cst_82 : f32 to vector<8x128xf32>
    %428 = arith.addf %427, %426 : vector<8x128xf32>
    %429 = arith.divf %427, %428 : vector<8x128xf32>
    %430 = vector.extract_strided_slice %417 {offsets = [0, 256], sizes = [8, 128], strides = [1, 1]} : vector<8x512xf32> to vector<8x128xf32>
    %431 = math.tanh %430 : vector<8x128xf32>
    %432 = vector.extract_strided_slice %417 {offsets = [0, 384], sizes = [8, 128], strides = [1, 1]} : vector<8x512xf32> to vector<8x128xf32>
    %433 = arith.negf %432 : vector<8x128xf32>
    %434 = math.exp %433 : vector<8x128xf32>
    %cst_83 = arith.constant 1.000000e+00 : f32
    %435 = vector.broadcast %cst_83 : f32 to vector<8x128xf32>
    %436 = arith.addf %435, %434 : vector<8x128xf32>
    %437 = arith.divf %435, %436 : vector<8x128xf32>
    %438 = arith.mulf %429, %383 : vector<8x128xf32>
    %439 = arith.mulf %423, %431 : vector<8x128xf32>
    %440 = arith.addf %438, %439 : vector<8x128xf32>
    %441 = math.tanh %440 : vector<8x128xf32>
    %442 = arith.mulf %437, %441 : vector<8x128xf32>
    %cst_84 = arith.constant dense<0.000000e+00> : vector<8x512xf32>
    %443 = tpu.matmul %442, %1, %cst_84 {dimension_numbers = #tpu.dot_dimension_numbers<[1], [0], [0], [1], [0, 0, 1, 1], [], []>} : vector<8x128xf32>, vector<128x512xf32>, vector<8x512xf32> -> vector<8x512xf32>
    %cst_85 = arith.constant dense<0.000000e+00> : vector<8x512xf32>
    %444 = tpu.matmul %414, %2, %cst_85 {dimension_numbers = #tpu.dot_dimension_numbers<[1], [0], [0], [1], [0, 0, 1, 1], [], []>} : vector<8x128xf32>, vector<128x512xf32>, vector<8x512xf32> -> vector<8x512xf32>
    %445 = arith.addf %443, %444 : vector<8x512xf32>
    %446 = arith.addf %445, %11 : vector<8x512xf32>
    %447 = vector.extract_strided_slice %446 {offsets = [0, 0], sizes = [8, 128], strides = [1, 1]} : vector<8x512xf32> to vector<8x128xf32>
    %448 = arith.negf %447 : vector<8x128xf32>
    %449 = math.exp %448 : vector<8x128xf32>
    %cst_86 = arith.constant 1.000000e+00 : f32
    %450 = vector.broadcast %cst_86 : f32 to vector<8x128xf32>
    %451 = arith.addf %450, %449 : vector<8x128xf32>
    %452 = arith.divf %450, %451 : vector<8x128xf32>
    %453 = vector.extract_strided_slice %446 {offsets = [0, 128], sizes = [8, 128], strides = [1, 1]} : vector<8x512xf32> to vector<8x128xf32>
    %454 = arith.negf %453 : vector<8x128xf32>
    %455 = math.exp %454 : vector<8x128xf32>
    %cst_87 = arith.constant 1.000000e+00 : f32
    %456 = vector.broadcast %cst_87 : f32 to vector<8x128xf32>
    %457 = arith.addf %456, %455 : vector<8x128xf32>
    %458 = arith.divf %456, %457 : vector<8x128xf32>
    %459 = vector.extract_strided_slice %446 {offsets = [0, 256], sizes = [8, 128], strides = [1, 1]} : vector<8x512xf32> to vector<8x128xf32>
    %460 = math.tanh %459 : vector<8x128xf32>
    %461 = vector.extract_strided_slice %446 {offsets = [0, 384], sizes = [8, 128], strides = [1, 1]} : vector<8x512xf32> to vector<8x128xf32>
    %462 = arith.negf %461 : vector<8x128xf32>
    %463 = math.exp %462 : vector<8x128xf32>
    %cst_88 = arith.constant 1.000000e+00 : f32
    %464 = vector.broadcast %cst_88 : f32 to vector<8x128xf32>
    %465 = arith.addf %464, %463 : vector<8x128xf32>
    %466 = arith.divf %464, %465 : vector<8x128xf32>
    %467 = arith.mulf %458, %412 : vector<8x128xf32>
    %468 = arith.mulf %452, %460 : vector<8x128xf32>
    %469 = arith.addf %467, %468 : vector<8x128xf32>
    %470 = math.tanh %469 : vector<8x128xf32>
    %471 = arith.mulf %466, %470 : vector<8x128xf32>
    %c0_89 = arith.constant 0 : index
    %c0_90 = arith.constant 0 : index
    %472 = vector.load %arg7[%c0_89, %c0_90] : memref<128x128xf32, #tpu.memory_space<vmem>>, vector<128x128xf32>
    %cst_91 = arith.constant dense<0.000000e+00> : vector<8x128xf32>
    %473 = tpu.matmul %471, %472, %cst_91 {dimension_numbers = #tpu.dot_dimension_numbers<[1], [0], [0], [1], [0, 0, 1, 1], [], []>} : vector<8x128xf32>, vector<128x128xf32>, vector<8x128xf32> -> vector<8x128xf32>
    %c0_92 = arith.constant 0 : index
    %c0_93 = arith.constant 0 : index
    %474 = vector.load %arg8[%c0_92, %c0_93] : memref<1x128xf32, #tpu.memory_space<vmem>>, vector<1x128xf32>
    %475 = vector.broadcast %474 : vector<1x128xf32> to vector<8x128xf32>
    %476 = arith.addf %473, %475 : vector<8x128xf32>
    %cst_94 = arith.constant 0.000000e+00 : f32
    %477 = vector.broadcast %cst_94 : f32 to vector<8x128xf32>
    %478 = arith.maximumf %476, %477 : vector<8x128xf32>
    %c0_95 = arith.constant 0 : index
    %c0_96 = arith.constant 0 : index
    %479 = vector.load %arg9[%c0_95, %c0_96] : memref<128x128xf32, #tpu.memory_space<vmem>>, vector<128x128xf32>
    %cst_97 = arith.constant dense<0.000000e+00> : vector<8x128xf32>
    %480 = tpu.matmul %478, %479, %cst_97 {dimension_numbers = #tpu.dot_dimension_numbers<[1], [0], [0], [1], [0, 0, 1, 1], [], []>} : vector<8x128xf32>, vector<128x128xf32>, vector<8x128xf32> -> vector<8x128xf32>
    %c0_98 = arith.constant 0 : index
    %c0_99 = arith.constant 0 : index
    %481 = vector.load %arg10[%c0_98, %c0_99] : memref<1x128xf32, #tpu.memory_space<vmem>>, vector<1x128xf32>
    %482 = vector.broadcast %481 : vector<1x128xf32> to vector<8x128xf32>
    %483 = arith.addf %480, %482 : vector<8x128xf32>
    %c0_100 = arith.constant 0 : index
    %c0_101 = arith.constant 0 : index
    %484 = vector.load %arg11[%c0_100, %c0_101] : memref<8x128xf32, #tpu.memory_space<vmem>>, vector<8x128xf32>
    tpu.vector_store %arg11[%c0_100, %c0_101], %483 {strides = array<i32>} : memref<8x128xf32, #tpu.memory_space<vmem>>, vector<8x128xf32>,
    return
  }
}

</mosaic_0001>

<llo_original>
// kernel: ball_predictor_forward.2
$region0: #{ball_predictor_forward.2}
  #allocation0 [shape = 'u32[]', space=smem, size = 0x4, offset = 0x4, fixed_abs, tag = 'smem constant byte address 0x4 - core index']
  #allocation1 [shape = 'u32[144,128]{1,0:T(1,128)}', space=vmem, size = 0x12000, scoped, tag = 'internal scratch']
  #allocation2 [shape = 'u32[2048]{0}', space=vmem, size = 0x2000, scoped, tag = 'scoped memory for ball_predictor_forward.2']
  #allocation3 [shape = 'u32[2048]{0}', space=vmem, size = 0x2000, scoped, tag = 'scoped memory for ball_predictor_forward.2']
  #allocation4 [shape = 'u32[2048]{0}', space=vmem, size = 0x2000, scoped, tag = 'scoped memory for ball_predictor_forward.2']
  #allocation5 [shape = 'u32[2048]{0}', space=vmem, size = 0x2000, scoped, tag = 'scoped memory for ball_predictor_forward.2']
  #allocation6 [shape = 'u32[2048]{0}', space=vmem, size = 0x2000, scoped, tag = 'scoped memory for ball_predictor_forward.2']
  %s0 = inlined_call_operand.vmem [shape: f32[8,512], index: 0, kind: input, shape index: {}]
  %s1 = inlined_call_operand.hbm [shape: f32[128,512], index: 1, kind: input, shape index: {}]
  %s2 = inlined_call_operand.vmem [shape: f32[1,512], index: 2, kind: input, shape index: {}]
  %s3 = inlined_call_operand.hbm [shape: f32[128,512], index: 3, kind: input, shape index: {}]
  %s4 = inlined_call_operand.hbm [shape: f32[128,512], index: 4, kind: input, shape index: {}]
  %s5 = inlined_call_operand.vmem [shape: f32[1,512], index: 5, kind: input, shape index: {}]
  %s6 = inlined_call_operand.hbm [shape: f32[128,128], index: 6, kind: input, shape index: {}]
  %s7 = inlined_call_operand.vmem [shape: f32[1,128], index: 7, kind: input, shape index: {}]
  %s8 = inlined_call_operand.hbm [shape: f32[128,128], index: 8, kind: input, shape index: {}]
  %s9 = inlined_call_operand.vmem [shape: f32[1,128], index: 9, kind: input, shape index: {}]
  %s10 = inlined_call_operand.vmem [shape: f32[8,2,8], index: 10, kind: input, shape index: {}]
  %s11 = inlined_call_operand.<no memory space> [shape: f32[], index: 11, kind: input, shape index: {}]
  %s12 = inlined_call_operand.vmem [shape: f32[8,128], index: 12, kind: output, shape index: {}]
  %s13 = sld [smem:[#allocation0]]
  $region74: #{ball_predictor_forward.2} parent=0
    _
  %s15 = ssub.s32 1, %s13
  %s16 = scalar_select 0, %s15, %s13
  %v17 = vstv %s11
  $region1: #{ball_predictor_forward.2} parent=0
    #allocation7 [shape = 'u8[262144]{0}', space=vmem, size = 0x40000, scoped, tag = 'input window, operand 2, single buffered']
    #allocation8 [shape = 's32[1]{0}', space=sflag, size = 0x4, scoped, tag = 'scoped memory for ball_predictor_forward.2']
    #allocation9 [shape = 'u8[262144]{0}', space=vmem, size = 0x40000, scoped, tag = 'input window, operand 4, single buffered']
    #allocation10 [shape = 's32[1]{0}', space=sflag, size = 0x4, scoped, tag = 'scoped memory for ball_predictor_forward.2']
    #allocation11 [shape = 'u8[262144]{0}', space=vmem, size = 0x40000, scoped, tag = 'input window, operand 5, single buffered']
    #allocation12 [shape = 'u8[65536]{0}', space=vmem, size = 0x10000, scoped, tag = 'input window, operand 7, single buffered']
    #allocation13 [shape = 's32[1]{0}', space=sflag, size = 0x4, scoped, tag = 'scoped memory for ball_predictor_forward.2']
    #allocation14 [shape = 'u8[65536]{0}', space=vmem, size = 0x10000, scoped, tag = 'input window, operand 9, single buffered']
    #allocation15 [shape = 'u8[32768]{0}', space=vmem, size = 0x8000, dematerialized = true, scoped, tag = 'FusionAdapter Buffer %pad_bitcast_fusion.1 = f32[64,8]{1,0:T(8,128)} fusion(%param_10.1, %param_11), kind=kLoop, calls=%fused_computation.clone.clone, metadata={op_name="jit(ball_predictor_forward)/reshape" stack_frame_id=9}']
    %18 = vsyncpa [#allocation8], 0
    %19 = vsyncpa [#allocation10], 0
    %20 = vsyncpa [#allocation13], 0
    // Predicated region
    $region2: #{ball_predictor_forward.2} parent=1 // pred_check
      _
    $region3: #{ball_predictor_forward.2} parent=1 // pred_check_branch
      %22 = sbr.rel (0) target = $region5
    $region4: #{ball_predictor_forward.2} parent=1 // pred_region
      _
    $region5: #{ball_predictor_forward.2} parent=1 // pred_fallthru
      _
    // Predicated region
    $region6: #{ball_predictor_forward.2} parent=1 // pred_check
      _
    $region7: #{ball_predictor_forward.2} parent=1 // pred_check_branch
      %24 = sbr.rel (0) target = $region9
    $region8: #{ball_predictor_forward.2} parent=1 // pred_region
      _
    $region9: #{ball_predictor_forward.2} parent=1 // pred_fallthru
      _
    // Predicated region
    $region10: #{ball_predictor_forward.2} parent=1 // pred_check
      _
    $region11: #{ball_predictor_forward.2} parent=1 // pred_check_branch
      %26 = sbr.rel (0) target = $region13
    $region12: #{ball_predictor_forward.2} parent=1 // pred_region
      %s28 = ssub.s32 8192, 8192
      %29 = vsyncadd [#allocation8], %s28
      %s30 = sshll.u32 [#allocation7], 4
      %s31 = int_to_ptr.vmem [resolvable:$true] %s30
      %36 = dma.hbm_to_vmem [thread:$0]  %s1, 8192, %s31, [#allocation8], 512, 512, 32
    $region13: #{ball_predictor_forward.2} parent=1 // pred_fallthru
      _
    // Predicated region
    $region14: #{ball_predictor_forward.2} parent=1 // pred_check
      _
    $region15: #{ball_predictor_forward.2} parent=1 // pred_check_branch
      %38 = sbr.rel (0) target = $region17
    $region16: #{ball_predictor_forward.2} parent=1 // pred_region
      _
    $region17: #{ball_predictor_forward.2} parent=1 // pred_fallthru
      _
    // Predicated region
    $region18: #{ball_predictor_forward.2} parent=1 // pred_check
      _
    $region19: #{ball_predictor_forward.2} parent=1 // pred_check_branch
      %40 = sbr.rel (0) target = $region21
    $region20: #{ball_predictor_forward.2} parent=1 // pred_region
      %s42 = ssub.s32 8192, 8192
      %43 = vsyncadd [#allocation10], %s42
      %s44 = sshll.u32 [#allocation9], 4
      %s45 = int_to_ptr.vmem [resolvable:$true] %s44
      %50 = dma.hbm_to_vmem [thread:$0]  %s3, 8192, %s45, [#allocation10], 512, 512, 32
    $region21: #{ball_predictor_forward.2} parent=1 // pred_fallthru
      _
    // Predicated region
    $region22: #{ball_predictor_forward.2} parent=1 // pred_check
      _
    $region23: #{ball_predictor_forward.2} parent=1 // pred_check_branch
      %52 = sbr.rel (0) target = $region25
    $region24: #{ball_predictor_forward.2} parent=1 // pred_region
      %s54 = ssub.s32 8192, 8192
      %55 = vsyncadd [#allocation10], %s54
      %s56 = sshll.u32 [#allocation11], 4
      %s57 = int_to_ptr.vmem [resolvable:$true] %s56
      %62 = dma.hbm_to_vmem [thread:$0]  %s4, 8192, %s57, [#allocation10], 512, 512, 32
    $region25: #{ball_predictor_forward.2} parent=1 // pred_fallthru
      _
    // Predicated region
    $region26: #{ball_predictor_forward.2} parent=1 // pred_check
      _
    $region27: #{ball_predictor_forward.2} parent=1 // pred_check_branch
      %64 = sbr.rel (0) target = $region29
    $region28: #{ball_predictor_forward.2} parent=1 // pred_region
      _
    $region29: #{ball_predictor_forward.2} parent=1 // pred_fallthru
      _
    // Predicated region
    $region30: #{ball_predictor_forward.2} parent=1 // pred_check
      _
    $region31: #{ball_predictor_forward.2} parent=1 // pred_check_branch
      %66 = sbr.rel (0) target = $region33
    $region32: #{ball_predictor_forward.2} parent=1 // pred_region
      %s68 = ssub.s32 2048, 2048
      %69 = vsyncadd [#allocation13], %s68
      %s70 = sshll.u32 [#allocation12], 4
      %s71 = int_to_ptr.vmem [resolvable:$true] %s70
      %76 = dma.hbm_to_vmem [thread:$0]  %s6, 2048, %s71, [#allocation13], 128, 128, 8
    $region33: #{ball_predictor_forward.2} parent=1 // pred_fallthru
      _
    // Predicated region
    $region34: #{ball_predictor_forward.2} parent=1 // pred_check
      _
    $region35: #{ball_predictor_forward.2} parent=1 // pred_check_branch
      %78 = sbr.rel (0) target = $region37
    $region36: #{ball_predictor_forward.2} parent=1 // pred_region
      _
    $region37: #{ball_predictor_forward.2} parent=1 // pred_fallthru
      _
    // Predicated region
    $region38: #{ball_predictor_forward.2} parent=1 // pred_check
      _
    $region39: #{ball_predictor_forward.2} parent=1 // pred_check_branch
      %80 = sbr.rel (0) target = $region41
    $region40: #{ball_predictor_forward.2} parent=1 // pred_region
      %s82 = ssub.s32 2048, 2048
      %83 = vsyncadd [#allocation13], %s82
      %s84 = sshll.u32 [#allocation14], 4
      %s85 = int_to_ptr.vmem [resolvable:$true] %s84
      %90 = dma.hbm_to_vmem [thread:$0]  %s8, 2048, %s85, [#allocation13], 128, 128, 8
    $region41: #{ball_predictor_forward.2} parent=1 // pred_fallthru
      _
    // Predicated region
    $region42: #{ball_predictor_forward.2} parent=1 // pred_check
      _
    $region43: #{ball_predictor_forward.2} parent=1 // pred_check_branch
      %92 = sbr.rel (0) target = $region45
    $region44: #{ball_predictor_forward.2} parent=1 // pred_region
      _
    $region45: #{ball_predictor_forward.2} parent=1 // pred_fallthru
      _
    // Predicated region
    $region46: #{ball_predictor_forward.2} parent=1 // pred_check
      _
    $region47: #{ball_predictor_forward.2} parent=1 // pred_check_branch
      %94 = sbr.rel (0) target = $region49
    $region48: #{ball_predictor_forward.2} parent=1 // pred_region
      %95 = dma.done [#allocation8], 8192
    $region49: #{ball_predictor_forward.2} parent=1 // pred_fallthru
      _
    // Predicated region
    $region50: #{ball_predictor_forward.2} parent=1 // pred_check
      _
    $region51: #{ball_predictor_forward.2} parent=1 // pred_check_branch
      %97 = sbr.rel (0) target = $region53
    $region52: #{ball_predictor_forward.2} parent=1 // pred_region
      %98 = dma.done [#allocation10], 8192
    $region53: #{ball_predictor_forward.2} parent=1 // pred_fallthru
      _
    // Predicated region
    $region54: #{ball_predictor_forward.2} parent=1 // pred_check
      _
    $region55: #{ball_predictor_forward.2} parent=1 // pred_check_branch
      %100 = sbr.rel (0) target = $region57
    $region56: #{ball_predictor_forward.2} parent=1 // pred_region
      %101 = dma.done [#allocation10], 8192
    $region57: #{ball_predictor_forward.2} parent=1 // pred_fallthru
      _
    // Predicated region
    $region58: #{ball_predictor_forward.2} parent=1 // pred_check
      _
    $region59: #{ball_predictor_forward.2} parent=1 // pred_check_branch
      %103 = sbr.rel (0) target = $region61
    $region60: #{ball_predictor_forward.2} parent=1 // pred_region
      %104 = dma.done [#allocation13], 2048
    $region61: #{ball_predictor_forward.2} parent=1 // pred_fallthru
      _
    // Predicated region
    $region62: #{ball_predictor_forward.2} parent=1 // pred_check
      _
    $region63: #{ball_predictor_forward.2} parent=1 // pred_check_branch
      %106 = sbr.rel (0) target = $region65
    $region64: #{ball_predictor_forward.2} parent=1 // pred_region
      %107 = dma.done [#allocation13], 2048
    $region65: #{ball_predictor_forward.2} parent=1 // pred_fallthru
      _
    %v108 = vld [vmem:[%s10] sm:$0x3]
    %v109 = vlaneseq
    %v110 = vshrl.u32 %v109, 7
    %vm112 = vcmp.lt.s32.totalorder %v110, 2
    %v113 = vsel %vm112, %v108, %v17
    %v114 = vlaneseq
    %v115 = vand.u32 %v114, 127
    %vm117 = vcmp.lt.s32.totalorder %v115, 8
    %v118 = vsel %vm117, %v113, %v17
    %120 = vst [vmem:[#allocation15] sm:$0xff] %v118
    %s121 = scalar_lea.vmem %s10, 2
    %v122 = vld [vmem:[%s121] sm:$0x3]
    %v123 = vlaneseq
    %v124 = vshrl.u32 %v123, 7
    %vm126 = vcmp.lt.s32.totalorder %v124, 2
    %v127 = vsel %vm126, %v122, %v17
    %v128 = vlaneseq
    %v129 = vand.u32 %v128, 127
    %vm131 = vcmp.lt.s32.totalorder %v129, 8
    %v132 = vsel %vm131, %v127, %v17
    %s133 = scalar_lea.vmem [#allocation15], 8
    %135 = vst [vmem:[%s133] sm:$0xff] %v132
    %s136 = scalar_lea.vmem %s10, 4
    %v137 = vld [vmem:[%s136] sm:$0x3]
    %v138 = vlaneseq
    %v139 = vshrl.u32 %v138, 7
    %vm141 = vcmp.lt.s32.totalorder %v139, 2
    %v142 = vsel %vm141, %v137, %v17
    %v143 = vlaneseq
    %v144 = vand.u32 %v143, 127
    %vm146 = vcmp.lt.s32.totalorder %v144, 8
    %v147 = vsel %vm146, %v142, %v17
    %s148 = scalar_lea.vmem [#allocation15], 16
    %150 = vst [vmem:[%s148] sm:$0xff] %v147
    %s151 = scalar_lea.vmem %s10, 6
    %v152 = vld [vmem:[%s151] sm:$0x3]
    %v153 = vlaneseq
    %v154 = vshrl.u32 %v153, 7
    %vm156 = vcmp.lt.s32.totalorder %v154, 2
    %v157 = vsel %vm156, %v152, %v17
    %v158 = vlaneseq
    %v159 = vand.u32 %v158, 127
    %vm161 = vcmp.lt.s32.totalorder %v159, 8
    %v162 = vsel %vm161, %v157, %v17
    %s163 = scalar_lea.vmem [#allocation15], 24
    %165 = vst [vmem:[%s163] sm:$0xff] %v162
    %s166 = scalar_lea.vmem %s10, 8
    %v167 = vld [vmem:[%s166] sm:$0x3]
    %v168 = vlaneseq
    %v169 = vshrl.u32 %v168, 7
    %vm171 = vcmp.lt.s32.totalorder %v169, 2
    %v172 = vsel %vm171, %v167, %v17
    %v173 = vlaneseq
    %v174 = vand.u32 %v173, 127
    %vm176 = vcmp.lt.s32.totalorder %v174, 8
    %v177 = vsel %vm176, %v172, %v17
    %s178 = scalar_lea.vmem [#allocation15], 32
    %180 = vst [vmem:[%s178] sm:$0xff] %v177
    %s181 = scalar_lea.vmem %s10, 10
    %v182 = vld [vmem:[%s181] sm:$0x3]
    %v183 = vlaneseq
    %v184 = vshrl.u32 %v183, 7
    %vm186 = vcmp.lt.s32.totalorder %v184, 2
    %v187 = vsel %vm186, %v182, %v17
    %v188 = vlaneseq
    %v189 = vand.u32 %v188, 127
    %vm191 = vcmp.lt.s32.totalorder %v189, 8
    %v192 = vsel %vm191, %v187, %v17
    %s193 = scalar_lea.vmem [#allocation15], 40
    %195 = vst [vmem:[%s193] sm:$0xff] %v192
    %s196 = scalar_lea.vmem %s10, 12
    %v197 = vld [vmem:[%s196] sm:$0x3]
    %v198 = vlaneseq
    %v199 = vshrl.u32 %v198, 7
    %vm201 = vcmp.lt.s32.totalorder %v199, 2
    %v202 = vsel %vm201, %v197, %v17
    %v203 = vlaneseq
    %v204 = vand.u32 %v203, 127
    %vm206 = vcmp.lt.s32.totalorder %v204, 8
    %v207 = vsel %vm206, %v202, %v17
    %s208 = scalar_lea.vmem [#allocation15], 48
    %210 = vst [vmem:[%s208] sm:$0xff] %v207
    %s211 = scalar_lea.vmem %s10, 14
    %v212 = vld [vmem:[%s211] sm:$0x3]
    %v213 = vlaneseq
    %v214 = vshrl.u32 %v213, 7
    %vm216 = vcmp.lt.s32.totalorder %v214, 2
    %v217 = vsel %vm216, %v212, %v17
    %v218 = vlaneseq
    %v219 = vand.u32 %v218, 127
    %vm221 = vcmp.lt.s32.totalorder %v219, 8
    %v222 = vsel %vm221, %v217, %v17
    %s223 = scalar_lea.vmem [#allocation15], 56
    %225 = vst [vmem:[%s223] sm:$0xff] %v222
    %v226 = vld [vmem:[#allocation7] sm:$0xff]
    %v227 = vld [vmem:[#allocation7 + $0x8] sm:$0xff]
    %v228 = vld [vmem:[#allocation7 + $0x10] sm:$0xff]
    %v229 = vld [vmem:[#allocation7 + $0x18] sm:$0xff]
    %v230 = vld [vmem:[#allocation7 + $0x20] sm:$0xff]
    %v231 = vld [vmem:[#allocation7 + $0x28] sm:$0xff]
    %v232 = vld [vmem:[#allocation7 + $0x30] sm:$0xff]
    %v233 = vld [vmem:[#allocation7 + $0x38] sm:$0xff]
    %v234 = vld [vmem:[#allocation7 + $0x40] sm:$0xff]
    %v235 = vld [vmem:[#allocation7 + $0x48] sm:$0xff]
    %v236 = vld [vmem:[#allocation7 + $0x50] sm:$0xff]
    %v237 = vld [vmem:[#allocation7 + $0x58] sm:$0xff]
    %v238 = vld [vmem:[#allocation7 + $0x60] sm:$0xff]
    %v239 = vld [vmem:[#allocation7 + $0x68] sm:$0xff]
    %v240 = vld [vmem:[#allocation7 + $0x70] sm:$0xff]
    %v241 = vld [vmem:[#allocation7 + $0x78] sm:$0xff]
    %v242 = vld [vmem:[#allocation7 + $0x80] sm:$0xff]
    %v243 = vld [vmem:[#allocation7 + $0x88] sm:$0xff]
    %v244 = vld [vmem:[#allocation7 + $0x90] sm:$0xff]
    %v245 = vld [vmem:[#allocation7 + $0x98] sm:$0xff]
    %v246 = vld [vmem:[#allocation7 + $0xa0] sm:$0xff]
    %v247 = vld [vmem:[#allocation7 + $0xa8] sm:$0xff]
    %v248 = vld [vmem:[#allocation7 + $0xb0] sm:$0xff]
    %v249 = vld [vmem:[#allocation7 + $0xb8] sm:$0xff]
    %v250 = vld [vmem:[#allocation7 + $0xc0] sm:$0xff]
    %v251 = vld [vmem:[#allocation7 + $0xc8] sm:$0xff]
    %v252 = vld [vmem:[#allocation7 + $0xd0] sm:$0xff]
    %v253 = vld [vmem:[#allocation7 + $0xd8] sm:$0xff]
    %v254 = vld [vmem:[#allocation7 + $0xe0] sm:$0xff]
    %v255 = vld [vmem:[#allocation7 + $0xe8] sm:$0xff]
    %v256 = vld [vmem:[#allocation7 + $0xf0] sm:$0xff]
    %v257 = vld [vmem:[#allocation7 + $0xf8] sm:$0xff]
    %v258 = vld [vmem:[#allocation7 + $0x100] sm:$0xff]
    %v259 = vld [vmem:[#allocation7 + $0x108] sm:$0xff]
    %v260 = vld [vmem:[#allocation7 + $0x110] sm:$0xff]
    %v261 = vld [vmem:[#allocation7 + $0x118] sm:$0xff]
    %v262 = vld [vmem:[#allocation7 + $0x120] sm:$0xff]
    %v263 = vld [vmem:[#allocation7 + $0x128] sm:$0xff]
    %v264 = vld [vmem:[#allocation7 + $0x130] sm:$0xff]
    %v265 = vld [vmem:[#allocation7 + $0x138] sm:$0xff]
    %v266 = vld [vmem:[#allocation7 + $0x140] sm:$0xff]
    %v267 = vld [vmem:[#allocation7 + $0x148] sm:$0xff]
    %v268 = vld [vmem:[#allocation7 + $0x150] sm:$0xff]
    %v269 = vld [vmem:[#allocation7 + $0x158] sm:$0xff]
    %v270 = vld [vmem:[#allocation7 + $0x160] sm:$0xff]
    %v271 = vld [vmem:[#allocation7 + $0x168] sm:$0xff]
    %v272 = vld [vmem:[#allocation7 + $0x170] sm:$0xff]
    %v273 = vld [vmem:[#allocation7 + $0x178] sm:$0xff]
    %v274 = vld [vmem:[#allocation7 + $0x180] sm:$0xff]
    %v275 = vld [vmem:[#allocation7 + $0x188] sm:$0xff]
    %v276 = vld [vmem:[#allocation7 + $0x190] sm:$0xff]
    %v277 = vld [vmem:[#allocation7 + $0x198] sm:$0xff]
    %v278 = vld [vmem:[#allocation7 + $0x1a0] sm:$0xff]
    %v279 = vld [vmem:[#allocation7 + $0x1a8] sm:$0xff]
    %v280 = vld [vmem:[#allocation7 + $0x1b0] sm:$0xff]
    %v281 = vld [vmem:[#allocation7 + $0x1b8] sm:$0xff]
    %v282 = vld [vmem:[#allocation7 + $0x1c0] sm:$0xff]
    %v283 = vld [vmem:[#allocation7 + $0x1c8] sm:$0xff]
    %v284 = vld [vmem:[#allocation7 + $0x1d0] sm:$0xff]
    %v285 = vld [vmem:[#allocation7 + $0x1d8] sm:$0xff]
    %v286 = vld [vmem:[#allocation7 + $0x1e0] sm:$0xff]
    %v287 = vld [vmem:[#allocation7 + $0x1e8] sm:$0xff]
    %v288 = vld [vmem:[#allocation7 + $0x1f0] sm:$0xff]
    %v289 = vld [vmem:[#allocation7 + $0x1f8] sm:$0xff]
    %v290 = vld [vmem:[#allocation9] sm:$0xff]
    %v291 = vld [vmem:[#allocation9 + $0x8] sm:$0xff]
    %v292 = vld [vmem:[#allocation9 + $0x10] sm:$0xff]
    %v293 = vld [vmem:[#allocation9 + $0x18] sm:$0xff]
    %v294 = vld [vmem:[#allocation9 + $0x20] sm:$0xff]
    %v295 = vld [vmem:[#allocation9 + $0x28] sm:$0xff]
    %v296 = vld [vmem:[#allocation9 + $0x30] sm:$0xff]
    %v297 = vld [vmem:[#allocation9 + $0x38] sm:$0xff]
    %v298 = vld [vmem:[#allocation9 + $0x40] sm:$0xff]
    %v299 = vld [vmem:[#allocation9 + $0x48] sm:$0xff]
    %v300 = vld [vmem:[#allocation9 + $0x50] sm:$0xff]
    %v301 = vld [vmem:[#allocation9 + $0x58] sm:$0xff]
    %v302 = vld [vmem:[#allocation9 + $0x60] sm:$0xff]
    %v303 = vld [vmem:[#allocation9 + $0x68] sm:$0xff]
    %v304 = vld [vmem:[#allocation9 + $0x70] sm:$0xff]
    %v305 = vld [vmem:[#allocation9 + $0x78] sm:$0xff]
    %v306 = vld [vmem:[#allocation9 + $0x80] sm:$0xff]
    %v307 = vld [vmem:[#allocation9 + $0x88] sm:$0xff]
    %v308 = vld [vmem:[#allocation9 + $0x90] sm:$0xff]
    %v309 = vld [vmem:[#allocation9 + $0x98] sm:$0xff]
    %v310 = vld [vmem:[#allocation9 + $0xa0] sm:$0xff]
    %v311 = vld [vmem:[#allocation9 + $0xa8] sm:$0xff]
    %v312 = vld [vmem:[#allocation9 + $0xb0] sm:$0xff]
    %v313 = vld [vmem:[#allocation9 + $0xb8] sm:$0xff]
    %v314 = vld [vmem:[#allocation9 + $0xc0] sm:$0xff]
    %v315 = vld [vmem:[#allocation9 + $0xc8] sm:$0xff]
    %v316 = vld [vmem:[#allocation9 + $0xd0] sm:$0xff]
    %v317 = vld [vmem:[#allocation9 + $0xd8] sm:$0xff]
    %v318 = vld [vmem:[#allocation9 + $0xe0] sm:$0xff]
    %v319 = vld [vmem:[#allocation9 + $0xe8] sm:$0xff]
    %v320 = vld [vmem:[#allocation9 + $0xf0] sm:$0xff]
    %v321 = vld [vmem:[#allocation9 + $0xf8] sm:$0xff]
    %v322 = vld [vmem:[#allocation9 + $0x100] sm:$0xff]
    %v323 = vld [vmem:[#allocation9 + $0x108] sm:$0xff]
    %v324 = vld [vmem:[#allocation9 + $0x110] sm:$0xff]
    %v325 = vld [vmem:[#allocation9 + $0x118] sm:$0xff]
    %v326 = vld [vmem:[#allocation9 + $0x120] sm:$0xff]
    %v327 = vld [vmem:[#allocation9 + $0x128] sm:$0xff]
    %v328 = vld [vmem:[#allocation9 + $0x130] sm:$0xff]
    %v329 = vld [vmem:[#allocation9 + $0x138] sm:$0xff]
    %v330 = vld [vmem:[#allocation9 + $0x140] sm:$0xff]
    %v331 = vld [vmem:[#allocation9 + $0x148] sm:$0xff]
    %v332 = vld [vmem:[#allocation9 + $0x150] sm:$0xff]
    %v333 = vld [vmem:[#allocation9 + $0x158] sm:$0xff]
    %v334 = vld [vmem:[#allocation9 + $0x160] sm:$0xff]
    %v335 = vld [vmem:[#allocation9 + $0x168] sm:$0xff]
    %v336 = vld [vmem:[#allocation9 + $0x170] sm:$0xff]
    %v337 = vld [vmem:[#allocation9 + $0x178] sm:$0xff]
    %v338 = vld [vmem:[#allocation9 + $0x180] sm:$0xff]
    %v339 = vld [vmem:[#allocation9 + $0x188] sm:$0xff]
    %v340 = vld [vmem:[#allocation9 + $0x190] sm:$0xff]
    %v341 = vld [vmem:[#allocation9 + $0x198] sm:$0xff]
    %v342 = vld [vmem:[#allocation9 + $0x1a0] sm:$0xff]
    %v343 = vld [vmem:[#allocation9 + $0x1a8] sm:$0xff]
    %v344 = vld [vmem:[#allocation9 + $0x1b0] sm:$0xff]
    %v345 = vld [vmem:[#allocation9 + $0x1b8] sm:$0xff]
    %v346 = vld [vmem:[#allocation9 + $0x1c0] sm:$0xff]
    %v347 = vld [vmem:[#allocation9 + $0x1c8] sm:$0xff]
    %v348 = vld [vmem:[#allocation9 + $0x1d0] sm:$0xff]
    %v349 = vld [vmem:[#allocation9 + $0x1d8] sm:$0xff]
    %v350 = vld [vmem:[#allocation9 + $0x1e0] sm:$0xff]
    %v351 = vld [vmem:[#allocation9 + $0x1e8] sm:$0xff]
    %v352 = vld [vmem:[#allocation9 + $0x1f0] sm:$0xff]
    %v353 = vld [vmem:[#allocation9 + $0x1f8] sm:$0xff]
    %v354 = vld [vmem:[#allocation11] sm:$0xff]
    %v355 = vld [vmem:[#allocation11 + $0x8] sm:$0xff]
    %v356 = vld [vmem:[#allocation11 + $0x10] sm:$0xff]
    %v357 = vld [vmem:[#allocation11 + $0x18] sm:$0xff]
    %v358 = vld [vmem:[#allocation11 + $0x20] sm:$0xff]
    %v359 = vld [vmem:[#allocation11 + $0x28] sm:$0xff]
    %v360 = vld [vmem:[#allocation11 + $0x30] sm:$0xff]
    %v361 = vld [vmem:[#allocation11 + $0x38] sm:$0xff]
    %v362 = vld [vmem:[#allocation11 + $0x40] sm:$0xff]
    %v363 = vld [vmem:[#allocation11 + $0x48] sm:$0xff]
    %v364 = vld [vmem:[#allocation11 + $0x50] sm:$0xff]
    %v365 = vld [vmem:[#allocation11 + $0x58] sm:$0xff]
    %v366 = vld [vmem:[#allocation11 + $0x60] sm:$0xff]
    %v367 = vld [vmem:[#allocation11 + $0x68] sm:$0xff]
    %v368 = vld [vmem:[#allocation11 + $0x70] sm:$0xff]
    %v369 = vld [vmem:[#allocation11 + $0x78] sm:$0xff]
    %v370 = vld [vmem:[#allocation11 + $0x80] sm:$0xff]
    %v371 = vld [vmem:[#allocation11 + $0x88] sm:$0xff]
    %v372 = vld [vmem:[#allocation11 + $0x90] sm:$0xff]
    %v373 = vld [vmem:[#allocation11 + $0x98] sm:$0xff]
    %v374 = vld [vmem:[#allocation11 + $0xa0] sm:$0xff]
    %v375 = vld [vmem:[#allocation11 + $0xa8] sm:$0xff]
    %v376 = vld [vmem:[#allocation11 + $0xb0] sm:$0xff]
    %v377 = vld [vmem:[#allocation11 + $0xb8] sm:$0xff]
    %v378 = vld [vmem:[#allocation11 + $0xc0] sm:$0xff]
    %v379 = vld [vmem:[#allocation11 + $0xc8] sm:$0xff]
    %v380 = vld [vmem:[#allocation11 + $0xd0] sm:$0xff]
    %v381 = vld [vmem:[#allocation11 + $0xd8] sm:$0xff]
    %v382 = vld [vmem:[#allocation11 + $0xe0] sm:$0xff]
    %v383 = vld [vmem:[#allocation11 + $0xe8] sm:$0xff]
    %v384 = vld [vmem:[#allocation11 + $0xf0] sm:$0xff]
    %v385 = vld [vmem:[#allocation11 + $0xf8] sm:$0xff]
    %v386 = vld [vmem:[#allocation11 + $0x100] sm:$0xff]
    %v387 = vld [vmem:[#allocation11 + $0x108] sm:$0xff]
    %v388 = vld [vmem:[#allocation11 + $0x110] sm:$0xff]
    %v389 = vld [vmem:[#allocation11 + $0x118] sm:$0xff]
    %v390 = vld [vmem:[#allocation11 + $0x120] sm:$0xff]
    %v391 = vld [vmem:[#allocation11 + $0x128] sm:$0xff]
    %v392 = vld [vmem:[#allocation11 + $0x130] sm:$0xff]
    %v393 = vld [vmem:[#allocation11 + $0x138] sm:$0xff]
    %v394 = vld [vmem:[#allocation11 + $0x140] sm:$0xff]
    %v395 = vld [vmem:[#allocation11 + $0x148] sm:$0xff]
    %v396 = vld [vmem:[#allocation11 + $0x150] sm:$0xff]
    %v397 = vld [vmem:[#allocation11 + $0x158] sm:$0xff]
    %v398 = vld [vmem:[#allocation11 + $0x160] sm:$0xff]
    %v399 = vld [vmem:[#allocation11 + $0x168] sm:$0xff]
    %v400 = vld [vmem:[#allocation11 + $0x170] sm:$0xff]
    %v401 = vld [vmem:[#allocation11 + $0x178] sm:$0xff]
    %v402 = vld [vmem:[#allocation11 + $0x180] sm:$0xff]
    %v403 = vld [vmem:[#allocation11 + $0x188] sm:$0xff]
    %v404 = vld [vmem:[#allocation11 + $0x190] sm:$0xff]
    %v405 = vld [vmem:[#allocation11 + $0x198] sm:$0xff]
    %v406 = vld [vmem:[#allocation11 + $0x1a0] sm:$0xff]
    %v407 = vld [vmem:[#allocation11 + $0x1a8] sm:$0xff]
    %v408 = vld [vmem:[#allocation11 + $0x1b0] sm:$0xff]
    %v409 = vld [vmem:[#allocation11 + $0x1b8] sm:$0xff]
    %v410 = vld [vmem:[#allocation11 + $0x1c0] sm:$0xff]
    %v411 = vld [vmem:[#allocation11 + $0x1c8] sm:$0xff]
    %v412 = vld [vmem:[#allocation11 + $0x1d0] sm:$0xff]
    %v413 = vld [vmem:[#allocation11 + $0x1d8] sm:$0xff]
    %v414 = vld [vmem:[#allocation11 + $0x1e0] sm:$0xff]
    %v415 = vld [vmem:[#allocation11 + $0x1e8] sm:$0xff]
    %v416 = vld [vmem:[#allocation11 + $0x1f0] sm:$0xff]
    %v417 = vld [vmem:[#allocation11 + $0x1f8] sm:$0xff]
    %v418 = vld [vmem:[#allocation15] sm:$0xff]
    %v419 = vld [vmem:[#allocation15 + $0x8] sm:$0xff]
    %v420 = vld [vmem:[#allocation15 + $0x10] sm:$0xff]
    %v421 = vld [vmem:[#allocation15 + $0x18] sm:$0xff]
    %v422 = vld [vmem:[#allocation15 + $0x20] sm:$0xff]
    %v423 = vld [vmem:[#allocation15 + $0x28] sm:$0xff]
    %v424 = vld [vmem:[#allocation15 + $0x30] sm:$0xff]
    %v425 = vld [vmem:[#allocation15 + $0x38] sm:$0xff]
    %v426 = vld [vmem:[%s0] sm:$0xff]
    %v427 = vld [vmem:[%s0 + $0x8] sm:$0xff]
    %v428 = vld [vmem:[%s0 + $0x10] sm:$0xff]
    %v429 = vld [vmem:[%s0 + $0x18] sm:$0xff]
    %v430 = vld [vmem:[%s2] sm:$0xf]
    %v432 = vlaneseq
    %v433 = vshrl.u32 %v432, 7
    %v434 = vsub.s32 0, %v433
    %v435 = vrot.slane %v430, %v434
    %v436 = vlaneseq
    %v437 = vshrl.u32 %v436, 7
    %v438 = vsub.s32 1, %v437
    %v439 = vrot.slane %v430, %v438
    %v440 = vlaneseq
    %v441 = vshrl.u32 %v440, 7
    %v442 = vsub.s32 2, %v441
    %v443 = vrot.slane %v430, %v442
    %v444 = vlaneseq
    %v445 = vshrl.u32 %v444, 7
    %v446 = vsub.s32 3, %v445
    %v447 = vrot.slane %v430, %v446
    %vm452 = vcmask 64512
    %v454 = vsel %vm452, %v418, 0
    %v457 = vsel %vm452, %v419, 0
    %v460 = vsel %vm452, %v420, 0
    %v463 = vsel %vm452, %v421, 0
    %v466 = vsel %vm452, %v422, 0
    %v469 = vsel %vm452, %v423, 0
    %v472 = vsel %vm452, %v424, 0
    %v475 = vsel %vm452, %v425, 0
    %477 = vmatprep.subr.mxu0 %v427
    %478 = vmatpush1.msra.mxu0 %v426
    %479 = vmatprep.subr.mxu0 0.0
    %480 = vmatpush1.msra.mxu0 0.0
    %481 = vmatprep.subr.mxu0 0.0
    %482 = vmatpush1.msra.mxu0 0.0
    %483 = vmatprep.subr.mxu0 0.0
    %484 = vmatpush1.msra.mxu0 0.0
    %485 = vmatprep.subr.mxu0 0.0
    %486 = vmatpush1.msra.mxu0 0.0
    %487 = vmatprep.subr.mxu0 0.0
    %488 = vmatpush1.msra.mxu0 0.0
    %489 = vmatprep.subr.mxu0 0.0
    %490 = vmatpush1.msra.mxu0 0.0
    %491 = vmatprep.subr.mxu0 0.0
    %492 = vmatpush1.msra.mxu0 0.0
    %493 = vmatprep.subr.mxu0 0.0
    %494 = vmatpush1.msra.mxu0 0.0
    %495 = vmatprep.subr.mxu0 0.0
    %496 = vmatpush1.msra.mxu0 0.0
    %497 = vmatprep.subr.mxu0 0.0
    %498 = vmatpush1.msra.mxu0 0.0
    %499 = vmatprep.subr.mxu0 0.0
    %500 = vmatpush1.msra.mxu0 0.0
    %501 = vmatprep.subr.mxu0 0.0
    %502 = vmatpush1.msra.mxu0 0.0
    %503 = vmatprep.subr.mxu0 0.0
    %504 = vmatpush1.msra.mxu0 0.0
    %505 = vmatprep.subr.mxu0 0.0
    %506 = vmatpush1.msra.mxu0 0.0
    %507 = vmatprep.subr.mxu0 0.0
    %508 = vmatpush1.msra.mxu0 0.0
    %509 = vmatprep.subr.mxu0 0.0
    %510 = vmatpush1.msra.mxu0 0.0
    %511 = vmatprep.subr.mxu0 0.0
    %512 = vmatpush1.msra.mxu0 0.0
    %513 = vmatprep.subr.mxu0 0.0
    %514 = vmatpush1.msra.mxu0 0.0
    %515 = vmatprep.subr.mxu0 0.0
    %516 = vmatpush1.msra.mxu0 0.0
    %517 = vmatprep.subr.mxu0 0.0
    %518 = vmatpush1.msra.mxu0 0.0
    %519 = vmatprep.subr.mxu0 0.0
    %520 = vmatpush1.msra.mxu0 0.0
    %521 = vmatprep.subr.mxu0 0.0
    %522 = vmatpush1.msra.mxu0 0.0
    %523 = vmatprep.subr.mxu0 0.0
    %524 = vmatpush1.msra.mxu0 0.0
    %525 = vmatprep.subr.mxu0 0.0
    %526 = vmatpush1.msra.mxu0 0.0
    %527 = vmatprep.subr.mxu0 0.0
    %528 = vmatpush1.msra.mxu0 0.0
    %529 = vmatprep.subr.mxu0 0.0
    %530 = vmatpush1.msra.mxu0 0.0
    %531 = vmatprep.subr.mxu0 0.0
    %532 = vmatpush1.msra.mxu0 0.0
    %533 = vmatprep.subr.mxu0 0.0
    %534 = vmatpush1.msra.mxu0 0.0
    %535 = vmatprep.subr.mxu0 0.0
    %536 = vmatpush1.msra.mxu0 0.0
    %537 = vmatprep.subr.mxu0 0.0
    %538 = vmatpush1.msra.mxu0 0.0
    %539 = vmatprep.subr.mxu0 0.0
    %540 = vmatpush1.msra.mxu0 0.0
    %541 = vmatprep.mubr.f32.mxu0 0.0
    %542 = vmatmul.mubr.f32.gmra.mrb[0].mxu0 %v454
    %v543 = vpop.f32.mrb[0].mxu0
    %v544 = vadd.f32 %v435, %v543
    %v545 = vpop.f32.mrb[0].mxu0
    %v546 = vadd.f32 %v439, %v545
    %547 = vmatprep.mubr.f32.mxu0 0.0
    %548 = vmatmul.mubr.f32.gmra.mrb[0].mxu0 %v457
    %v549 = vpop.f32.mrb[0].mxu0
    %v550 = vadd.f32 %v435, %v549
    %v551 = vpop.f32.mrb[0].mxu0
    %v552 = vadd.f32 %v439, %v551
    %553 = vmatprep.mubr.f32.mxu0 0.0
    %554 = vmatmul.mubr.f32.gmra.mrb[0].mxu0 %v460
    %v555 = vpop.f32.mrb[0].mxu0
    %v556 = vadd.f32 %v435, %v555
    %v557 = vpop.f32.mrb[0].mxu0
    %v558 = vadd.f32 %v439, %v557
    %559 = vmatprep.mubr.f32.mxu0 0.0
    %560 = vmatmul.mubr.f32.gmra.mrb[0].mxu0 %v463
    %v561 = vpop.f32.mrb[0].mxu0
    %v562 = vadd.f32 %v435, %v561
    %v563 = vpop.f32.mrb[0].mxu0
    %v564 = vadd.f32 %v439, %v563
    %565 = vmatprep.mubr.f32.mxu0 0.0
    %566 = vmatmul.mubr.f32.gmra.mrb[0].mxu0 %v466
    %v567 = vpop.f32.mrb[0].mxu0
    %v568 = vadd.f32 %v435, %v567
    %v569 = vpop.f32.mrb[0].mxu0
    %v570 = vadd.f32 %v439, %v569
    %571 = vmatprep.mubr.f32.mxu0 0.0
    %572 = vmatmul.mubr.f32.gmra.mrb[0].mxu0 %v469
    %v573 = vpop.f32.mrb[0].mxu0
    %v574 = vadd.f32 %v435, %v573
    %v575 = vpop.f32.mrb[0].mxu0
    %v576 = vadd.f32 %v439, %v575
    %577 = vmatprep.mubr.f32.mxu0 0.0
    %578 = vmatmul.mubr.f32.gmra.mrb[0].mxu0 %v472
    %v579 = vpop.f32.mrb[0].mxu0
    %v580 = vadd.f32 %v435, %v579
    %v581 = vpop.f32.mrb[0].mxu0
    %v582 = vadd.f32 %v439, %v581
    %583 = vmatprep.mubr.f32.mxu0 0.0
    %584 = vmatmul.mubr.f32.gmra.mrb[0].mxu0 %v475
    %v585 = vpop.f32.mrb[0].mxu0
    %v586 = vadd.f32 %v435, %v585
    %v587 = vpop.f32.mrb[0].mxu0
    %v588 = vadd.f32 %v439, %v587
    %589 = vdwg.mxu0
    %590 = vmatprep.subr.mxu0 %v429
    %591 = vmatpush1.msra.mxu0 %v428
    %592 = vmatprep.subr.mxu0 0.0
    %593 = vmatpush1.msra.mxu0 0.0
    %594 = vmatprep.subr.mxu0 0.0
    %595 = vmatpush1.msra.mxu0 0.0
    %596 = vmatprep.subr.mxu0 0.0
    %597 = vmatpush1.msra.mxu0 0.0
    %598 = vmatprep.subr.mxu0 0.0
    %599 = vmatpush1.msra.mxu0 0.0
    %600 = vmatprep.subr.mxu0 0.0
    %601 = vmatpush1.msra.mxu0 0.0
    %602 = vmatprep.subr.mxu0 0.0
    %603 = vmatpush1.msra.mxu0 0.0
    %604 = vmatprep.subr.mxu0 0.0
    %605 = vmatpush1.msra.mxu0 0.0
    %606 = vmatprep.subr.mxu0 0.0
    %607 = vmatpush1.msra.mxu0 0.0
    %608 = vmatprep.subr.mxu0 0.0
    %609 = vmatpush1.msra.mxu0 0.0
    %610 = vmatprep.subr.mxu0 0.0
    %611 = vmatpush1.msra.mxu0 0.0
    %612 = vmatprep.subr.mxu0 0.0
    %613 = vmatpush1.msra.mxu0 0.0
    %614 = vmatprep.subr.mxu0 0.0
    %615 = vmatpush1.msra.mxu0 0.0
    %616 = vmatprep.subr.mxu0 0.0
    %617 = vmatpush1.msra.mxu0 0.0
    %618 = vmatprep.subr.mxu0 0.0
    %619 = vmatpush1.msra.mxu0 0.0
    %620 = vmatprep.subr.mxu0 0.0
    %621 = vmatpush1.msra.mxu0 0.0
    %622 = vmatprep.subr.mxu0 0.0
    %623 = vmatpush1.msra.mxu0 0.0
    %624 = vmatprep.subr.mxu0 0.0
    %625 = vmatpush1.msra.mxu0 0.0
    %626 = vmatprep.subr.mxu0 0.0
    %627 = vmatpush1.msra.mxu0 0.0
    %628 = vmatprep.subr.mxu0 0.0
    %629 = vmatpush1.msra.mxu0 0.0
    %630 = vmatprep.subr.mxu0 0.0
    %631 = vmatpush1.msra.mxu0 0.0
    %632 = vmatprep.subr.mxu0 0.0
    %633 = vmatpush1.msra.mxu0 0.0
    %634 = vmatprep.subr.mxu0 0.0
    %635 = vmatpush1.msra.mxu0 0.0
    %636 = vmatprep.subr.mxu0 0.0
    %637 = vmatpush1.msra.mxu0 0.0
    %638 = vmatprep.subr.mxu0 0.0
    %639 = vmatpush1.msra.mxu0 0.0
    %640 = vmatprep.subr.mxu0 0.0
    %641 = vmatpush1.msra.mxu0 0.0
    %642 = vmatprep.subr.mxu0 0.0
    %643 = vmatpush1.msra.mxu0 0.0
    %644 = vmatprep.subr.mxu0 0.0
    %645 = vmatpush1.msra.mxu0 0.0
    %646 = vmatprep.subr.mxu0 0.0
    %647 = vmatpush1.msra.mxu0 0.0
    %648 = vmatprep.subr.mxu0 0.0
    %649 = vmatpush1.msra.mxu0 0.0
    %650 = vmatprep.subr.mxu0 0.0
    %651 = vmatpush1.msra.mxu0 0.0
    %652 = vmatprep.subr.mxu0 0.0
    %653 = vmatpush1.msra.mxu0 0.0
    %654 = vmatprep.mubr.f32.mxu0 0.0
    %655 = vmatmul.mubr.f32.gmra.mrb[0].mxu0 %v454
    %v656 = vpop.f32.mrb[0].mxu0
    %v657 = vadd.f32 %v443, %v656
    %v658 = vpop.f32.mrb[0].mxu0
    %v659 = vadd.f32 %v447, %v658
    %660 = vmatprep.mubr.f32.mxu0 0.0
    %661 = vmatmul.mubr.f32.gmra.mrb[0].mxu0 %v457
    %v662 = vpop.f32.mrb[0].mxu0
    %v663 = vadd.f32 %v443, %v662
    %v664 = vpop.f32.mrb[0].mxu0
    %v665 = vadd.f32 %v447, %v664
    %666 = vmatprep.mubr.f32.mxu0 0.0
    %667 = vmatmul.mubr.f32.gmra.mrb[0].mxu0 %v460
    %v668 = vpop.f32.mrb[0].mxu0
    %v669 = vadd.f32 %v443, %v668
    %v670 = vpop.f32.mrb[0].mxu0
    %v671 = vadd.f32 %v447, %v670
    %672 = vmatprep.mubr.f32.mxu0 0.0
    %673 = vmatmul.mubr.f32.gmra.mrb[0].mxu0 %v463
    %v674 = vpop.f32.mrb[0].mxu0
    %v675 = vadd.f32 %v443, %v674
    %v676 = vpop.f32.mrb[0].mxu0
    %v677 = vadd.f32 %v447, %v676
    %678 = vmatprep.mubr.f32.mxu0 0.0
    %679 = vmatmul.mubr.f32.gmra.mrb[0].mxu0 %v466
    %v680 = vpop.f32.mrb[0].mxu0
    %v681 = vadd.f32 %v443, %v680
    %v682 = vpop.f32.mrb[0].mxu0
    %v683 = vadd.f32 %v447, %v682
    %684 = vmatprep.mubr.f32.mxu0 0.0
    %685 = vmatmul.mubr.f32.gmra.mrb[0].mxu0 %v469
    %v686 = vpop.f32.mrb[0].mxu0
    %v687 = vadd.f32 %v443, %v686
    %v688 = vpop.f32.mrb[0].mxu0
    %v689 = vadd.f32 %v447, %v688
    %690 = vmatprep.mubr.f32.mxu0 0.0
    %691 = vmatmul.mubr.f32.gmra.mrb[0].mxu0 %v472
    %v692 = vpop.f32.mrb[0].mxu0
    %v693 = vadd.f32 %v443, %v692
    %v694 = vpop.f32.mrb[0].mxu0
    %v695 = vadd.f32 %v447, %v694
    %696 = vmatprep.mubr.f32.mxu0 0.0
    %697 = vmatmul.mubr.f32.gmra.mrb[0].mxu0 %v475
    %v698 = vpop.f32.mrb[0].mxu0
    %v699 = vadd.f32 %v443, %v698
    %v700 = vpop.f32.mrb[0].mxu0
    %v701 = vadd.f32 %v447, %v700
    %702 = vdwg.mxu0
    %v703 = vld [vmem:[%s5] sm:$0xf]
    %v705 = vlaneseq
    %v706 = vshrl.u32 %v705, 7
    %v707 = vsub.s32 0, %v706
    %v708 = vrot.slane %v703, %v707
    %v709 = vlaneseq
    %v710 = vshrl.u32 %v709, 7
    %v711 = vsub.s32 1, %v710
    %v712 = vrot.slane %v703, %v711
    %v713 = vlaneseq
    %v714 = vshrl.u32 %v713, 7
    %v715 = vsub.s32 2, %v714
    %v716 = vrot.slane %v703, %v715
    %v717 = vlaneseq
    %v718 = vshrl.u32 %v717, 7
    %v719 = vsub.s32 3, %v718
    %v720 = vrot.slane %v703, %v719
    %725 = vmatprep.subr.mxu0 %v227
    %726 = vmatpush1.msra.mxu0 %v226
    %727 = vmatprep.subr.mxu0 %v231
    %728 = vmatpush1.msra.mxu0 %v230
    %729 = vmatprep.subr.mxu0 %v235
    %730 = vmatpush1.msra.mxu0 %v234
    %731 = vmatprep.subr.mxu0 %v239
    %732 = vmatpush1.msra.mxu0 %v238
    %733 = vmatprep.subr.mxu0 %v243
    %734 = vmatpush1.msra.mxu0 %v242
    %735 = vmatprep.subr.mxu0 %v247
    %736 = vmatpush1.msra.mxu0 %v246
    %737 = vmatprep.subr.mxu0 %v251
    %738 = vmatpush1.msra.mxu0 %v250
    %739 = vmatprep.subr.mxu0 %v255
    %740 = vmatpush1.msra.mxu0 %v254
    %741 = vmatprep.subr.mxu0 %v259
    %742 = vmatpush1.msra.mxu0 %v258
    %743 = vmatprep.subr.mxu0 %v263
    %744 = vmatpush1.msra.mxu0 %v262
    %745 = vmatprep.subr.mxu0 %v267
    %746 = vmatpush1.msra.mxu0 %v266
    %747 = vmatprep.subr.mxu0 %v271
    %748 = vmatpush1.msra.mxu0 %v270
    %749 = vmatprep.subr.mxu0 %v275
    %750 = vmatpush1.msra.mxu0 %v274
    %751 = vmatprep.subr.mxu0 %v279
    %752 = vmatpush1.msra.mxu0 %v278
    %753 = vmatprep.subr.mxu0 %v283
    %754 = vmatpush1.msra.mxu0 %v282
    %755 = vmatprep.subr.mxu0 %v287
    %756 = vmatpush1.msra.mxu0 %v286
    %757 = vmatprep.subr.mxu0 0.0
    %758 = vmatpush1.msra.mxu0 0.0
    %759 = vmatprep.subr.mxu0 0.0
    %760 = vmatpush1.msra.mxu0 0.0
    %761 = vmatprep.subr.mxu0 0.0
    %762 = vmatpush1.msra.mxu0 0.0
    %763 = vmatprep.subr.mxu0 0.0
    %764 = vmatpush1.msra.mxu0 0.0
    %765 = vmatprep.subr.mxu0 0.0
    %766 = vmatpush1.msra.mxu0 0.0
    %767 = vmatprep.subr.mxu0 0.0
    %768 = vmatpush1.msra.mxu0 0.0
    %769 = vmatprep.subr.mxu0 0.0
    %770 = vmatpush1.msra.mxu0 0.0
    %771 = vmatprep.subr.mxu0 0.0
    %772 = vmatpush1.msra.mxu0 0.0
    %773 = vmatprep.subr.mxu0 0.0
    %774 = vmatpush1.msra.mxu0 0.0
    %775 = vmatprep.subr.mxu0 0.0
    %776 = vmatpush1.msra.mxu0 0.0
    %777 = vmatprep.subr.mxu0 0.0
    %778 = vmatpush1.msra.mxu0 0.0
    %779 = vmatprep.subr.mxu0 0.0
    %780 = vmatpush1.msra.mxu0 0.0
    %781 = vmatprep.subr.mxu0 0.0
    %782 = vmatpush1.msra.mxu0 0.0
    %783 = vmatprep.subr.mxu0 0.0
    %784 = vmatpush1.msra.mxu0 0.0
    %785 = vmatprep.subr.mxu0 0.0
    %786 = vmatpush1.msra.mxu0 0.0
    %787 = vmatprep.subr.mxu0 0.0
    %788 = vmatpush1.msra.mxu0 0.0
    %789 = vmatprep.mubr.f32.mxu0 0.0
    %790 = vmatmul.mubr.f32.gmra.mrb[0].mxu0 0.0
    %v791 = vpop.f32.mrb[0].mxu0
    %v792 = vadd.f32 0.0, %v791
    %v793 = vpop.f32.mrb[0].mxu0
    %v794 = vadd.f32 0.0, %v793
    %795 = vdwg.mxu0
    %796 = vmatprep.subr.mxu0 %v229
    %797 = vmatpush1.msra.mxu0 %v228
    %798 = vmatprep.subr.mxu0 %v233
    %799 = vmatpush1.msra.mxu0 %v232
    %800 = vmatprep.subr.mxu0 %v237
    %801 = vmatpush1.msra.mxu0 %v236
    %802 = vmatprep.subr.mxu0 %v241
    %803 = vmatpush1.msra.mxu0 %v240
    %804 = vmatprep.subr.mxu0 %v245
    %805 = vmatpush1.msra.mxu0 %v244
    %806 = vmatprep.subr.mxu0 %v249
    %807 = vmatpush1.msra.mxu0 %v248
    %808 = vmatprep.subr.mxu0 %v253
    %809 = vmatpush1.msra.mxu0 %v252
    %810 = vmatprep.subr.mxu0 %v257
    %811 = vmatpush1.msra.mxu0 %v256
    %812 = vmatprep.subr.mxu0 %v261
    %813 = vmatpush1.msra.mxu0 %v260
    %814 = vmatprep.subr.mxu0 %v265
    %815 = vmatpush1.msra.mxu0 %v264
    %816 = vmatprep.subr.mxu0 %v269
    %817 = vmatpush1.msra.mxu0 %v268
    %818 = vmatprep.subr.mxu0 %v273
    %819 = vmatpush1.msra.mxu0 %v272
    %820 = vmatprep.subr.mxu0 %v277
    %821 = vmatpush1.msra.mxu0 %v276
    %822 = vmatprep.subr.mxu0 %v281
    %823 = vmatpush1.msra.mxu0 %v280
    %824 = vmatprep.subr.mxu0 %v285
    %825 = vmatpush1.msra.mxu0 %v284
    %826 = vmatprep.subr.mxu0 %v289
    %827 = vmatpush1.msra.mxu0 %v288
    %828 = vmatprep.subr.mxu0 0.0
    %829 = vmatpush1.msra.mxu0 0.0
    %830 = vmatprep.subr.mxu0 0.0
    %831 = vmatpush1.msra.mxu0 0.0
    %832 = vmatprep.subr.mxu0 0.0
    %833 = vmatpush1.msra.mxu0 0.0
    %834 = vmatprep.subr.mxu0 0.0
    %835 = vmatpush1.msra.mxu0 0.0
    %836 = vmatprep.subr.mxu0 0.0
    %837 = vmatpush1.msra.mxu0 0.0
    %838 = vmatprep.subr.mxu0 0.0
    %839 = vmatpush1.msra.mxu0 0.0
    %840 = vmatprep.subr.mxu0 0.0
    %841 = vmatpush1.msra.mxu0 0.0
    %842 = vmatprep.subr.mxu0 0.0
    %843 = vmatpush1.msra.mxu0 0.0
    %844 = vmatprep.subr.mxu0 0.0
    %845 = vmatpush1.msra.mxu0 0.0
    %846 = vmatprep.subr.mxu0 0.0
    %847 = vmatpush1.msra.mxu0 0.0
    %848 = vmatprep.subr.mxu0 0.0
    %849 = vmatpush1.msra.mxu0 0.0
    %850 = vmatprep.subr.mxu0 0.0
    %851 = vmatpush1.msra.mxu0 0.0
    %852 = vmatprep.subr.mxu0 0.0
    %853 = vmatpush1.msra.mxu0 0.0
    %854 = vmatprep.subr.mxu0 0.0
    %855 = vmatpush1.msra.mxu0 0.0
    %856 = vmatprep.subr.mxu0 0.0
    %857 = vmatpush1.msra.mxu0 0.0
    %858 = vmatprep.subr.mxu0 0.0
    %859 = vmatpush1.msra.mxu0 0.0
    %860 = vmatprep.mubr.f32.mxu0 0.0
    %861 = vmatmul.mubr.f32.gmra.mrb[0].mxu0 0.0
    %v862 = vpop.f32.mrb[0].mxu0
    %v863 = vadd.f32 0.0, %v862
    %v864 = vpop.f32.mrb[0].mxu0
    %v865 = vadd.f32 0.0, %v864
    %866 = vdwg.mxu0
    %v867 = vadd.f32 %v544, %v792
    %v868 = vadd.f32 %v546, %v794
    %v869 = vadd.f32 %v657, %v863
    %v870 = vadd.f32 %v659, %v865
    %v871 = vxor.u32 %v867, 2147483648
    %v872 = vmul.f32 %v871, 1.442695
    %v873 = vpow.pop %v872
    %v874 = vadd.f32 %v873, 1.0
    %v875 = vrcp.pop %v874
    %v876 = vmul.f32 1.0, %v875
    %v877 = vxor.u32 %v868, 2147483648
    %v878 = vmul.f32 %v877, 1.442695
    %v879 = vpow.pop %v878
    %v880 = vadd.f32 %v879, 1.0
    %v881 = vrcp.pop %v880
    %v882 = vmul.f32 1.0, %v881
    %v883 = vtanh.pop %v869
    %v884 = vxor.u32 %v870, 2147483648
    %v885 = vmul.f32 %v884, 1.442695
    %v886 = vpow.pop %v885
    %v887 = vadd.f32 %v886, 1.0
    %v888 = vrcp.pop %v887
    %v889 = vmul.f32 1.0, %v888
    %v890 = vmul.f32 %v882, 0.0
    %v891 = vmul.f32 %v876, %v883
    %v892 = vadd.f32 %v890, %v891
    %v893 = vtanh.pop %v892
    %v894 = vmul.f32 %v889, %v893
    %895 = vmatprep.subr.mxu0 %v355
    %896 = vmatpush1.msra.mxu0 %v354
    %897 = vmatprep.subr.mxu0 %v359
    %898 = vmatpush1.msra.mxu0 %v358
    %899 = vmatprep.subr.mxu0 %v363
    %900 = vmatpush1.msra.mxu0 %v362
    %901 = vmatprep.subr.mxu0 %v367
    %902 = vmatpush1.msra.mxu0 %v366
    %903 = vmatprep.subr.mxu0 %v371
    %904 = vmatpush1.msra.mxu0 %v370
    %905 = vmatprep.subr.mxu0 %v375
    %906 = vmatpush1.msra.mxu0 %v374
    %907 = vmatprep.subr.mxu0 %v379
    %908 = vmatpush1.msra.mxu0 %v378
    %909 = vmatprep.subr.mxu0 %v383
    %910 = vmatpush1.msra.mxu0 %v382
    %911 = vmatprep.subr.mxu0 %v387
    %912 = vmatpush1.msra.mxu0 %v386
    %913 = vmatprep.subr.mxu0 %v391
    %914 = vmatpush1.msra.mxu0 %v390
    %915 = vmatprep.subr.mxu0 %v395
    %916 = vmatpush1.msra.mxu0 %v394
    %917 = vmatprep.subr.mxu0 %v399
    %918 = vmatpush1.msra.mxu0 %v398
    %919 = vmatprep.subr.mxu0 %v403
    %920 = vmatpush1.msra.mxu0 %v402
    %921 = vmatprep.subr.mxu0 %v407
    %922 = vmatpush1.msra.mxu0 %v406
    %923 = vmatprep.subr.mxu0 %v411
    %924 = vmatpush1.msra.mxu0 %v410
    %925 = vmatprep.subr.mxu0 %v415
    %926 = vmatpush1.msra.mxu0 %v414
    %927 = vmatprep.subr.mxu0 0.0
    %928 = vmatpush1.msra.mxu0 0.0
    %929 = vmatprep.subr.mxu0 0.0
    %930 = vmatpush1.msra.mxu0 0.0
    %931 = vmatprep.subr.mxu0 0.0
    %932 = vmatpush1.msra.mxu0 0.0
    %933 = vmatprep.subr.mxu0 0.0
    %934 = vmatpush1.msra.mxu0 0.0
    %935 = vmatprep.subr.mxu0 0.0
    %936 = vmatpush1.msra.mxu0 0.0
    %937 = vmatprep.subr.mxu0 0.0
    %938 = vmatpush1.msra.mxu0 0.0
    %939 = vmatprep.subr.mxu0 0.0
    %940 = vmatpush1.msra.mxu0 0.0
    %941 = vmatprep.subr.mxu0 0.0
    %942 = vmatpush1.msra.mxu0 0.0
    %943 = vmatprep.subr.mxu0 0.0
    %944 = vmatpush1.msra.mxu0 0.0
    %945 = vmatprep.subr.mxu0 0.0
    %946 = vmatpush1.msra.mxu0 0.0
    %947 = vmatprep.subr.mxu0 0.0
    %948 = vmatpush1.msra.mxu0 0.0
    %949 = vmatprep.subr.mxu0 0.0
    %950 = vmatpush1.msra.mxu0 0.0
    %951 = vmatprep.subr.mxu0 0.0
    %952 = vmatpush1.msra.mxu0 0.0
    %953 = vmatprep.subr.mxu0 0.0
    %954 = vmatpush1.msra.mxu0 0.0
    %955 = vmatprep.subr.mxu0 0.0
    %956 = vmatpush1.msra.mxu0 0.0
    %957 = vmatprep.subr.mxu0 0.0
    %958 = vmatpush1.msra.mxu0 0.0
    %959 = vmatprep.mubr.f32.mxu0 0.0
    %960 = vmatmul.mubr.f32.gmra.mrb[0].mxu0 0.0
    %v961 = vpop.f32.mrb[0].mxu0
    %v962 = vadd.f32 0.0, %v961
    %v963 = vpop.f32.mrb[0].mxu0
    %v964 = vadd.f32 0.0, %v963
    %965 = vdwg.mxu0
    %966 = vmatprep.subr.mxu0 %v357
    %967 = vmatpush1.msra.mxu0 %v356
    %968 = vmatprep.subr.mxu0 %v361
    %969 = vmatpush1.msra.mxu0 %v360
    %970 = vmatprep.subr.mxu0 %v365
    %971 = vmatpush1.msra.mxu0 %v364
    %972 = vmatprep.subr.mxu0 %v369
    %973 = vmatpush1.msra.mxu0 %v368
    %974 = vmatprep.subr.mxu0 %v373
    %975 = vmatpush1.msra.mxu0 %v372
    %976 = vmatprep.subr.mxu0 %v377
    %977 = vmatpush1.msra.mxu0 %v376
    %978 = vmatprep.subr.mxu0 %v381
    %979 = vmatpush1.msra.mxu0 %v380
    %980 = vmatprep.subr.mxu0 %v385
    %981 = vmatpush1.msra.mxu0 %v384
    %982 = vmatprep.subr.mxu0 %v389
    %983 = vmatpush1.msra.mxu0 %v388
    %984 = vmatprep.subr.mxu0 %v393
    %985 = vmatpush1.msra.mxu0 %v392
    %986 = vmatprep.subr.mxu0 %v397
    %987 = vmatpush1.msra.mxu0 %v396
    %988 = vmatprep.subr.mxu0 %v401
    %989 = vmatpush1.msra.mxu0 %v400
    %990 = vmatprep.subr.mxu0 %v405
    %991 = vmatpush1.msra.mxu0 %v404
    %992 = vmatprep.subr.mxu0 %v409
    %993 = vmatpush1.msra.mxu0 %v408
    %994 = vmatprep.subr.mxu0 %v413
    %995 = vmatpush1.msra.mxu0 %v412
    %996 = vmatprep.subr.mxu0 %v417
    %997 = vmatpush1.msra.mxu0 %v416
    %998 = vmatprep.subr.mxu0 0.0
    %999 = vmatpush1.msra.mxu0 0.0
    %1000 = vmatprep.subr.mxu0 0.0
    %1001 = vmatpush1.msra.mxu0 0.0
    %1002 = vmatprep.subr.mxu0 0.0
    %1003 = vmatpush1.msra.mxu0 0.0
    %1004 = vmatprep.subr.mxu0 0.0
    %1005 = vmatpush1.msra.mxu0 0.0
    %1006 = vmatprep.subr.mxu0 0.0
    %1007 = vmatpush1.msra.mxu0 0.0
    %1008 = vmatprep.subr.mxu0 0.0
    %1009 = vmatpush1.msra.mxu0 0.0
    %1010 = vmatprep.subr.mxu0 0.0
    %1011 = vmatpush1.msra.mxu0 0.0
    %1012 = vmatprep.subr.mxu0 0.0
    %1013 = vmatpush1.msra.mxu0 0.0
    %1014 = vmatprep.subr.mxu0 0.0
    %1015 = vmatpush1.msra.mxu0 0.0
    %1016 = vmatprep.subr.mxu0 0.0
    %1017 = vmatpush1.msra.mxu0 0.0
    %1018 = vmatprep.subr.mxu0 0.0
    %1019 = vmatpush1.msra.mxu0 0.0
    %1020 = vmatprep.subr.mxu0 0.0
    %1021 = vmatpush1.msra.mxu0 0.0
    %1022 = vmatprep.subr.mxu0 0.0
    %1023 = vmatpush1.msra.mxu0 0.0
    %1024 = vmatprep.subr.mxu0 0.0
    %1025 = vmatpush1.msra.mxu0 0.0
    %1026 = vmatprep.subr.mxu0 0.0
    %1027 = vmatpush1.msra.mxu0 0.0
    %1028 = vmatprep.subr.mxu0 0.0
    %1029 = vmatpush1.msra.mxu0 0.0
    %1030 = vmatprep.mubr.f32.mxu0 0.0
    %1031 = vmatmul.mubr.f32.gmra.mrb[0].mxu0 0.0
    %v1032 = vpop.f32.mrb[0].mxu0
    %v1033 = vadd.f32 0.0, %v1032
    %v1034 = vpop.f32.mrb[0].mxu0
    %v1035 = vadd.f32 0.0, %v1034
    %1036 = vdwg.mxu0
    %1037 = vmatprep.subr.mxu0 %v291
    %1038 = vmatpush1.msra.mxu0 %v290
    %1039 = vmatprep.subr.mxu0 %v295
    %1040 = vmatpush1.msra.mxu0 %v294
    %1041 = vmatprep.subr.mxu0 %v299
    %1042 = vmatpush1.msra.mxu0 %v298
    %1043 = vmatprep.subr.mxu0 %v303
    %1044 = vmatpush1.msra.mxu0 %v302
    %1045 = vmatprep.subr.mxu0 %v307
    %1046 = vmatpush1.msra.mxu0 %v306
    %1047 = vmatprep.subr.mxu0 %v311
    %1048 = vmatpush1.msra.mxu0 %v310
    %1049 = vmatprep.subr.mxu0 %v315
    %1050 = vmatpush1.msra.mxu0 %v314
    %1051 = vmatprep.subr.mxu0 %v319
    %1052 = vmatpush1.msra.mxu0 %v318
    %1053 = vmatprep.subr.mxu0 %v323
    %1054 = vmatpush1.msra.mxu0 %v322
    %1055 = vmatprep.subr.mxu0 %v327
    %1056 = vmatpush1.msra.mxu0 %v326
    %1057 = vmatprep.subr.mxu0 %v331
    %1058 = vmatpush1.msra.mxu0 %v330
    %1059 = vmatprep.subr.mxu0 %v335
    %1060 = vmatpush1.msra.mxu0 %v334
    %1061 = vmatprep.subr.mxu0 %v339
    %1062 = vmatpush1.msra.mxu0 %v338
    %1063 = vmatprep.subr.mxu0 %v343
    %1064 = vmatpush1.msra.mxu0 %v342
    %1065 = vmatprep.subr.mxu0 %v347
    %1066 = vmatpush1.msra.mxu0 %v346
    %1067 = vmatprep.subr.mxu0 %v351
    %1068 = vmatpush1.msra.mxu0 %v350
    %1069 = vmatprep.subr.mxu0 0.0
    %1070 = vmatpush1.msra.mxu0 0.0
    %1071 = vmatprep.subr.mxu0 0.0
    %1072 = vmatpush1.msra.mxu0 0.0
    %1073 = vmatprep.subr.mxu0 0.0
    %1074 = vmatpush1.msra.mxu0 0.0
    %1075 = vmatprep.subr.mxu0 0.0
    %1076 = vmatpush1.msra.mxu0 0.0
    %1077 = vmatprep.subr.mxu0 0.0
    %1078 = vmatpush1.msra.mxu0 0.0
    %1079 = vmatprep.subr.mxu0 0.0
    %1080 = vmatpush1.msra.mxu0 0.0
    %1081 = vmatprep.subr.mxu0 0.0
    %1082 = vmatpush1.msra.mxu0 0.0
    %1083 = vmatprep.subr.mxu0 0.0
    %1084 = vmatpush1.msra.mxu0 0.0
    %1085 = vmatprep.subr.mxu0 0.0
    %1086 = vmatpush1.msra.mxu0 0.0
    %1087 = vmatprep.subr.mxu0 0.0
    %1088 = vmatpush1.msra.mxu0 0.0
    %1089 = vmatprep.subr.mxu0 0.0
    %1090 = vmatpush1.msra.mxu0 0.0
    %1091 = vmatprep.subr.mxu0 0.0
    %1092 = vmatpush1.msra.mxu0 0.0
    %1093 = vmatprep.subr.mxu0 0.0
    %1094 = vmatpush1.msra.mxu0 0.0
    %1095 = vmatprep.subr.mxu0 0.0
    %1096 = vmatpush1.msra.mxu0 0.0
    %1097 = vmatprep.subr.mxu0 0.0
    %1098 = vmatpush1.msra.mxu0 0.0
    %1099 = vmatprep.subr.mxu0 0.0
    %1100 = vmatpush1.msra.mxu0 0.0
    %1101 = vmatprep.mubr.f32.mxu0 0.0
    %1102 = vmatmul.mubr.f32.gmra.mrb[0].mxu0 %v894
    %v1103 = vpop.f32.mrb[0].mxu0
    %v1104 = vadd.f32 %v962, %v1103
    %v1105 = vpop.f32.mrb[0].mxu0
    %v1106 = vadd.f32 %v964, %v1105
    %1107 = vdwg.mxu0
    %1108 = vmatprep.subr.mxu0 %v293
    %1109 = vmatpush1.msra.mxu0 %v292
    %1110 = vmatprep.subr.mxu0 %v297
    %1111 = vmatpush1.msra.mxu0 %v296
    %1112 = vmatprep.subr.mxu0 %v301
    %1113 = vmatpush1.msra.mxu0 %v300
    %1114 = vmatprep.subr.mxu0 %v305
    %1115 = vmatpush1.msra.mxu0 %v304
    %1116 = vmatprep.subr.mxu0 %v309
    %1117 = vmatpush1.msra.mxu0 %v308
    %1118 = vmatprep.subr.mxu0 %v313
    %1119 = vmatpush1.msra.mxu0 %v312
    %1120 = vmatprep.subr.mxu0 %v317
    %1121 = vmatpush1.msra.mxu0 %v316
    %1122 = vmatprep.subr.mxu0 %v321
    %1123 = vmatpush1.msra.mxu0 %v320
    %1124 = vmatprep.subr.mxu0 %v325
    %1125 = vmatpush1.msra.mxu0 %v324
    %1126 = vmatprep.subr.mxu0 %v329
    %1127 = vmatpush1.msra.mxu0 %v328
    %1128 = vmatprep.subr.mxu0 %v333
    %1129 = vmatpush1.msra.mxu0 %v332
    %1130 = vmatprep.subr.mxu0 %v337
    %1131 = vmatpush1.msra.mxu0 %v336
    %1132 = vmatprep.subr.mxu0 %v341
    %1133 = vmatpush1.msra.mxu0 %v340
    %1134 = vmatprep.subr.mxu0 %v345
    %1135 = vmatpush1.msra.mxu0 %v344
    %1136 = vmatprep.subr.mxu0 %v349
    %1137 = vmatpush1.msra.mxu0 %v348
    %1138 = vmatprep.subr.mxu0 %v353
    %1139 = vmatpush1.msra.mxu0 %v352
    %1140 = vmatprep.subr.mxu0 0.0
    %1141 = vmatpush1.msra.mxu0 0.0
    %1142 = vmatprep.subr.mxu0 0.0
    %1143 = vmatpush1.msra.mxu0 0.0
    %1144 = vmatprep.subr.mxu0 0.0
    %1145 = vmatpush1.msra.mxu0 0.0
    %1146 = vmatprep.subr.mxu0 0.0
    %1147 = vmatpush1.msra.mxu0 0.0
    %1148 = vmatprep.subr.mxu0 0.0
    %1149 = vmatpush1.msra.mxu0 0.0
    %1150 = vmatprep.subr.mxu0 0.0
    %1151 = vmatpush1.msra.mxu0 0.0
    %1152 = vmatprep.subr.mxu0 0.0
    %1153 = vmatpush1.msra.mxu0 0.0
    %1154 = vmatprep.subr.mxu0 0.0
    %1155 = vmatpush1.msra.mxu0 0.0
    %1156 = vmatprep.subr.mxu0 0.0
    %1157 = vmatpush1.msra.mxu0 0.0
    %1158 = vmatprep.subr.mxu0 0.0
    %1159 = vmatpush1.msra.mxu0 0.0
    %1160 = vmatprep.subr.mxu0 0.0
    %1161 = vmatpush1.msra.mxu0 0.0
    %1162 = vmatprep.subr.mxu0 0.0
    %1163 = vmatpush1.msra.mxu0 0.0
    %1164 = vmatprep.subr.mxu0 0.0
    %1165 = vmatpush1.msra.mxu0 0.0
    %1166 = vmatprep.subr.mxu0 0.0
    %1167 = vmatpush1.msra.mxu0 0.0
    %1168 = vmatprep.subr.mxu0 0.0
    %1169 = vmatpush1.msra.mxu0 0.0
    %1170 = vmatprep.subr.mxu0 0.0
    %1171 = vmatpush1.msra.mxu0 0.0
    %1172 = vmatprep.mubr.f32.mxu0 0.0
    %1173 = vmatmul.mubr.f32.gmra.mrb[0].mxu0 %v894
    %v1174 = vpop.f32.mrb[0].mxu0
    %v1175 = vadd.f32 %v1033, %v1174
    %v1176 = vpop.f32.mrb[0].mxu0
    %v1177 = vadd.f32 %v1035, %v1176
    %1178 = vdwg.mxu0
    %v1179 = vadd.f32 %v1104, %v708
    %v1180 = vadd.f32 %v1106, %v712
    %v1181 = vadd.f32 %v1175, %v716
    %v1182 = vadd.f32 %v1177, %v720
    %v1183 = vxor.u32 %v1179, 2147483648
    %v1184 = vmul.f32 %v1183, 1.442695
    %v1185 = vpow.pop %v1184
    %v1186 = vadd.f32 %v1185, 1.0
    %v1187 = vrcp.pop %v1186
    %v1188 = vmul.f32 1.0, %v1187
    %v1189 = vxor.u32 %v1180, 2147483648
    %v1190 = vmul.f32 %v1189, 1.442695
    %v1191 = vpow.pop %v1190
    %v1192 = vadd.f32 %v1191, 1.0
    %v1193 = vrcp.pop %v1192
    %v1194 = vmul.f32 1.0, %v1193
    %v1195 = vtanh.pop %v1181
    %v1196 = vxor.u32 %v1182, 2147483648
    %v1197 = vmul.f32 %v1196, 1.442695
    %v1198 = vpow.pop %v1197
    %v1199 = vadd.f32 %v1198, 1.0
    %v1200 = vrcp.pop %v1199
    %v1201 = vmul.f32 1.0, %v1200
    %v1202 = vmul.f32 %v1194, 0.0
    %v1203 = vmul.f32 %v1188, %v1195
    %v1204 = vadd.f32 %v1202, %v1203
    %v1205 = vtanh.pop %v1204
    %v1206 = vmul.f32 %v1201, %v1205
    %1207 = vmatprep.subr.mxu0 %v227
    %1208 = vmatpush1.msra.mxu0 %v226
    %1209 = vmatprep.subr.mxu0 %v231
    %1210 = vmatpush1.msra.mxu0 %v230
    %1211 = vmatprep.subr.mxu0 %v235
    %1212 = vmatpush1.msra.mxu0 %v234
    %1213 = vmatprep.subr.mxu0 %v239
    %1214 = vmatpush1.msra.mxu0 %v238
    %1215 = vmatprep.subr.mxu0 %v243
    %1216 = vmatpush1.msra.mxu0 %v242
    %1217 = vmatprep.subr.mxu0 %v247
    %1218 = vmatpush1.msra.mxu0 %v246
    %1219 = vmatprep.subr.mxu0 %v251
    %1220 = vmatpush1.msra.mxu0 %v250
    %1221 = vmatprep.subr.mxu0 %v255
    %1222 = vmatpush1.msra.mxu0 %v254
    %1223 = vmatprep.subr.mxu0 %v259
    %1224 = vmatpush1.msra.mxu0 %v258
    %1225 = vmatprep.subr.mxu0 %v263
    %1226 = vmatpush1.msra.mxu0 %v262
    %1227 = vmatprep.subr.mxu0 %v267
    %1228 = vmatpush1.msra.mxu0 %v266
    %1229 = vmatprep.subr.mxu0 %v271
    %1230 = vmatpush1.msra.mxu0 %v270
    %1231 = vmatprep.subr.mxu0 %v275
    %1232 = vmatpush1.msra.mxu0 %v274
    %1233 = vmatprep.subr.mxu0 %v279
    %1234 = vmatpush1.msra.mxu0 %v278
    %1235 = vmatprep.subr.mxu0 %v283
    %1236 = vmatpush1.msra.mxu0 %v282
    %1237 = vmatprep.subr.mxu0 %v287
    %1238 = vmatpush1.msra.mxu0 %v286
    %1239 = vmatprep.subr.mxu0 0.0
    %1240 = vmatpush1.msra.mxu0 0.0
    %1241 = vmatprep.subr.mxu0 0.0
    %1242 = vmatpush1.msra.mxu0 0.0
    %1243 = vmatprep.subr.mxu0 0.0
    %1244 = vmatpush1.msra.mxu0 0.0
    %1245 = vmatprep.subr.mxu0 0.0
    %1246 = vmatpush1.msra.mxu0 0.0
    %1247 = vmatprep.subr.mxu0 0.0
    %1248 = vmatpush1.msra.mxu0 0.0
    %1249 = vmatprep.subr.mxu0 0.0
    %1250 = vmatpush1.msra.mxu0 0.0
    %1251 = vmatprep.subr.mxu0 0.0
    %1252 = vmatpush1.msra.mxu0 0.0
    %1253 = vmatprep.subr.mxu0 0.0
    %1254 = vmatpush1.msra.mxu0 0.0
    %1255 = vmatprep.subr.mxu0 0.0
    %1256 = vmatpush1.msra.mxu0 0.0
    %1257 = vmatprep.subr.mxu0 0.0
    %1258 = vmatpush1.msra.mxu0 0.0
    %1259 = vmatprep.subr.mxu0 0.0
    %1260 = vmatpush1.msra.mxu0 0.0
    %1261 = vmatprep.subr.mxu0 0.0
    %1262 = vmatpush1.msra.mxu0 0.0
    %1263 = vmatprep.subr.mxu0 0.0
    %1264 = vmatpush1.msra.mxu0 0.0
    %1265 = vmatprep.subr.mxu0 0.0
    %1266 = vmatpush1.msra.mxu0 0.0
    %1267 = vmatprep.subr.mxu0 0.0
    %1268 = vmatpush1.msra.mxu0 0.0
    %1269 = vmatprep.subr.mxu0 0.0
    %1270 = vmatpush1.msra.mxu0 0.0
    %1271 = vmatprep.mubr.f32.mxu0 0.0
    %1272 = vmatmul.mubr.f32.gmra.mrb[0].mxu0 %v894
    %v1273 = vpop.f32.mrb[0].mxu0
    %v1274 = vadd.f32 0.0, %v1273
    %v1275 = vpop.f32.mrb[0].mxu0
    %v1276 = vadd.f32 0.0, %v1275
    %1277 = vdwg.mxu0
    %1278 = vmatprep.subr.mxu0 %v229
    %1279 = vmatpush1.msra.mxu0 %v228
    %1280 = vmatprep.subr.mxu0 %v233
    %1281 = vmatpush1.msra.mxu0 %v232
    %1282 = vmatprep.subr.mxu0 %v237
    %1283 = vmatpush1.msra.mxu0 %v236
    %1284 = vmatprep.subr.mxu0 %v241
    %1285 = vmatpush1.msra.mxu0 %v240
    %1286 = vmatprep.subr.mxu0 %v245
    %1287 = vmatpush1.msra.mxu0 %v244
    %1288 = vmatprep.subr.mxu0 %v249
    %1289 = vmatpush1.msra.mxu0 %v248
    %1290 = vmatprep.subr.mxu0 %v253
    %1291 = vmatpush1.msra.mxu0 %v252
    %1292 = vmatprep.subr.mxu0 %v257
    %1293 = vmatpush1.msra.mxu0 %v256
    %1294 = vmatprep.subr.mxu0 %v261
    %1295 = vmatpush1.msra.mxu0 %v260
    %1296 = vmatprep.subr.mxu0 %v265
    %1297 = vmatpush1.msra.mxu0 %v264
    %1298 = vmatprep.subr.mxu0 %v269
    %1299 = vmatpush1.msra.mxu0 %v268
    %1300 = vmatprep.subr.mxu0 %v273
    %1301 = vmatpush1.msra.mxu0 %v272
    %1302 = vmatprep.subr.mxu0 %v277
    %1303 = vmatpush1.msra.mxu0 %v276
    %1304 = vmatprep.subr.mxu0 %v281
    %1305 = vmatpush1.msra.mxu0 %v280
    %1306 = vmatprep.subr.mxu0 %v285
    %1307 = vmatpush1.msra.mxu0 %v284
    %1308 = vmatprep.subr.mxu0 %v289
    %1309 = vmatpush1.msra.mxu0 %v288
    %1310 = vmatprep.subr.mxu0 0.0
    %1311 = vmatpush1.msra.mxu0 0.0
    %1312 = vmatprep.subr.mxu0 0.0
    %1313 = vmatpush1.msra.mxu0 0.0
    %1314 = vmatprep.subr.mxu0 0.0
    %1315 = vmatpush1.msra.mxu0 0.0
    %1316 = vmatprep.subr.mxu0 0.0
    %1317 = vmatpush1.msra.mxu0 0.0
    %1318 = vmatprep.subr.mxu0 0.0
    %1319 = vmatpush1.msra.mxu0 0.0
    %1320 = vmatprep.subr.mxu0 0.0
    %1321 = vmatpush1.msra.mxu0 0.0
    %1322 = vmatprep.subr.mxu0 0.0
    %1323 = vmatpush1.msra.mxu0 0.0
    %1324 = vmatprep.subr.mxu0 0.0
    %1325 = vmatpush1.msra.mxu0 0.0
    %1326 = vmatprep.subr.mxu0 0.0
    %1327 = vmatpush1.msra.mxu0 0.0
    %1328 = vmatprep.subr.mxu0 0.0
    %1329 = vmatpush1.msra.mxu0 0.0
    %1330 = vmatprep.subr.mxu0 0.0
    %1331 = vmatpush1.msra.mxu0 0.0
    %1332 = vmatprep.subr.mxu0 0.0
    %1333 = vmatpush1.msra.mxu0 0.0
    %1334 = vmatprep.subr.mxu0 0.0
    %1335 = vmatpush1.msra.mxu0 0.0
    %1336 = vmatprep.subr.mxu0 0.0
    %1337 = vmatpush1.msra.mxu0 0.0
    %1338 = vmatprep.subr.mxu0 0.0
    %1339 = vmatpush1.msra.mxu0 0.0
    %1340 = vmatprep.subr.mxu0 0.0
    %1341 = vmatpush1.msra.mxu0 0.0
    %1342 = vmatprep.mubr.f32.mxu0 0.0
    %1343 = vmatmul.mubr.f32.gmra.mrb[0].mxu0 %v894
    %v1344 = vpop.f32.mrb[0].mxu0
    %v1345 = vadd.f32 0.0, %v1344
    %v1346 = vpop.f32.mrb[0].mxu0
    %v1347 = vadd.f32 0.0, %v1346
    %1348 = vdwg.mxu0
    %v1349 = vadd.f32 %v550, %v1274
    %v1350 = vadd.f32 %v552, %v1276
    %v1351 = vadd.f32 %v663, %v1345
    %v1352 = vadd.f32 %v665, %v1347
    %v1353 = vxor.u32 %v1349, 2147483648
    %v1354 = vmul.f32 %v1353, 1.442695
    %v1355 = vpow.pop %v1354
    %v1356 = vadd.f32 %v1355, 1.0
    %v1357 = vrcp.pop %v1356
    %v1358 = vmul.f32 1.0, %v1357
    %v1359 = vxor.u32 %v1350, 2147483648
    %v1360 = vmul.f32 %v1359, 1.442695
    %v1361 = vpow.pop %v1360
    %v1362 = vadd.f32 %v1361, 1.0
    %v1363 = vrcp.pop %v1362
    %v1364 = vmul.f32 1.0, %v1363
    %v1365 = vtanh.pop %v1351
    %v1366 = vxor.u32 %v1352, 2147483648
    %v1367 = vmul.f32 %v1366, 1.442695
    %v1368 = vpow.pop %v1367
    %v1369 = vadd.f32 %v1368, 1.0
    %v1370 = vrcp.pop %v1369
    %v1371 = vmul.f32 1.0, %v1370
    %v1372 = vmul.f32 %v1364, %v892
    %v1373 = vmul.f32 %v1358, %v1365
    %v1374 = vadd.f32 %v1372, %v1373
    %v1375 = vtanh.pop %v1374
    %v1376 = vmul.f32 %v1371, %v1375
    %1377 = vmatprep.subr.mxu0 %v355
    %1378 = vmatpush1.msra.mxu0 %v354
    %1379 = vmatprep.subr.mxu0 %v359
    %1380 = vmatpush1.msra.mxu0 %v358
    %1381 = vmatprep.subr.mxu0 %v363
    %1382 = vmatpush1.msra.mxu0 %v362
    %1383 = vmatprep.subr.mxu0 %v367
    %1384 = vmatpush1.msra.mxu0 %v366
    %1385 = vmatprep.subr.mxu0 %v371
    %1386 = vmatpush1.msra.mxu0 %v370
    %1387 = vmatprep.subr.mxu0 %v375
    %1388 = vmatpush1.msra.mxu0 %v374
    %1389 = vmatprep.subr.mxu0 %v379
    %1390 = vmatpush1.msra.mxu0 %v378
    %1391 = vmatprep.subr.mxu0 %v383
    %1392 = vmatpush1.msra.mxu0 %v382
    %1393 = vmatprep.subr.mxu0 %v387
    %1394 = vmatpush1.msra.mxu0 %v386
    %1395 = vmatprep.subr.mxu0 %v391
    %1396 = vmatpush1.msra.mxu0 %v390
    %1397 = vmatprep.subr.mxu0 %v395
    %1398 = vmatpush1.msra.mxu0 %v394
    %1399 = vmatprep.subr.mxu0 %v399
    %1400 = vmatpush1.msra.mxu0 %v398
    %1401 = vmatprep.subr.mxu0 %v403
    %1402 = vmatpush1.msra.mxu0 %v402
    %1403 = vmatprep.subr.mxu0 %v407
    %1404 = vmatpush1.msra.mxu0 %v406
    %1405 = vmatprep.subr.mxu0 %v411
    %1406 = vmatpush1.msra.mxu0 %v410
    %1407 = vmatprep.subr.mxu0 %v415
    %1408 = vmatpush1.msra.mxu0 %v414
    %1409 = vmatprep.subr.mxu0 0.0
    %1410 = vmatpush1.msra.mxu0 0.0
    %1411 = vmatprep.subr.mxu0 0.0
    %1412 = vmatpush1.msra.mxu0 0.0
    %1413 = vmatprep.subr.mxu0 0.0
    %1414 = vmatpush1.msra.mxu0 0.0
    %1415 = vmatprep.subr.mxu0 0.0
    %1416 = vmatpush1.msra.mxu0 0.0
    %1417 = vmatprep.subr.mxu0 0.0
    %1418 = vmatpush1.msra.mxu0 0.0
    %1419 = vmatprep.subr.mxu0 0.0
    %1420 = vmatpush1.msra.mxu0 0.0
    %1421 = vmatprep.subr.mxu0 0.0
    %1422 = vmatpush1.msra.mxu0 0.0
    %1423 = vmatprep.subr.mxu0 0.0
    %1424 = vmatpush1.msra.mxu0 0.0
    %1425 = vmatprep.subr.mxu0 0.0
    %1426 = vmatpush1.msra.mxu0 0.0
    %1427 = vmatprep.subr.mxu0 0.0
    %1428 = vmatpush1.msra.mxu0 0.0
    %1429 = vmatprep.subr.mxu0 0.0
    %1430 = vmatpush1.msra.mxu0 0.0
    %1431 = vmatprep.subr.mxu0 0.0
    %1432 = vmatpush1.msra.mxu0 0.0
    %1433 = vmatprep.subr.mxu0 0.0
    %1434 = vmatpush1.msra.mxu0 0.0
    %1435 = vmatprep.subr.mxu0 0.0
    %1436 = vmatpush1.msra.mxu0 0.0
    %1437 = vmatprep.subr.mxu0 0.0
    %1438 = vmatpush1.msra.mxu0 0.0
    %1439 = vmatprep.subr.mxu0 0.0
    %1440 = vmatpush1.msra.mxu0 0.0
    %1441 = vmatprep.mubr.f32.mxu0 0.0
    %1442 = vmatmul.mubr.f32.gmra.mrb[0].mxu0 %v1206
    %v1443 = vpop.f32.mrb[0].mxu0
    %v1444 = vadd.f32 0.0, %v1443
    %v1445 = vpop.f32.mrb[0].mxu0
    %v1446 = vadd.f32 0.0, %v1445
    %1447 = vdwg.mxu0
    %1448 = vmatprep.subr.mxu0 %v357
    %1449 = vmatpush1.msra.mxu0 %v356
    %1450 = vmatprep.subr.mxu0 %v361
    %1451 = vmatpush1.msra.mxu0 %v360
    %1452 = vmatprep.subr.mxu0 %v365
    %1453 = vmatpush1.msra.mxu0 %v364
    %1454 = vmatprep.subr.mxu0 %v369
    %1455 = vmatpush1.msra.mxu0 %v368
    %1456 = vmatprep.subr.mxu0 %v373
    %1457 = vmatpush1.msra.mxu0 %v372
    %1458 = vmatprep.subr.mxu0 %v377
    %1459 = vmatpush1.msra.mxu0 %v376
    %1460 = vmatprep.subr.mxu0 %v381
    %1461 = vmatpush1.msra.mxu0 %v380
    %1462 = vmatprep.subr.mxu0 %v385
    %1463 = vmatpush1.msra.mxu0 %v384
    %1464 = vmatprep.subr.mxu0 %v389
    %1465 = vmatpush1.msra.mxu0 %v388
    %1466 = vmatprep.subr.mxu0 %v393
    %1467 = vmatpush1.msra.mxu0 %v392
    %1468 = vmatprep.subr.mxu0 %v397
    %1469 = vmatpush1.msra.mxu0 %v396
    %1470 = vmatprep.subr.mxu0 %v401
    %1471 = vmatpush1.msra.mxu0 %v400
    %1472 = vmatprep.subr.mxu0 %v405
    %1473 = vmatpush1.msra.mxu0 %v404
    %1474 = vmatprep.subr.mxu0 %v409
    %1475 = vmatpush1.msra.mxu0 %v408
    %1476 = vmatprep.subr.mxu0 %v413
    %1477 = vmatpush1.msra.mxu0 %v412
    %1478 = vmatprep.subr.mxu0 %v417
    %1479 = vmatpush1.msra.mxu0 %v416
    %1480 = vmatprep.subr.mxu0 0.0
    %1481 = vmatpush1.msra.mxu0 0.0
    %1482 = vmatprep.subr.mxu0 0.0
    %1483 = vmatpush1.msra.mxu0 0.0
    %1484 = vmatprep.subr.mxu0 0.0
    %1485 = vmatpush1.msra.mxu0 0.0
    %1486 = vmatprep.subr.mxu0 0.0
    %1487 = vmatpush1.msra.mxu0 0.0
    %1488 = vmatprep.subr.mxu0 0.0
    %1489 = vmatpush1.msra.mxu0 0.0
    %1490 = vmatprep.subr.mxu0 0.0
    %1491 = vmatpush1.msra.mxu0 0.0
    %1492 = vmatprep.subr.mxu0 0.0
    %1493 = vmatpush1.msra.mxu0 0.0
    %1494 = vmatprep.subr.mxu0 0.0
    %1495 = vmatpush1.msra.mxu0 0.0
    %1496 = vmatprep.subr.mxu0 0.0
    %1497 = vmatpush1.msra.mxu0 0.0
    %1498 = vmatprep.subr.mxu0 0.0
    %1499 = vmatpush1.msra.mxu0 0.0
    %1500 = vmatprep.subr.mxu0 0.0
    %1501 = vmatpush1.msra.mxu0 0.0
    %1502 = vmatprep.subr.mxu0 0.0
    %1503 = vmatpush1.msra.mxu0 0.0
    %1504 = vmatprep.subr.mxu0 0.0
    %1505 = vmatpush1.msra.mxu0 0.0
    %1506 = vmatprep.subr.mxu0 0.0
    %1507 = vmatpush1.msra.mxu0 0.0
    %1508 = vmatprep.subr.mxu0 0.0
    %1509 = vmatpush1.msra.mxu0 0.0
    %1510 = vmatprep.subr.mxu0 0.0
    %1511 = vmatpush1.msra.mxu0 0.0
    %1512 = vmatprep.mubr.f32.mxu0 0.0
    %1513 = vmatmul.mubr.f32.gmra.mrb[0].mxu0 %v1206
    %v1514 = vpop.f32.mrb[0].mxu0
    %v1515 = vadd.f32 0.0, %v1514
    %v1516 = vpop.f32.mrb[0].mxu0
    %v1517 = vadd.f32 0.0, %v1516
    %1518 = vdwg.mxu0
    %1519 = vmatprep.subr.mxu0 %v291
    %1520 = vmatpush1.msra.mxu0 %v290
    %1521 = vmatprep.subr.mxu0 %v295
    %1522 = vmatpush1.msra.mxu0 %v294
    %1523 = vmatprep.subr.mxu0 %v299
    %1524 = vmatpush1.msra.mxu0 %v298
    %1525 = vmatprep.subr.mxu0 %v303
    %1526 = vmatpush1.msra.mxu0 %v302
    %1527 = vmatprep.subr.mxu0 %v307
    %1528 = vmatpush1.msra.mxu0 %v306
    %1529 = vmatprep.subr.mxu0 %v311
    %1530 = vmatpush1.msra.mxu0 %v310
    %1531 = vmatprep.subr.mxu0 %v315
    %1532 = vmatpush1.msra.mxu0 %v314
    %1533 = vmatprep.subr.mxu0 %v319
    %1534 = vmatpush1.msra.mxu0 %v318
    %1535 = vmatprep.subr.mxu0 %v323
    %1536 = vmatpush1.msra.mxu0 %v322
    %1537 = vmatprep.subr.mxu0 %v327
    %1538 = vmatpush1.msra.mxu0 %v326
    %1539 = vmatprep.subr.mxu0 %v331
    %1540 = vmatpush1.msra.mxu0 %v330
    %1541 = vmatprep.subr.mxu0 %v335
    %1542 = vmatpush1.msra.mxu0 %v334
    %1543 = vmatprep.subr.mxu0 %v339
    %1544 = vmatpush1.msra.mxu0 %v338
    %1545 = vmatprep.subr.mxu0 %v343
    %1546 = vmatpush1.msra.mxu0 %v342
    %1547 = vmatprep.subr.mxu0 %v347
    %1548 = vmatpush1.msra.mxu0 %v346
    %1549 = vmatprep.subr.mxu0 %v351
    %1550 = vmatpush1.msra.mxu0 %v350
    %1551 = vmatprep.subr.mxu0 0.0
    %1552 = vmatpush1.msra.mxu0 0.0
    %1553 = vmatprep.subr.mxu0 0.0
    %1554 = vmatpush1.msra.mxu0 0.0
    %1555 = vmatprep.subr.mxu0 0.0
    %1556 = vmatpush1.msra.mxu0 0.0
    %1557 = vmatprep.subr.mxu0 0.0
    %1558 = vmatpush1.msra.mxu0 0.0
    %1559 = vmatprep.subr.mxu0 0.0
    %1560 = vmatpush1.msra.mxu0 0.0
    %1561 = vmatprep.subr.mxu0 0.0
    %1562 = vmatpush1.msra.mxu0 0.0
    %1563 = vmatprep.subr.mxu0 0.0
    %1564 = vmatpush1.msra.mxu0 0.0
    %1565 = vmatprep.subr.mxu0 0.0
    %1566 = vmatpush1.msra.mxu0 0.0
    %1567 = vmatprep.subr.mxu0 0.0
    %1568 = vmatpush1.msra.mxu0 0.0
    %1569 = vmatprep.subr.mxu0 0.0
    %1570 = vmatpush1.msra.mxu0 0.0
    %1571 = vmatprep.subr.mxu0 0.0
    %1572 = vmatpush1.msra.mxu0 0.0
    %1573 = vmatprep.subr.mxu0 0.0
    %1574 = vmatpush1.msra.mxu0 0.0
    %1575 = vmatprep.subr.mxu0 0.0
    %1576 = vmatpush1.msra.mxu0 0.0
    %1577 = vmatprep.subr.mxu0 0.0
    %1578 = vmatpush1.msra.mxu0 0.0
    %1579 = vmatprep.subr.mxu0 0.0
    %1580 = vmatpush1.msra.mxu0 0.0
    %1581 = vmatprep.subr.mxu0 0.0
    %1582 = vmatpush1.msra.mxu0 0.0
    %1583 = vmatprep.mubr.f32.mxu0 0.0
    %1584 = vmatmul.mubr.f32.gmra.mrb[0].mxu0 %v1376
    %v1585 = vpop.f32.mrb[0].mxu0
    %v1586 = vadd.f32 %v1444, %v1585
    %v1587 = vpop.f32.mrb[0].mxu0
    %v1588 = vadd.f32 %v1446, %v1587
    %1589 = vdwg.mxu0
    %1590 = vmatprep.subr.mxu0 %v293
    %1591 = vmatpush1.msra.mxu0 %v292
    %1592 = vmatprep.subr.mxu0 %v297
    %1593 = vmatpush1.msra.mxu0 %v296
    %1594 = vmatprep.subr.mxu0 %v301
    %1595 = vmatpush1.msra.mxu0 %v300
    %1596 = vmatprep.subr.mxu0 %v305
    %1597 = vmatpush1.msra.mxu0 %v304
    %1598 = vmatprep.subr.mxu0 %v309
    %1599 = vmatpush1.msra.mxu0 %v308
    %1600 = vmatprep.subr.mxu0 %v313
    %1601 = vmatpush1.msra.mxu0 %v312
    %1602 = vmatprep.subr.mxu0 %v317
    %1603 = vmatpush1.msra.mxu0 %v316
    %1604 = vmatprep.subr.mxu0 %v321
    %1605 = vmatpush1.msra.mxu0 %v320
    %1606 = vmatprep.subr.mxu0 %v325
    %1607 = vmatpush1.msra.mxu0 %v324
    %1608 = vmatprep.subr.mxu0 %v329
    %1609 = vmatpush1.msra.mxu0 %v328
    %1610 = vmatprep.subr.mxu0 %v333
    %1611 = vmatpush1.msra.mxu0 %v332
    %1612 = vmatprep.subr.mxu0 %v337
    %1613 = vmatpush1.msra.mxu0 %v336
    %1614 = vmatprep.subr.mxu0 %v341
    %1615 = vmatpush1.msra.mxu0 %v340
    %1616 = vmatprep.subr.mxu0 %v345
    %1617 = vmatpush1.msra.mxu0 %v344
    %1618 = vmatprep.subr.mxu0 %v349
    %1619 = vmatpush1.msra.mxu0 %v348
    %1620 = vmatprep.subr.mxu0 %v353
    %1621 = vmatpush1.msra.mxu0 %v352
    %1622 = vmatprep.subr.mxu0 0.0
    %1623 = vmatpush1.msra.mxu0 0.0
    %1624 = vmatprep.subr.mxu0 0.0
    %1625 = vmatpush1.msra.mxu0 0.0
    %1626 = vmatprep.subr.mxu0 0.0
    %1627 = vmatpush1.msra.mxu0 0.0
    %1628 = vmatprep.subr.mxu0 0.0
    %1629 = vmatpush1.msra.mxu0 0.0
    %1630 = vmatprep.subr.mxu0 0.0
    %1631 = vmatpush1.msra.mxu0 0.0
    %1632 = vmatprep.subr.mxu0 0.0
    %1633 = vmatpush1.msra.mxu0 0.0
    %1634 = vmatprep.subr.mxu0 0.0
    %1635 = vmatpush1.msra.mxu0 0.0
    %1636 = vmatprep.subr.mxu0 0.0
    %1637 = vmatpush1.msra.mxu0 0.0
    %1638 = vmatprep.subr.mxu0 0.0
    %1639 = vmatpush1.msra.mxu0 0.0
    %1640 = vmatprep.subr.mxu0 0.0
    %1641 = vmatpush1.msra.mxu0 0.0
    %1642 = vmatprep.subr.mxu0 0.0
    %1643 = vmatpush1.msra.mxu0 0.0
    %1644 = vmatprep.subr.mxu0 0.0
    %1645 = vmatpush1.msra.mxu0 0.0
    %1646 = vmatprep.subr.mxu0 0.0
    %1647 = vmatpush1.msra.mxu0 0.0
    %1648 = vmatprep.subr.mxu0 0.0
    %1649 = vmatpush1.msra.mxu0 0.0
    %1650 = vmatprep.subr.mxu0 0.0
    %1651 = vmatpush1.msra.mxu0 0.0
    %1652 = vmatprep.subr.mxu0 0.0
    %1653 = vmatpush1.msra.mxu0 0.0
    %1654 = vmatprep.mubr.f32.mxu0 0.0
    %1655 = vmatmul.mubr.f32.gmra.mrb[0].mxu0 %v1376
    %v1656 = vpop.f32.mrb[0].mxu0
    %v1657 = vadd.f32 %v1515, %v1656
    %v1658 = vpop.f32.mrb[0].mxu0
    %v1659 = vadd.f32 %v1517, %v1658
    %1660 = vdwg.mxu0
    %v1661 = vadd.f32 %v1586, %v708
    %v1662 = vadd.f32 %v1588, %v712
    %v1663 = vadd.f32 %v1657, %v716
    %v1664 = vadd.f32 %v1659, %v720
    %v1665 = vxor.u32 %v1661, 2147483648
    %v1666 = vmul.f32 %v1665, 1.442695
    %v1667 = vpow.pop %v1666
    %v1668 = vadd.f32 %v1667, 1.0
    %v1669 = vrcp.pop %v1668
    %v1670 = vmul.f32 1.0, %v1669
    %v1671 = vxor.u32 %v1662, 2147483648
    %v1672 = vmul.f32 %v1671, 1.442695
    %v1673 = vpow.pop %v1672
    %v1674 = vadd.f32 %v1673, 1.0
    %v1675 = vrcp.pop %v1674
    %v1676 = vmul.f32 1.0, %v1675
    %v1677 = vtanh.pop %v1663
    %v1678 = vxor.u32 %v1664, 2147483648
    %v1679 = vmul.f32 %v1678, 1.442695
    %v1680 = vpow.pop %v1679
    %v1681 = vadd.f32 %v1680, 1.0
    %v1682 = vrcp.pop %v1681
    %v1683 = vmul.f32 1.0, %v1682
    %v1684 = vmul.f32 %v1676, %v1204
    %v1685 = vmul.f32 %v1670, %v1677
    %v1686 = vadd.f32 %v1684, %v1685
    %v1687 = vtanh.pop %v1686
    %v1688 = vmul.f32 %v1683, %v1687
    %1689 = vmatprep.subr.mxu0 %v227
    %1690 = vmatpush1.msra.mxu0 %v226
    %1691 = vmatprep.subr.mxu0 %v231
    %1692 = vmatpush1.msra.mxu0 %v230
    %1693 = vmatprep.subr.mxu0 %v235
    %1694 = vmatpush1.msra.mxu0 %v234
    %1695 = vmatprep.subr.mxu0 %v239
    %1696 = vmatpush1.msra.mxu0 %v238
    %1697 = vmatprep.subr.mxu0 %v243
    %1698 = vmatpush1.msra.mxu0 %v242
    %1699 = vmatprep.subr.mxu0 %v247
    %1700 = vmatpush1.msra.mxu0 %v246
    %1701 = vmatprep.subr.mxu0 %v251
    %1702 = vmatpush1.msra.mxu0 %v250
    %1703 = vmatprep.subr.mxu0 %v255
    %1704 = vmatpush1.msra.mxu0 %v254
    %1705 = vmatprep.subr.mxu0 %v259
    %1706 = vmatpush1.msra.mxu0 %v258
    %1707 = vmatprep.subr.mxu0 %v263
    %1708 = vmatpush1.msra.mxu0 %v262
    %1709 = vmatprep.subr.mxu0 %v267
    %1710 = vmatpush1.msra.mxu0 %v266
    %1711 = vmatprep.subr.mxu0 %v271
    %1712 = vmatpush1.msra.mxu0 %v270
    %1713 = vmatprep.subr.mxu0 %v275
    %1714 = vmatpush1.msra.mxu0 %v274
    %1715 = vmatprep.subr.mxu0 %v279
    %1716 = vmatpush1.msra.mxu0 %v278
    %1717 = vmatprep.subr.mxu0 %v283
    %1718 = vmatpush1.msra.mxu0 %v282
    %1719 = vmatprep.subr.mxu0 %v287
    %1720 = vmatpush1.msra.mxu0 %v286
    %1721 = vmatprep.subr.mxu0 0.0
    %1722 = vmatpush1.msra.mxu0 0.0
    %1723 = vmatprep.subr.mxu0 0.0
    %1724 = vmatpush1.msra.mxu0 0.0
    %1725 = vmatprep.subr.mxu0 0.0
    %1726 = vmatpush1.msra.mxu0 0.0
    %1727 = vmatprep.subr.mxu0 0.0
    %1728 = vmatpush1.msra.mxu0 0.0
    %1729 = vmatprep.subr.mxu0 0.0
    %1730 = vmatpush1.msra.mxu0 0.0
    %1731 = vmatprep.subr.mxu0 0.0
    %1732 = vmatpush1.msra.mxu0 0.0
    %1733 = vmatprep.subr.mxu0 0.0
    %1734 = vmatpush1.msra.mxu0 0.0
    %1735 = vmatprep.subr.mxu0 0.0
    %1736 = vmatpush1.msra.mxu0 0.0
    %1737 = vmatprep.subr.mxu0 0.0
    %1738 = vmatpush1.msra.mxu0 0.0
    %1739 = vmatprep.subr.mxu0 0.0
    %1740 = vmatpush1.msra.mxu0 0.0
    %1741 = vmatprep.subr.mxu0 0.0
    %1742 = vmatpush1.msra.mxu0 0.0
    %1743 = vmatprep.subr.mxu0 0.0
    %1744 = vmatpush1.msra.mxu0 0.0
    %1745 = vmatprep.subr.mxu0 0.0
    %1746 = vmatpush1.msra.mxu0 0.0
    %1747 = vmatprep.subr.mxu0 0.0
    %1748 = vmatpush1.msra.mxu0 0.0
    %1749 = vmatprep.subr.mxu0 0.0
    %1750 = vmatpush1.msra.mxu0 0.0
    %1751 = vmatprep.subr.mxu0 0.0
    %1752 = vmatpush1.msra.mxu0 0.0
    %1753 = vmatprep.mubr.f32.mxu0 0.0
    %1754 = vmatmul.mubr.f32.gmra.mrb[0].mxu0 %v1376
    %v1755 = vpop.f32.mrb[0].mxu0
    %v1756 = vadd.f32 0.0, %v1755
    %v1757 = vpop.f32.mrb[0].mxu0
    %v1758 = vadd.f32 0.0, %v1757
    %1759 = vdwg.mxu0
    %1760 = vmatprep.subr.mxu0 %v229
    %1761 = vmatpush1.msra.mxu0 %v228
    %1762 = vmatprep.subr.mxu0 %v233
    %1763 = vmatpush1.msra.mxu0 %v232
    %1764 = vmatprep.subr.mxu0 %v237
    %1765 = vmatpush1.msra.mxu0 %v236
    %1766 = vmatprep.subr.mxu0 %v241
    %1767 = vmatpush1.msra.mxu0 %v240
    %1768 = vmatprep.subr.mxu0 %v245
    %1769 = vmatpush1.msra.mxu0 %v244
    %1770 = vmatprep.subr.mxu0 %v249
    %1771 = vmatpush1.msra.mxu0 %v248
    %1772 = vmatprep.subr.mxu0 %v253
    %1773 = vmatpush1.msra.mxu0 %v252
    %1774 = vmatprep.subr.mxu0 %v257
    %1775 = vmatpush1.msra.mxu0 %v256
    %1776 = vmatprep.subr.mxu0 %v261
    %1777 = vmatpush1.msra.mxu0 %v260
    %1778 = vmatprep.subr.mxu0 %v265
    %1779 = vmatpush1.msra.mxu0 %v264
    %1780 = vmatprep.subr.mxu0 %v269
    %1781 = vmatpush1.msra.mxu0 %v268
    %1782 = vmatprep.subr.mxu0 %v273
    %1783 = vmatpush1.msra.mxu0 %v272
    %1784 = vmatprep.subr.mxu0 %v277
    %1785 = vmatpush1.msra.mxu0 %v276
    %1786 = vmatprep.subr.mxu0 %v281
    %1787 = vmatpush1.msra.mxu0 %v280
    %1788 = vmatprep.subr.mxu0 %v285
    %1789 = vmatpush1.msra.mxu0 %v284
    %1790 = vmatprep.subr.mxu0 %v289
    %1791 = vmatpush1.msra.mxu0 %v288
    %1792 = vmatprep.subr.mxu0 0.0
    %1793 = vmatpush1.msra.mxu0 0.0
    %1794 = vmatprep.subr.mxu0 0.0
    %1795 = vmatpush1.msra.mxu0 0.0
    %1796 = vmatprep.subr.mxu0 0.0
    %1797 = vmatpush1.msra.mxu0 0.0
    %1798 = vmatprep.subr.mxu0 0.0
    %1799 = vmatpush1.msra.mxu0 0.0
    %1800 = vmatprep.subr.mxu0 0.0
    %1801 = vmatpush1.msra.mxu0 0.0
    %1802 = vmatprep.subr.mxu0 0.0
    %1803 = vmatpush1.msra.mxu0 0.0
    %1804 = vmatprep.subr.mxu0 0.0
    %1805 = vmatpush1.msra.mxu0 0.0
    %1806 = vmatprep.subr.mxu0 0.0
    %1807 = vmatpush1.msra.mxu0 0.0
    %1808 = vmatprep.subr.mxu0 0.0
    %1809 = vmatpush1.msra.mxu0 0.0
    %1810 = vmatprep.subr.mxu0 0.0
    %1811 = vmatpush1.msra.mxu0 0.0
    %1812 = vmatprep.subr.mxu0 0.0
    %1813 = vmatpush1.msra.mxu0 0.0
    %1814 = vmatprep.subr.mxu0 0.0
    %1815 = vmatpush1.msra.mxu0 0.0
    %1816 = vmatprep.subr.mxu0 0.0
    %1817 = vmatpush1.msra.mxu0 0.0
    %1818 = vmatprep.subr.mxu0 0.0
    %1819 = vmatpush1.msra.mxu0 0.0
    %1820 = vmatprep.subr.mxu0 0.0
    %1821 = vmatpush1.msra.mxu0 0.0
    %1822 = vmatprep.subr.mxu0 0.0
    %1823 = vmatpush1.msra.mxu0 0.0
    %1824 = vmatprep.mubr.f32.mxu0 0.0
    %1825 = vmatmul.mubr.f32.gmra.mrb[0].mxu0 %v1376
    %v1826 = vpop.f32.mrb[0].mxu0
    %v1827 = vadd.f32 0.0, %v1826
    %v1828 = vpop.f32.mrb[0].mxu0
    %v1829 = vadd.f32 0.0, %v1828
    %1830 = vdwg.mxu0
    %v1831 = vadd.f32 %v556, %v1756
    %v1832 = vadd.f32 %v558, %v1758
    %v1833 = vadd.f32 %v669, %v1827
    %v1834 = vadd.f32 %v671, %v1829
    %v1835 = vxor.u32 %v1831, 2147483648
    %v1836 = vmul.f32 %v1835, 1.442695
    %v1837 = vpow.pop %v1836
    %v1838 = vadd.f32 %v1837, 1.0
    %v1839 = vrcp.pop %v1838
    %v1840 = vmul.f32 1.0, %v1839
    %v1841 = vxor.u32 %v1832, 2147483648
    %v1842 = vmul.f32 %v1841, 1.442695
    %v1843 = vpow.pop %v1842
    %v1844 = vadd.f32 %v1843, 1.0
    %v1845 = vrcp.pop %v1844
    %v1846 = vmul.f32 1.0, %v1845
    %v1847 = vtanh.pop %v1833
    %v1848 = vxor.u32 %v1834, 2147483648
    %v1849 = vmul.f32 %v1848, 1.442695
    %v1850 = vpow.pop %v1849
    %v1851 = vadd.f32 %v1850, 1.0
    %v1852 = vrcp.pop %v1851
    %v1853 = vmul.f32 1.0, %v1852
    %v1854 = vmul.f32 %v1846, %v1374
    %v1855 = vmul.f32 %v1840, %v1847
    %v1856 = vadd.f32 %v1854, %v1855
    %v1857 = vtanh.pop %v1856
    %v1858 = vmul.f32 %v1853, %v1857
    %1859 = vmatprep.subr.mxu0 %v355
    %1860 = vmatpush1.msra.mxu0 %v354
    %1861 = vmatprep.subr.mxu0 %v359
    %1862 = vmatpush1.msra.mxu0 %v358
    %1863 = vmatprep.subr.mxu0 %v363
    %1864 = vmatpush1.msra.mxu0 %v362
    %1865 = vmatprep.subr.mxu0 %v367
    %1866 = vmatpush1.msra.mxu0 %v366
    %1867 = vmatprep.subr.mxu0 %v371
    %1868 = vmatpush1.msra.mxu0 %v370
    %1869 = vmatprep.subr.mxu0 %v375
    %1870 = vmatpush1.msra.mxu0 %v374
    %1871 = vmatprep.subr.mxu0 %v379
    %1872 = vmatpush1.msra.mxu0 %v378
    %1873 = vmatprep.subr.mxu0 %v383
    %1874 = vmatpush1.msra.mxu0 %v382
    %1875 = vmatprep.subr.mxu0 %v387
    %1876 = vmatpush1.msra.mxu0 %v386
    %1877 = vmatprep.subr.mxu0 %v391
    %1878 = vmatpush1.msra.mxu0 %v390
    %1879 = vmatprep.subr.mxu0 %v395
    %1880 = vmatpush1.msra.mxu0 %v394
    %1881 = vmatprep.subr.mxu0 %v399
    %1882 = vmatpush1.msra.mxu0 %v398
    %1883 = vmatprep.subr.mxu0 %v403
    %1884 = vmatpush1.msra.mxu0 %v402
    %1885 = vmatprep.subr.mxu0 %v407
    %1886 = vmatpush1.msra.mxu0 %v406
    %1887 = vmatprep.subr.mxu0 %v411
    %1888 = vmatpush1.msra.mxu0 %v410
    %1889 = vmatprep.subr.mxu0 %v415
    %1890 = vmatpush1.msra.mxu0 %v414
    %1891 = vmatprep.subr.mxu0 0.0
    %1892 = vmatpush1.msra.mxu0 0.0
    %1893 = vmatprep.subr.mxu0 0.0
    %1894 = vmatpush1.msra.mxu0 0.0
    %1895 = vmatprep.subr.mxu0 0.0
    %1896 = vmatpush1.msra.mxu0 0.0
    %1897 = vmatprep.subr.mxu0 0.0
    %1898 = vmatpush1.msra.mxu0 0.0
    %1899 = vmatprep.subr.mxu0 0.0
    %1900 = vmatpush1.msra.mxu0 0.0
    %1901 = vmatprep.subr.mxu0 0.0
    %1902 = vmatpush1.msra.mxu0 0.0
    %1903 = vmatprep.subr.mxu0 0.0
    %1904 = vmatpush1.msra.mxu0 0.0
    %1905 = vmatprep.subr.mxu0 0.0
    %1906 = vmatpush1.msra.mxu0 0.0
    %1907 = vmatprep.subr.mxu0 0.0
    %1908 = vmatpush1.msra.mxu0 0.0
    %1909 = vmatprep.subr.mxu0 0.0
    %1910 = vmatpush1.msra.mxu0 0.0
    %1911 = vmatprep.subr.mxu0 0.0
    %1912 = vmatpush1.msra.mxu0 0.0
    %1913 = vmatprep.subr.mxu0 0.0
    %1914 = vmatpush1.msra.mxu0 0.0
    %1915 = vmatprep.subr.mxu0 0.0
    %1916 = vmatpush1.msra.mxu0 0.0
    %1917 = vmatprep.subr.mxu0 0.0
    %1918 = vmatpush1.msra.mxu0 0.0
    %1919 = vmatprep.subr.mxu0 0.0
    %1920 = vmatpush1.msra.mxu0 0.0
    %1921 = vmatprep.subr.mxu0 0.0
    %1922 = vmatpush1.msra.mxu0 0.0
    %1923 = vmatprep.mubr.f32.mxu0 0.0
    %1924 = vmatmul.mubr.f32.gmra.mrb[0].mxu0 %v1688
    %v1925 = vpop.f32.mrb[0].mxu0
    %v1926 = vadd.f32 0.0, %v1925
    %v1927 = vpop.f32.mrb[0].mxu0
    %v1928 = vadd.f32 0.0, %v1927
    %1929 = vdwg.mxu0
    %1930 = vmatprep.subr.mxu0 %v357
    %1931 = vmatpush1.msra.mxu0 %v356
    %1932 = vmatprep.subr.mxu0 %v361
    %1933 = vmatpush1.msra.mxu0 %v360
    %1934 = vmatprep.subr.mxu0 %v365
    %1935 = vmatpush1.msra.mxu0 %v364
    %1936 = vmatprep.subr.mxu0 %v369
    %1937 = vmatpush1.msra.mxu0 %v368
    %1938 = vmatprep.subr.mxu0 %v373
    %1939 = vmatpush1.msra.mxu0 %v372
    %1940 = vmatprep.subr.mxu0 %v377
    %1941 = vmatpush1.msra.mxu0 %v376
    %1942 = vmatprep.subr.mxu0 %v381
    %1943 = vmatpush1.msra.mxu0 %v380
    %1944 = vmatprep.subr.mxu0 %v385
    %1945 = vmatpush1.msra.mxu0 %v384
    %1946 = vmatprep.subr.mxu0 %v389
    %1947 = vmatpush1.msra.mxu0 %v388
    %1948 = vmatprep.subr.mxu0 %v393
    %1949 = vmatpush1.msra.mxu0 %v392
    %1950 = vmatprep.subr.mxu0 %v397
    %1951 = vmatpush1.msra.mxu0 %v396
    %1952 = vmatprep.subr.mxu0 %v401
    %1953 = vmatpush1.msra.mxu0 %v400
    %1954 = vmatprep.subr.mxu0 %v405
    %1955 = vmatpush1.msra.mxu0 %v404
    %1956 = vmatprep.subr.mxu0 %v409
    %1957 = vmatpush1.msra.mxu0 %v408
    %1958 = vmatprep.subr.mxu0 %v413
    %1959 = vmatpush1.msra.mxu0 %v412
    %1960 = vmatprep.subr.mxu0 %v417
    %1961 = vmatpush1.msra.mxu0 %v416
    %1962 = vmatprep.subr.mxu0 0.0
    %1963 = vmatpush1.msra.mxu0 0.0
    %1964 = vmatprep.subr.mxu0 0.0
    %1965 = vmatpush1.msra.mxu0 0.0
    %1966 = vmatprep.subr.mxu0 0.0
    %1967 = vmatpush1.msra.mxu0 0.0
    %1968 = vmatprep.subr.mxu0 0.0
    %1969 = vmatpush1.msra.mxu0 0.0
    %1970 = vmatprep.subr.mxu0 0.0
    %1971 = vmatpush1.msra.mxu0 0.0
    %1972 = vmatprep.subr.mxu0 0.0
    %1973 = vmatpush1.msra.mxu0 0.0
    %1974 = vmatprep.subr.mxu0 0.0
    %1975 = vmatpush1.msra.mxu0 0.0
    %1976 = vmatprep.subr.mxu0 0.0
    %1977 = vmatpush1.msra.mxu0 0.0
    %1978 = vmatprep.subr.mxu0 0.0
    %1979 = vmatpush1.msra.mxu0 0.0
    %1980 = vmatprep.subr.mxu0 0.0
    %1981 = vmatpush1.msra.mxu0 0.0
    %1982 = vmatprep.subr.mxu0 0.0
    %1983 = vmatpush1.msra.mxu0 0.0
    %1984 = vmatprep.subr.mxu0 0.0
    %1985 = vmatpush1.msra.mxu0 0.0
    %1986 = vmatprep.subr.mxu0 0.0
    %1987 = vmatpush1.msra.mxu0 0.0
    %1988 = vmatprep.subr.mxu0 0.0
    %1989 = vmatpush1.msra.mxu0 0.0
    %1990 = vmatprep.subr.mxu0 0.0
    %1991 = vmatpush1.msra.mxu0 0.0
    %1992 = vmatprep.subr.mxu0 0.0
    %1993 = vmatpush1.msra.mxu0 0.0
    %1994 = vmatprep.mubr.f32.mxu0 0.0
    %1995 = vmatmul.mubr.f32.gmra.mrb[0].mxu0 %v1688
    %v1996 = vpop.f32.mrb[0].mxu0
    %v1997 = vadd.f32 0.0, %v1996
    %v1998 = vpop.f32.mrb[0].mxu0
    %v1999 = vadd.f32 0.0, %v1998
    %2000 = vdwg.mxu0
    %2001 = vmatprep.subr.mxu0 %v291
    %2002 = vmatpush1.msra.mxu0 %v290
    %2003 = vmatprep.subr.mxu0 %v295
    %2004 = vmatpush1.msra.mxu0 %v294
    %2005 = vmatprep.subr.mxu0 %v299
    %2006 = vmatpush1.msra.mxu0 %v298
    %2007 = vmatprep.subr.mxu0 %v303
    %2008 = vmatpush1.msra.mxu0 %v302
    %2009 = vmatprep.subr.mxu0 %v307
    %2010 = vmatpush1.msra.mxu0 %v306
    %2011 = vmatprep.subr.mxu0 %v311
    %2012 = vmatpush1.msra.mxu0 %v310
    %2013 = vmatprep.subr.mxu0 %v315
    %2014 = vmatpush1.msra.mxu0 %v314
    %2015 = vmatprep.subr.mxu0 %v319
    %2016 = vmatpush1.msra.mxu0 %v318
    %2017 = vmatprep.subr.mxu0 %v323
    %2018 = vmatpush1.msra.mxu0 %v322
    %2019 = vmatprep.subr.mxu0 %v327
    %2020 = vmatpush1.msra.mxu0 %v326
    %2021 = vmatprep.subr.mxu0 %v331
    %2022 = vmatpush1.msra.mxu0 %v330
    %2023 = vmatprep.subr.mxu0 %v335
    %2024 = vmatpush1.msra.mxu0 %v334
    %2025 = vmatprep.subr.mxu0 %v339
    %2026 = vmatpush1.msra.mxu0 %v338
    %2027 = vmatprep.subr.mxu0 %v343
    %2028 = vmatpush1.msra.mxu0 %v342
    %2029 = vmatprep.subr.mxu0 %v347
    %2030 = vmatpush1.msra.mxu0 %v346
    %2031 = vmatprep.subr.mxu0 %v351
    %2032 = vmatpush1.msra.mxu0 %v350
    %2033 = vmatprep.subr.mxu0 0.0
    %2034 = vmatpush1.msra.mxu0 0.0
    %2035 = vmatprep.subr.mxu0 0.0
    %2036 = vmatpush1.msra.mxu0 0.0
    %2037 = vmatprep.subr.mxu0 0.0
    %2038 = vmatpush1.msra.mxu0 0.0
    %2039 = vmatprep.subr.mxu0 0.0
    %2040 = vmatpush1.msra.mxu0 0.0
    %2041 = vmatprep.subr.mxu0 0.0
    %2042 = vmatpush1.msra.mxu0 0.0
    %2043 = vmatprep.subr.mxu0 0.0
    %2044 = vmatpush1.msra.mxu0 0.0
    %2045 = vmatprep.subr.mxu0 0.0
    %2046 = vmatpush1.msra.mxu0 0.0
    %2047 = vmatprep.subr.mxu0 0.0
    %2048 = vmatpush1.msra.mxu0 0.0
    %2049 = vmatprep.subr.mxu0 0.0
    %2050 = vmatpush1.msra.mxu0 0.0
    %2051 = vmatprep.subr.mxu0 0.0
    %2052 = vmatpush1.msra.mxu0 0.0
    %2053 = vmatprep.subr.mxu0 0.0
    %2054 = vmatpush1.msra.mxu0 0.0
    %2055 = vmatprep.subr.mxu0 0.0
    %2056 = vmatpush1.msra.mxu0 0.0
    %2057 = vmatprep.subr.mxu0 0.0
    %2058 = vmatpush1.msra.mxu0 0.0
    %2059 = vmatprep.subr.mxu0 0.0
    %2060 = vmatpush1.msra.mxu0 0.0
    %2061 = vmatprep.subr.mxu0 0.0
    %2062 = vmatpush1.msra.mxu0 0.0
    %2063 = vmatprep.subr.mxu0 0.0
    %2064 = vmatpush1.msra.mxu0 0.0
    %2065 = vmatprep.mubr.f32.mxu0 0.0
    %2066 = vmatmul.mubr.f32.gmra.mrb[0].mxu0 %v1858
    %v2067 = vpop.f32.mrb[0].mxu0
    %v2068 = vadd.f32 %v1926, %v2067
    %v2069 = vpop.f32.mrb[0].mxu0
    %v2070 = vadd.f32 %v1928, %v2069
    %2071 = vdwg.mxu0
    %2072 = vmatprep.subr.mxu0 %v293
    %2073 = vmatpush1.msra.mxu0 %v292
    %2074 = vmatprep.subr.mxu0 %v297
    %2075 = vmatpush1.msra.mxu0 %v296
    %2076 = vmatprep.subr.mxu0 %v301
    %2077 = vmatpush1.msra.mxu0 %v300
    %2078 = vmatprep.subr.mxu0 %v305
    %2079 = vmatpush1.msra.mxu0 %v304
    %2080 = vmatprep.subr.mxu0 %v309
    %2081 = vmatpush1.msra.mxu0 %v308
    %2082 = vmatprep.subr.mxu0 %v313
    %2083 = vmatpush1.msra.mxu0 %v312
    %2084 = vmatprep.subr.mxu0 %v317
    %2085 = vmatpush1.msra.mxu0 %v316
    %2086 = vmatprep.subr.mxu0 %v321
    %2087 = vmatpush1.msra.mxu0 %v320
    %2088 = vmatprep.subr.mxu0 %v325
    %2089 = vmatpush1.msra.mxu0 %v324
    %2090 = vmatprep.subr.mxu0 %v329
    %2091 = vmatpush1.msra.mxu0 %v328
    %2092 = vmatprep.subr.mxu0 %v333
    %2093 = vmatpush1.msra.mxu0 %v332
    %2094 = vmatprep.subr.mxu0 %v337
    %2095 = vmatpush1.msra.mxu0 %v336
    %2096 = vmatprep.subr.mxu0 %v341
    %2097 = vmatpush1.msra.mxu0 %v340
    %2098 = vmatprep.subr.mxu0 %v345
    %2099 = vmatpush1.msra.mxu0 %v344
    %2100 = vmatprep.subr.mxu0 %v349
    %2101 = vmatpush1.msra.mxu0 %v348
    %2102 = vmatprep.subr.mxu0 %v353
    %2103 = vmatpush1.msra.mxu0 %v352
    %2104 = vmatprep.subr.mxu0 0.0
    %2105 = vmatpush1.msra.mxu0 0.0
    %2106 = vmatprep.subr.mxu0 0.0
    %2107 = vmatpush1.msra.mxu0 0.0
    %2108 = vmatprep.subr.mxu0 0.0
    %2109 = vmatpush1.msra.mxu0 0.0
    %2110 = vmatprep.subr.mxu0 0.0
    %2111 = vmatpush1.msra.mxu0 0.0
    %2112 = vmatprep.subr.mxu0 0.0
    %2113 = vmatpush1.msra.mxu0 0.0
    %2114 = vmatprep.subr.mxu0 0.0
    %2115 = vmatpush1.msra.mxu0 0.0
    %2116 = vmatprep.subr.mxu0 0.0
    %2117 = vmatpush1.msra.mxu0 0.0
    %2118 = vmatprep.subr.mxu0 0.0
    %2119 = vmatpush1.msra.mxu0 0.0
    %2120 = vmatprep.subr.mxu0 0.0
    %2121 = vmatpush1.msra.mxu0 0.0
    %2122 = vmatprep.subr.mxu0 0.0
    %2123 = vmatpush1.msra.mxu0 0.0
    %2124 = vmatprep.subr.mxu0 0.0
    %2125 = vmatpush1.msra.mxu0 0.0
    %2126 = vmatprep.subr.mxu0 0.0
    %2127 = vmatpush1.msra.mxu0 0.0
    %2128 = vmatprep.subr.mxu0 0.0
    %2129 = vmatpush1.msra.mxu0 0.0
    %2130 = vmatprep.subr.mxu0 0.0
    %2131 = vmatpush1.msra.mxu0 0.0
    %2132 = vmatprep.subr.mxu0 0.0
    %2133 = vmatpush1.msra.mxu0 0.0
    %2134 = vmatprep.subr.mxu0 0.0
    %2135 = vmatpush1.msra.mxu0 0.0
    %2136 = vmatprep.mubr.f32.mxu0 0.0
    %2137 = vmatmul.mubr.f32.gmra.mrb[0].mxu0 %v1858
    %v2138 = vpop.f32.mrb[0].mxu0
    %v2139 = vadd.f32 %v1997, %v2138
    %v2140 = vpop.f32.mrb[0].mxu0
    %v2141 = vadd.f32 %v1999, %v2140
    %2142 = vdwg.mxu0
    %v2143 = vadd.f32 %v2068, %v708
    %v2144 = vadd.f32 %v2070, %v712
    %v2145 = vadd.f32 %v2139, %v716
    %v2146 = vadd.f32 %v2141, %v720
    %v2147 = vxor.u32 %v2143, 2147483648
    %v2148 = vmul.f32 %v2147, 1.442695
    %v2149 = vpow.pop %v2148
    %v2150 = vadd.f32 %v2149, 1.0
    %v2151 = vrcp.pop %v2150
    %v2152 = vmul.f32 1.0, %v2151
    %v2153 = vxor.u32 %v2144, 2147483648
    %v2154 = vmul.f32 %v2153, 1.442695
    %v2155 = vpow.pop %v2154
    %v2156 = vadd.f32 %v2155, 1.0
    %v2157 = vrcp.pop %v2156
    %v2158 = vmul.f32 1.0, %v2157
    %v2159 = vtanh.pop %v2145
    %v2160 = vxor.u32 %v2146, 2147483648
    %v2161 = vmul.f32 %v2160, 1.442695
    %v2162 = vpow.pop %v2161
    %v2163 = vadd.f32 %v2162, 1.0
    %v2164 = vrcp.pop %v2163
    %v2165 = vmul.f32 1.0, %v2164
    %v2166 = vmul.f32 %v2158, %v1686
    %v2167 = vmul.f32 %v2152, %v2159
    %v2168 = vadd.f32 %v2166, %v2167
    %v2169 = vtanh.pop %v2168
    %v2170 = vmul.f32 %v2165, %v2169
    %2171 = vmatprep.subr.mxu0 %v227
    %2172 = vmatpush1.msra.mxu0 %v226
    %2173 = vmatprep.subr.mxu0 %v231
    %2174 = vmatpush1.msra.mxu0 %v230
    %2175 = vmatprep.subr.mxu0 %v235
    %2176 = vmatpush1.msra.mxu0 %v234
    %2177 = vmatprep.subr.mxu0 %v239
    %2178 = vmatpush1.msra.mxu0 %v238
    %2179 = vmatprep.subr.mxu0 %v243
    %2180 = vmatpush1.msra.mxu0 %v242
    %2181 = vmatprep.subr.mxu0 %v247
    %2182 = vmatpush1.msra.mxu0 %v246
    %2183 = vmatprep.subr.mxu0 %v251
    %2184 = vmatpush1.msra.mxu0 %v250
    %2185 = vmatprep.subr.mxu0 %v255
    %2186 = vmatpush1.msra.mxu0 %v254
    %2187 = vmatprep.subr.mxu0 %v259
    %2188 = vmatpush1.msra.mxu0 %v258
    %2189 = vmatprep.subr.mxu0 %v263
    %2190 = vmatpush1.msra.mxu0 %v262
    %2191 = vmatprep.subr.mxu0 %v267
    %2192 = vmatpush1.msra.mxu0 %v266
    %2193 = vmatprep.subr.mxu0 %v271
    %2194 = vmatpush1.msra.mxu0 %v270
    %2195 = vmatprep.subr.mxu0 %v275
    %2196 = vmatpush1.msra.mxu0 %v274
    %2197 = vmatprep.subr.mxu0 %v279
    %2198 = vmatpush1.msra.mxu0 %v278
    %2199 = vmatprep.subr.mxu0 %v283
    %2200 = vmatpush1.msra.mxu0 %v282
    %2201 = vmatprep.subr.mxu0 %v287
    %2202 = vmatpush1.msra.mxu0 %v286
    %2203 = vmatprep.subr.mxu0 0.0
    %2204 = vmatpush1.msra.mxu0 0.0
    %2205 = vmatprep.subr.mxu0 0.0
    %2206 = vmatpush1.msra.mxu0 0.0
    %2207 = vmatprep.subr.mxu0 0.0
    %2208 = vmatpush1.msra.mxu0 0.0
    %2209 = vmatprep.subr.mxu0 0.0
    %2210 = vmatpush1.msra.mxu0 0.0
    %2211 = vmatprep.subr.mxu0 0.0
    %2212 = vmatpush1.msra.mxu0 0.0
    %2213 = vmatprep.subr.mxu0 0.0
    %2214 = vmatpush1.msra.mxu0 0.0
    %2215 = vmatprep.subr.mxu0 0.0
    %2216 = vmatpush1.msra.mxu0 0.0
    %2217 = vmatprep.subr.mxu0 0.0
    %2218 = vmatpush1.msra.mxu0 0.0
    %2219 = vmatprep.subr.mxu0 0.0
    %2220 = vmatpush1.msra.mxu0 0.0
    %2221 = vmatprep.subr.mxu0 0.0
    %2222 = vmatpush1.msra.mxu0 0.0
    %2223 = vmatprep.subr.mxu0 0.0
    %2224 = vmatpush1.msra.mxu0 0.0
    %2225 = vmatprep.subr.mxu0 0.0
    %2226 = vmatpush1.msra.mxu0 0.0
    %2227 = vmatprep.subr.mxu0 0.0
    %2228 = vmatpush1.msra.mxu0 0.0
    %2229 = vmatprep.subr.mxu0 0.0
    %2230 = vmatpush1.msra.mxu0 0.0
    %2231 = vmatprep.subr.mxu0 0.0
    %2232 = vmatpush1.msra.mxu0 0.0
    %2233 = vmatprep.subr.mxu0 0.0
    %2234 = vmatpush1.msra.mxu0 0.0
    %2235 = vmatprep.mubr.f32.mxu0 0.0
    %2236 = vmatmul.mubr.f32.gmra.mrb[0].mxu0 %v1858
    %v2237 = vpop.f32.mrb[0].mxu0
    %v2238 = vadd.f32 0.0, %v2237
    %v2239 = vpop.f32.mrb[0].mxu0
    %v2240 = vadd.f32 0.0, %v2239
    %2241 = vdwg.mxu0
    %2242 = vmatprep.subr.mxu0 %v229
    %2243 = vmatpush1.msra.mxu0 %v228
    %2244 = vmatprep.subr.mxu0 %v233
    %2245 = vmatpush1.msra.mxu0 %v232
    %2246 = vmatprep.subr.mxu0 %v237
    %2247 = vmatpush1.msra.mxu0 %v236
    %2248 = vmatprep.subr.mxu0 %v241
    %2249 = vmatpush1.msra.mxu0 %v240
    %2250 = vmatprep.subr.mxu0 %v245
    %2251 = vmatpush1.msra.mxu0 %v244
    %2252 = vmatprep.subr.mxu0 %v249
    %2253 = vmatpush1.msra.mxu0 %v248
    %2254 = vmatprep.subr.mxu0 %v253
    %2255 = vmatpush1.msra.mxu0 %v252
    %2256 = vmatprep.subr.mxu0 %v257
    %2257 = vmatpush1.msra.mxu0 %v256
    %2258 = vmatprep.subr.mxu0 %v261
    %2259 = vmatpush1.msra.mxu0 %v260
    %2260 = vmatprep.subr.mxu0 %v265
    %2261 = vmatpush1.msra.mxu0 %v264
    %2262 = vmatprep.subr.mxu0 %v269
    %2263 = vmatpush1.msra.mxu0 %v268
    %2264 = vmatprep.subr.mxu0 %v273
    %2265 = vmatpush1.msra.mxu0 %v272
    %2266 = vmatprep.subr.mxu0 %v277
    %2267 = vmatpush1.msra.mxu0 %v276
    %2268 = vmatprep.subr.mxu0 %v281
    %2269 = vmatpush1.msra.mxu0 %v280
    %2270 = vmatprep.subr.mxu0 %v285
    %2271 = vmatpush1.msra.mxu0 %v284
    %2272 = vmatprep.subr.mxu0 %v289
    %2273 = vmatpush1.msra.mxu0 %v288
    %2274 = vmatprep.subr.mxu0 0.0
    %2275 = vmatpush1.msra.mxu0 0.0
    %2276 = vmatprep.subr.mxu0 0.0
    %2277 = vmatpush1.msra.mxu0 0.0
    %2278 = vmatprep.subr.mxu0 0.0
    %2279 = vmatpush1.msra.mxu0 0.0
    %2280 = vmatprep.subr.mxu0 0.0
    %2281 = vmatpush1.msra.mxu0 0.0
    %2282 = vmatprep.subr.mxu0 0.0
    %2283 = vmatpush1.msra.mxu0 0.0
    %2284 = vmatprep.subr.mxu0 0.0
    %2285 = vmatpush1.msra.mxu0 0.0
    %2286 = vmatprep.subr.mxu0 0.0
    %2287 = vmatpush1.msra.mxu0 0.0
    %2288 = vmatprep.subr.mxu0 0.0
    %2289 = vmatpush1.msra.mxu0 0.0
    %2290 = vmatprep.subr.mxu0 0.0
    %2291 = vmatpush1.msra.mxu0 0.0
    %2292 = vmatprep.subr.mxu0 0.0
    %2293 = vmatpush1.msra.mxu0 0.0
    %2294 = vmatprep.subr.mxu0 0.0
    %2295 = vmatpush1.msra.mxu0 0.0
    %2296 = vmatprep.subr.mxu0 0.0
    %2297 = vmatpush1.msra.mxu0 0.0
    %2298 = vmatprep.subr.mxu0 0.0
    %2299 = vmatpush1.msra.mxu0 0.0
    %2300 = vmatprep.subr.mxu0 0.0
    %2301 = vmatpush1.msra.mxu0 0.0
    %2302 = vmatprep.subr.mxu0 0.0
    %2303 = vmatpush1.msra.mxu0 0.0
    %2304 = vmatprep.subr.mxu0 0.0
    %2305 = vmatpush1.msra.mxu0 0.0
    %2306 = vmatprep.mubr.f32.mxu0 0.0
    %2307 = vmatmul.mubr.f32.gmra.mrb[0].mxu0 %v1858
    %v2308 = vpop.f32.mrb[0].mxu0
    %v2309 = vadd.f32 0.0, %v2308
    %v2310 = vpop.f32.mrb[0].mxu0
    %v2311 = vadd.f32 0.0, %v2310
    %2312 = vdwg.mxu0
    %v2313 = vadd.f32 %v562, %v2238
    %v2314 = vadd.f32 %v564, %v2240
    %v2315 = vadd.f32 %v675, %v2309
    %v2316 = vadd.f32 %v677, %v2311
    %v2317 = vxor.u32 %v2313, 2147483648
    %v2318 = vmul.f32 %v2317, 1.442695
    %v2319 = vpow.pop %v2318
    %v2320 = vadd.f32 %v2319, 1.0
    %v2321 = vrcp.pop %v2320
    %v2322 = vmul.f32 1.0, %v2321
    %v2323 = vxor.u32 %v2314, 2147483648
    %v2324 = vmul.f32 %v2323, 1.442695
    %v2325 = vpow.pop %v2324
    %v2326 = vadd.f32 %v2325, 1.0
    %v2327 = vrcp.pop %v2326
    %v2328 = vmul.f32 1.0, %v2327
    %v2329 = vtanh.pop %v2315
    %v2330 = vxor.u32 %v2316, 2147483648
    %v2331 = vmul.f32 %v2330, 1.442695
    %v2332 = vpow.pop %v2331
    %v2333 = vadd.f32 %v2332, 1.0
    %v2334 = vrcp.pop %v2333
    %v2335 = vmul.f32 1.0, %v2334
    %v2336 = vmul.f32 %v2328, %v1856
    %v2337 = vmul.f32 %v2322, %v2329
    %v2338 = vadd.f32 %v2336, %v2337
    %v2339 = vtanh.pop %v2338
    %v2340 = vmul.f32 %v2335, %v2339
    %2341 = vmatprep.subr.mxu0 %v355
    %2342 = vmatpush1.msra.mxu0 %v354
    %2343 = vmatprep.subr.mxu0 %v359
    %2344 = vmatpush1.msra.mxu0 %v358
    %2345 = vmatprep.subr.mxu0 %v363
    %2346 = vmatpush1.msra.mxu0 %v362
    %2347 = vmatprep.subr.mxu0 %v367
    %2348 = vmatpush1.msra.mxu0 %v366
    %2349 = vmatprep.subr.mxu0 %v371
    %2350 = vmatpush1.msra.mxu0 %v370
    %2351 = vmatprep.subr.mxu0 %v375
    %2352 = vmatpush1.msra.mxu0 %v374
    %2353 = vmatprep.subr.mxu0 %v379
    %2354 = vmatpush1.msra.mxu0 %v378
    %2355 = vmatprep.subr.mxu0 %v383
    %2356 = vmatpush1.msra.mxu0 %v382
    %2357 = vmatprep.subr.mxu0 %v387
    %2358 = vmatpush1.msra.mxu0 %v386
    %2359 = vmatprep.subr.mxu0 %v391
    %2360 = vmatpush1.msra.mxu0 %v390
    %2361 = vmatprep.subr.mxu0 %v395
    %2362 = vmatpush1.msra.mxu0 %v394
    %2363 = vmatprep.subr.mxu0 %v399
    %2364 = vmatpush1.msra.mxu0 %v398
    %2365 = vmatprep.subr.mxu0 %v403
    %2366 = vmatpush1.msra.mxu0 %v402
    %2367 = vmatprep.subr.mxu0 %v407
    %2368 = vmatpush1.msra.mxu0 %v406
    %2369 = vmatprep.subr.mxu0 %v411
    %2370 = vmatpush1.msra.mxu0 %v410
    %2371 = vmatprep.subr.mxu0 %v415
    %2372 = vmatpush1.msra.mxu0 %v414
    %2373 = vmatprep.subr.mxu0 0.0
    %2374 = vmatpush1.msra.mxu0 0.0
    %2375 = vmatprep.subr.mxu0 0.0
    %2376 = vmatpush1.msra.mxu0 0.0
    %2377 = vmatprep.subr.mxu0 0.0
    %2378 = vmatpush1.msra.mxu0 0.0
    %2379 = vmatprep.subr.mxu0 0.0
    %2380 = vmatpush1.msra.mxu0 0.0
    %2381 = vmatprep.subr.mxu0 0.0
    %2382 = vmatpush1.msra.mxu0 0.0
    %2383 = vmatprep.subr.mxu0 0.0
    %2384 = vmatpush1.msra.mxu0 0.0
    %2385 = vmatprep.subr.mxu0 0.0
    %2386 = vmatpush1.msra.mxu0 0.0
    %2387 = vmatprep.subr.mxu0 0.0
    %2388 = vmatpush1.msra.mxu0 0.0
    %2389 = vmatprep.subr.mxu0 0.0
    %2390 = vmatpush1.msra.mxu0 0.0
    %2391 = vmatprep.subr.mxu0 0.0
    %2392 = vmatpush1.msra.mxu0 0.0
    %2393 = vmatprep.subr.mxu0 0.0
    %2394 = vmatpush1.msra.mxu0 0.0
    %2395 = vmatprep.subr.mxu0 0.0
    %2396 = vmatpush1.msra.mxu0 0.0
    %2397 = vmatprep.subr.mxu0 0.0
    %2398 = vmatpush1.msra.mxu0 0.0
    %2399 = vmatprep.subr.mxu0 0.0
    %2400 = vmatpush1.msra.mxu0 0.0
    %2401 = vmatprep.subr.mxu0 0.0
    %2402 = vmatpush1.msra.mxu0 0.0
    %2403 = vmatprep.subr.mxu0 0.0
    %2404 = vmatpush1.msra.mxu0 0.0
    %2405 = vmatprep.mubr.f32.mxu0 0.0
    %2406 = vmatmul.mubr.f32.gmra.mrb[0].mxu0 %v2170
    %v2407 = vpop.f32.mrb[0].mxu0
    %v2408 = vadd.f32 0.0, %v2407
    %v2409 = vpop.f32.mrb[0].mxu0
    %v2410 = vadd.f32 0.0, %v2409
    %2411 = vdwg.mxu0
    %2412 = vmatprep.subr.mxu0 %v357
    %2413 = vmatpush1.msra.mxu0 %v356
    %2414 = vmatprep.subr.mxu0 %v361
    %2415 = vmatpush1.msra.mxu0 %v360
    %2416 = vmatprep.subr.mxu0 %v365
    %2417 = vmatpush1.msra.mxu0 %v364
    %2418 = vmatprep.subr.mxu0 %v369
    %2419 = vmatpush1.msra.mxu0 %v368
    %2420 = vmatprep.subr.mxu0 %v373
    %2421 = vmatpush1.msra.mxu0 %v372
    %2422 = vmatprep.subr.mxu0 %v377
    %2423 = vmatpush1.msra.mxu0 %v376
    %2424 = vmatprep.subr.mxu0 %v381
    %2425 = vmatpush1.msra.mxu0 %v380
    %2426 = vmatprep.subr.mxu0 %v385
    %2427 = vmatpush1.msra.mxu0 %v384
    %2428 = vmatprep.subr.mxu0 %v389
    %2429 = vmatpush1.msra.mxu0 %v388
    %2430 = vmatprep.subr.mxu0 %v393
    %2431 = vmatpush1.msra.mxu0 %v392
    %2432 = vmatprep.subr.mxu0 %v397
    %2433 = vmatpush1.msra.mxu0 %v396
    %2434 = vmatprep.subr.mxu0 %v401
    %2435 = vmatpush1.msra.mxu0 %v400
    %2436 = vmatprep.subr.mxu0 %v405
    %2437 = vmatpush1.msra.mxu0 %v404
    %2438 = vmatprep.subr.mxu0 %v409
    %2439 = vmatpush1.msra.mxu0 %v408
    %2440 = vmatprep.subr.mxu0 %v413
    %2441 = vmatpush1.msra.mxu0 %v412
    %2442 = vmatprep.subr.mxu0 %v417
    %2443 = vmatpush1.msra.mxu0 %v416
    %2444 = vmatprep.subr.mxu0 0.0
    %2445 = vmatpush1.msra.mxu0 0.0
    %2446 = vmatprep.subr.mxu0 0.0
    %2447 = vmatpush1.msra.mxu0 0.0
    %2448 = vmatprep.subr.mxu0 0.0
    %2449 = vmatpush1.msra.mxu0 0.0
    %2450 = vmatprep.subr.mxu0 0.0
    %2451 = vmatpush1.msra.mxu0 0.0
    %2452 = vmatprep.subr.mxu0 0.0
    %2453 = vmatpush1.msra.mxu0 0.0
    %2454 = vmatprep.subr.mxu0 0.0
    %2455 = vmatpush1.msra.mxu0 0.0
    %2456 = vmatprep.subr.mxu0 0.0
    %2457 = vmatpush1.msra.mxu0 0.0
    %2458 = vmatprep.subr.mxu0 0.0
    %2459 = vmatpush1.msra.mxu0 0.0
    %2460 = vmatprep.subr.mxu0 0.0
    %2461 = vmatpush1.msra.mxu0 0.0
    %2462 = vmatprep.subr.mxu0 0.0
    %2463 = vmatpush1.msra.mxu0 0.0
    %2464 = vmatprep.subr.mxu0 0.0
    %2465 = vmatpush1.msra.mxu0 0.0
    %2466 = vmatprep.subr.mxu0 0.0
    %2467 = vmatpush1.msra.mxu0 0.0
    %2468 = vmatprep.subr.mxu0 0.0
    %2469 = vmatpush1.msra.mxu0 0.0
    %2470 = vmatprep.subr.mxu0 0.0
    %2471 = vmatpush1.msra.mxu0 0.0
    %2472 = vmatprep.subr.mxu0 0.0
    %2473 = vmatpush1.msra.mxu0 0.0
    %2474 = vmatprep.subr.mxu0 0.0
    %2475 = vmatpush1.msra.mxu0 0.0
    %2476 = vmatprep.mubr.f32.mxu0 0.0
    %2477 = vmatmul.mubr.f32.gmra.mrb[0].mxu0 %v2170
    %v2478 = vpop.f32.mrb[0].mxu0
    %v2479 = vadd.f32 0.0, %v2478
    %v2480 = vpop.f32.mrb[0].mxu0
    %v2481 = vadd.f32 0.0, %v2480
    %2482 = vdwg.mxu0
    %2483 = vmatprep.subr.mxu0 %v291
    %2484 = vmatpush1.msra.mxu0 %v290
    %2485 = vmatprep.subr.mxu0 %v295
    %2486 = vmatpush1.msra.mxu0 %v294
    %2487 = vmatprep.subr.mxu0 %v299
    %2488 = vmatpush1.msra.mxu0 %v298
    %2489 = vmatprep.subr.mxu0 %v303
    %2490 = vmatpush1.msra.mxu0 %v302
    %2491 = vmatprep.subr.mxu0 %v307
    %2492 = vmatpush1.msra.mxu0 %v306
    %2493 = vmatprep.subr.mxu0 %v311
    %2494 = vmatpush1.msra.mxu0 %v310
    %2495 = vmatprep.subr.mxu0 %v315
    %2496 = vmatpush1.msra.mxu0 %v314
    %2497 = vmatprep.subr.mxu0 %v319
    %2498 = vmatpush1.msra.mxu0 %v318
    %2499 = vmatprep.subr.mxu0 %v323
    %2500 = vmatpush1.msra.mxu0 %v322
    %2501 = vmatprep.subr.mxu0 %v327
    %2502 = vmatpush1.msra.mxu0 %v326
    %2503 = vmatprep.subr.mxu0 %v331
    %2504 = vmatpush1.msra.mxu0 %v330
    %2505 = vmatprep.subr.mxu0 %v335
    %2506 = vmatpush1.msra.mxu0 %v334
    %2507 = vmatprep.subr.mxu0 %v339
    %2508 = vmatpush1.msra.mxu0 %v338
    %2509 = vmatprep.subr.mxu0 %v343
    %2510 = vmatpush1.msra.mxu0 %v342
    %2511 = vmatprep.subr.mxu0 %v347
    %2512 = vmatpush1.msra.mxu0 %v346
    %2513 = vmatprep.subr.mxu0 %v351
    %2514 = vmatpush1.msra.mxu0 %v350
    %2515 = vmatprep.subr.mxu0 0.0
    %2516 = vmatpush1.msra.mxu0 0.0
    %2517 = vmatprep.subr.mxu0 0.0
    %2518 = vmatpush1.msra.mxu0 0.0
    %2519 = vmatprep.subr.mxu0 0.0
    %2520 = vmatpush1.msra.mxu0 0.0
    %2521 = vmatprep.subr.mxu0 0.0
    %2522 = vmatpush1.msra.mxu0 0.0
    %2523 = vmatprep.subr.mxu0 0.0
    %2524 = vmatpush1.msra.mxu0 0.0
    %2525 = vmatprep.subr.mxu0 0.0
    %2526 = vmatpush1.msra.mxu0 0.0
    %2527 = vmatprep.subr.mxu0 0.0
    %2528 = vmatpush1.msra.mxu0 0.0
    %2529 = vmatprep.subr.mxu0 0.0
    %2530 = vmatpush1.msra.mxu0 0.0
    %2531 = vmatprep.subr.mxu0 0.0
    %2532 = vmatpush1.msra.mxu0 0.0
    %2533 = vmatprep.subr.mxu0 0.0
    %2534 = vmatpush1.msra.mxu0 0.0
    %2535 = vmatprep.subr.mxu0 0.0
    %2536 = vmatpush1.msra.mxu0 0.0
    %2537 = vmatprep.subr.mxu0 0.0
    %2538 = vmatpush1.msra.mxu0 0.0
    %2539 = vmatprep.subr.mxu0 0.0
    %2540 = vmatpush1.msra.mxu0 0.0
    %2541 = vmatprep.subr.mxu0 0.0
    %2542 = vmatpush1.msra.mxu0 0.0
    %2543 = vmatprep.subr.mxu0 0.0
    %2544 = vmatpush1.msra.mxu0 0.0
    %2545 = vmatprep.subr.mxu0 0.0
    %2546 = vmatpush1.msra.mxu0 0.0
    %2547 = vmatprep.mubr.f32.mxu0 0.0
    %2548 = vmatmul.mubr.f32.gmra.mrb[0].mxu0 %v2340
    %v2549 = vpop.f32.mrb[0].mxu0
    %v2550 = vadd.f32 %v2408, %v2549
    %v2551 = vpop.f32.mrb[0].mxu0
    %v2552 = vadd.f32 %v2410, %v2551
    %2553 = vdwg.mxu0
    %2554 = vmatprep.subr.mxu0 %v293
    %2555 = vmatpush1.msra.mxu0 %v292
    %2556 = vmatprep.subr.mxu0 %v297
    %2557 = vmatpush1.msra.mxu0 %v296
    %2558 = vmatprep.subr.mxu0 %v301
    %2559 = vmatpush1.msra.mxu0 %v300
    %2560 = vmatprep.subr.mxu0 %v305
    %2561 = vmatpush1.msra.mxu0 %v304
    %2562 = vmatprep.subr.mxu0 %v309
    %2563 = vmatpush1.msra.mxu0 %v308
    %2564 = vmatprep.subr.mxu0 %v313
    %2565 = vmatpush1.msra.mxu0 %v312
    %2566 = vmatprep.subr.mxu0 %v317
    %2567 = vmatpush1.msra.mxu0 %v316
    %2568 = vmatprep.subr.mxu0 %v321
    %2569 = vmatpush1.msra.mxu0 %v320
    %2570 = vmatprep.subr.mxu0 %v325
    %2571 = vmatpush1.msra.mxu0 %v324
    %2572 = vmatprep.subr.mxu0 %v329
    %2573 = vmatpush1.msra.mxu0 %v328
    %2574 = vmatprep.subr.mxu0 %v333
    %2575 = vmatpush1.msra.mxu0 %v332
    %2576 = vmatprep.subr.mxu0 %v337
    %2577 = vmatpush1.msra.mxu0 %v336
    %2578 = vmatprep.subr.mxu0 %v341
    %2579 = vmatpush1.msra.mxu0 %v340
    %2580 = vmatprep.subr.mxu0 %v345
    %2581 = vmatpush1.msra.mxu0 %v344
    %2582 = vmatprep.subr.mxu0 %v349
    %2583 = vmatpush1.msra.mxu0 %v348
    %2584 = vmatprep.subr.mxu0 %v353
    %2585 = vmatpush1.msra.mxu0 %v352
    %2586 = vmatprep.subr.mxu0 0.0
    %2587 = vmatpush1.msra.mxu0 0.0
    %2588 = vmatprep.subr.mxu0 0.0
    %2589 = vmatpush1.msra.mxu0 0.0
    %2590 = vmatprep.subr.mxu0 0.0
    %2591 = vmatpush1.msra.mxu0 0.0
    %2592 = vmatprep.subr.mxu0 0.0
    %2593 = vmatpush1.msra.mxu0 0.0
    %2594 = vmatprep.subr.mxu0 0.0
    %2595 = vmatpush1.msra.mxu0 0.0
    %2596 = vmatprep.subr.mxu0 0.0
    %2597 = vmatpush1.msra.mxu0 0.0
    %2598 = vmatprep.subr.mxu0 0.0
    %2599 = vmatpush1.msra.mxu0 0.0
    %2600 = vmatprep.subr.mxu0 0.0
    %2601 = vmatpush1.msra.mxu0 0.0
    %2602 = vmatprep.subr.mxu0 0.0
    %2603 = vmatpush1.msra.mxu0 0.0
    %2604 = vmatprep.subr.mxu0 0.0
    %2605 = vmatpush1.msra.mxu0 0.0
    %2606 = vmatprep.subr.mxu0 0.0
    %2607 = vmatpush1.msra.mxu0 0.0
    %2608 = vmatprep.subr.mxu0 0.0
    %2609 = vmatpush1.msra.mxu0 0.0
    %2610 = vmatprep.subr.mxu0 0.0
    %2611 = vmatpush1.msra.mxu0 0.0
    %2612 = vmatprep.subr.mxu0 0.0
    %2613 = vmatpush1.msra.mxu0 0.0
    %2614 = vmatprep.subr.mxu0 0.0
    %2615 = vmatpush1.msra.mxu0 0.0
    %2616 = vmatprep.subr.mxu0 0.0
    %2617 = vmatpush1.msra.mxu0 0.0
    %2618 = vmatprep.mubr.f32.mxu0 0.0
    %2619 = vmatmul.mubr.f32.gmra.mrb[0].mxu0 %v2340
    %v2620 = vpop.f32.mrb[0].mxu0
    %v2621 = vadd.f32 %v2479, %v2620
    %v2622 = vpop.f32.mrb[0].mxu0
    %v2623 = vadd.f32 %v2481, %v2622
    %2624 = vdwg.mxu0
    %v2625 = vadd.f32 %v2550, %v708
    %v2626 = vadd.f32 %v2552, %v712
    %v2627 = vadd.f32 %v2621, %v716
    %v2628 = vadd.f32 %v2623, %v720
    %v2629 = vxor.u32 %v2625, 2147483648
    %v2630 = vmul.f32 %v2629, 1.442695
    %v2631 = vpow.pop %v2630
    %v2632 = vadd.f32 %v2631, 1.0
    %v2633 = vrcp.pop %v2632
    %v2634 = vmul.f32 1.0, %v2633
    %v2635 = vxor.u32 %v2626, 2147483648
    %v2636 = vmul.f32 %v2635, 1.442695
    %v2637 = vpow.pop %v2636
    %v2638 = vadd.f32 %v2637, 1.0
    %v2639 = vrcp.pop %v2638
    %v2640 = vmul.f32 1.0, %v2639
    %v2641 = vtanh.pop %v2627
    %v2642 = vxor.u32 %v2628, 2147483648
    %v2643 = vmul.f32 %v2642, 1.442695
    %v2644 = vpow.pop %v2643
    %v2645 = vadd.f32 %v2644, 1.0
    %v2646 = vrcp.pop %v2645
    %v2647 = vmul.f32 1.0, %v2646
    %v2648 = vmul.f32 %v2640, %v2168
    %v2649 = vmul.f32 %v2634, %v2641
    %v2650 = vadd.f32 %v2648, %v2649
    %v2651 = vtanh.pop %v2650
    %v2652 = vmul.f32 %v2647, %v2651
    %2653 = vmatprep.subr.mxu0 %v227
    %2654 = vmatpush1.msra.mxu0 %v226
    %2655 = vmatprep.subr.mxu0 %v231
    %2656 = vmatpush1.msra.mxu0 %v230
    %2657 = vmatprep.subr.mxu0 %v235
    %2658 = vmatpush1.msra.mxu0 %v234
    %2659 = vmatprep.subr.mxu0 %v239
    %2660 = vmatpush1.msra.mxu0 %v238
    %2661 = vmatprep.subr.mxu0 %v243
    %2662 = vmatpush1.msra.mxu0 %v242
    %2663 = vmatprep.subr.mxu0 %v247
    %2664 = vmatpush1.msra.mxu0 %v246
    %2665 = vmatprep.subr.mxu0 %v251
    %2666 = vmatpush1.msra.mxu0 %v250
    %2667 = vmatprep.subr.mxu0 %v255
    %2668 = vmatpush1.msra.mxu0 %v254
    %2669 = vmatprep.subr.mxu0 %v259
    %2670 = vmatpush1.msra.mxu0 %v258
    %2671 = vmatprep.subr.mxu0 %v263
    %2672 = vmatpush1.msra.mxu0 %v262
    %2673 = vmatprep.subr.mxu0 %v267
    %2674 = vmatpush1.msra.mxu0 %v266
    %2675 = vmatprep.subr.mxu0 %v271
    %2676 = vmatpush1.msra.mxu0 %v270
    %2677 = vmatprep.subr.mxu0 %v275
    %2678 = vmatpush1.msra.mxu0 %v274
    %2679 = vmatprep.subr.mxu0 %v279
    %2680 = vmatpush1.msra.mxu0 %v278
    %2681 = vmatprep.subr.mxu0 %v283
    %2682 = vmatpush1.msra.mxu0 %v282
    %2683 = vmatprep.subr.mxu0 %v287
    %2684 = vmatpush1.msra.mxu0 %v286
    %2685 = vmatprep.subr.mxu0 0.0
    %2686 = vmatpush1.msra.mxu0 0.0
    %2687 = vmatprep.subr.mxu0 0.0
    %2688 = vmatpush1.msra.mxu0 0.0
    %2689 = vmatprep.subr.mxu0 0.0
    %2690 = vmatpush1.msra.mxu0 0.0
    %2691 = vmatprep.subr.mxu0 0.0
    %2692 = vmatpush1.msra.mxu0 0.0
    %2693 = vmatprep.subr.mxu0 0.0
    %2694 = vmatpush1.msra.mxu0 0.0
    %2695 = vmatprep.subr.mxu0 0.0
    %2696 = vmatpush1.msra.mxu0 0.0
    %2697 = vmatprep.subr.mxu0 0.0
    %2698 = vmatpush1.msra.mxu0 0.0
    %2699 = vmatprep.subr.mxu0 0.0
    %2700 = vmatpush1.msra.mxu0 0.0
    %2701 = vmatprep.subr.mxu0 0.0
    %2702 = vmatpush1.msra.mxu0 0.0
    %2703 = vmatprep.subr.mxu0 0.0
    %2704 = vmatpush1.msra.mxu0 0.0
    %2705 = vmatprep.subr.mxu0 0.0
    %2706 = vmatpush1.msra.mxu0 0.0
    %2707 = vmatprep.subr.mxu0 0.0
    %2708 = vmatpush1.msra.mxu0 0.0
    %2709 = vmatprep.subr.mxu0 0.0
    %2710 = vmatpush1.msra.mxu0 0.0
    %2711 = vmatprep.subr.mxu0 0.0
    %2712 = vmatpush1.msra.mxu0 0.0
    %2713 = vmatprep.subr.mxu0 0.0
    %2714 = vmatpush1.msra.mxu0 0.0
    %2715 = vmatprep.subr.mxu0 0.0
    %2716 = vmatpush1.msra.mxu0 0.0
    %2717 = vmatprep.mubr.f32.mxu0 0.0
    %2718 = vmatmul.mubr.f32.gmra.mrb[0].mxu0 %v2340
    %v2719 = vpop.f32.mrb[0].mxu0
    %v2720 = vadd.f32 0.0, %v2719
    %v2721 = vpop.f32.mrb[0].mxu0
    %v2722 = vadd.f32 0.0, %v2721
    %2723 = vdwg.mxu0
    %2724 = vmatprep.subr.mxu0 %v229
    %2725 = vmatpush1.msra.mxu0 %v228
    %2726 = vmatprep.subr.mxu0 %v233
    %2727 = vmatpush1.msra.mxu0 %v232
    %2728 = vmatprep.subr.mxu0 %v237
    %2729 = vmatpush1.msra.mxu0 %v236
    %2730 = vmatprep.subr.mxu0 %v241
    %2731 = vmatpush1.msra.mxu0 %v240
    %2732 = vmatprep.subr.mxu0 %v245
    %2733 = vmatpush1.msra.mxu0 %v244
    %2734 = vmatprep.subr.mxu0 %v249
    %2735 = vmatpush1.msra.mxu0 %v248
    %2736 = vmatprep.subr.mxu0 %v253
    %2737 = vmatpush1.msra.mxu0 %v252
    %2738 = vmatprep.subr.mxu0 %v257
    %2739 = vmatpush1.msra.mxu0 %v256
    %2740 = vmatprep.subr.mxu0 %v261
    %2741 = vmatpush1.msra.mxu0 %v260
    %2742 = vmatprep.subr.mxu0 %v265
    %2743 = vmatpush1.msra.mxu0 %v264
    %2744 = vmatprep.subr.mxu0 %v269
    %2745 = vmatpush1.msra.mxu0 %v268
    %2746 = vmatprep.subr.mxu0 %v273
    %2747 = vmatpush1.msra.mxu0 %v272
    %2748 = vmatprep.subr.mxu0 %v277
    %2749 = vmatpush1.msra.mxu0 %v276
    %2750 = vmatprep.subr.mxu0 %v281
    %2751 = vmatpush1.msra.mxu0 %v280
    %2752 = vmatprep.subr.mxu0 %v285
    %2753 = vmatpush1.msra.mxu0 %v284
    %2754 = vmatprep.subr.mxu0 %v289
    %2755 = vmatpush1.msra.mxu0 %v288
    %2756 = vmatprep.subr.mxu0 0.0
    %2757 = vmatpush1.msra.mxu0 0.0
    %2758 = vmatprep.subr.mxu0 0.0
    %2759 = vmatpush1.msra.mxu0 0.0
    %2760 = vmatprep.subr.mxu0 0.0
    %2761 = vmatpush1.msra.mxu0 0.0
    %2762 = vmatprep.subr.mxu0 0.0
    %2763 = vmatpush1.msra.mxu0 0.0
    %2764 = vmatprep.subr.mxu0 0.0
    %2765 = vmatpush1.msra.mxu0 0.0
    %2766 = vmatprep.subr.mxu0 0.0
    %2767 = vmatpush1.msra.mxu0 0.0
    %2768 = vmatprep.subr.mxu0 0.0
    %2769 = vmatpush1.msra.mxu0 0.0
    %2770 = vmatprep.subr.mxu0 0.0
    %2771 = vmatpush1.msra.mxu0 0.0
    %2772 = vmatprep.subr.mxu0 0.0
    %2773 = vmatpush1.msra.mxu0 0.0
    %2774 = vmatprep.subr.mxu0 0.0
    %2775 = vmatpush1.msra.mxu0 0.0
    %2776 = vmatprep.subr.mxu0 0.0
    %2777 = vmatpush1.msra.mxu0 0.0
    %2778 = vmatprep.subr.mxu0 0.0
    %2779 = vmatpush1.msra.mxu0 0.0
    %2780 = vmatprep.subr.mxu0 0.0
    %2781 = vmatpush1.msra.mxu0 0.0
    %2782 = vmatprep.subr.mxu0 0.0
    %2783 = vmatpush1.msra.mxu0 0.0
    %2784 = vmatprep.subr.mxu0 0.0
    %2785 = vmatpush1.msra.mxu0 0.0
    %2786 = vmatprep.subr.mxu0 0.0
    %2787 = vmatpush1.msra.mxu0 0.0
    %2788 = vmatprep.mubr.f32.mxu0 0.0
    %2789 = vmatmul.mubr.f32.gmra.mrb[0].mxu0 %v2340
    %v2790 = vpop.f32.mrb[0].mxu0
    %v2791 = vadd.f32 0.0, %v2790
    %v2792 = vpop.f32.mrb[0].mxu0
    %v2793 = vadd.f32 0.0, %v2792
    %2794 = vdwg.mxu0
    %v2795 = vadd.f32 %v568, %v2720
    %v2796 = vadd.f32 %v570, %v2722
    %v2797 = vadd.f32 %v681, %v2791
    %v2798 = vadd.f32 %v683, %v2793
    %v2799 = vxor.u32 %v2795, 2147483648
    %v2800 = vmul.f32 %v2799, 1.442695
    %v2801 = vpow.pop %v2800
    %v2802 = vadd.f32 %v2801, 1.0
    %v2803 = vrcp.pop %v2802
    %v2804 = vmul.f32 1.0, %v2803
    %v2805 = vxor.u32 %v2796, 2147483648
    %v2806 = vmul.f32 %v2805, 1.442695
    %v2807 = vpow.pop %v2806
    %v2808 = vadd.f32 %v2807, 1.0
    %v2809 = vrcp.pop %v2808
    %v2810 = vmul.f32 1.0, %v2809
    %v2811 = vtanh.pop %v2797
    %v2812 = vxor.u32 %v2798, 2147483648
    %v2813 = vmul.f32 %v2812, 1.442695
    %v2814 = vpow.pop %v2813
    %v2815 = vadd.f32 %v2814, 1.0
    %v2816 = vrcp.pop %v2815
    %v2817 = vmul.f32 1.0, %v2816
    %v2818 = vmul.f32 %v2810, %v2338
    %v2819 = vmul.f32 %v2804, %v2811
    %v2820 = vadd.f32 %v2818, %v2819
    %v2821 = vtanh.pop %v2820
    %v2822 = vmul.f32 %v2817, %v2821
    %2823 = vmatprep.subr.mxu0 %v355
    %2824 = vmatpush1.msra.mxu0 %v354
    %2825 = vmatprep.subr.mxu0 %v359
    %2826 = vmatpush1.msra.mxu0 %v358
    %2827 = vmatprep.subr.mxu0 %v363
    %2828 = vmatpush1.msra.mxu0 %v362
    %2829 = vmatprep.subr.mxu0 %v367
    %2830 = vmatpush1.msra.mxu0 %v366
    %2831 = vmatprep.subr.mxu0 %v371
    %2832 = vmatpush1.msra.mxu0 %v370
    %2833 = vmatprep.subr.mxu0 %v375
    %2834 = vmatpush1.msra.mxu0 %v374
    %2835 = vmatprep.subr.mxu0 %v379
    %2836 = vmatpush1.msra.mxu0 %v378
    %2837 = vmatprep.subr.mxu0 %v383
    %2838 = vmatpush1.msra.mxu0 %v382
    %2839 = vmatprep.subr.mxu0 %v387
    %2840 = vmatpush1.msra.mxu0 %v386
    %2841 = vmatprep.subr.mxu0 %v391
    %2842 = vmatpush1.msra.mxu0 %v390
    %2843 = vmatprep.subr.mxu0 %v395
    %2844 = vmatpush1.msra.mxu0 %v394
    %2845 = vmatprep.subr.mxu0 %v399
    %2846 = vmatpush1.msra.mxu0 %v398
    %2847 = vmatprep.subr.mxu0 %v403
    %2848 = vmatpush1.msra.mxu0 %v402
    %2849 = vmatprep.subr.mxu0 %v407
    %2850 = vmatpush1.msra.mxu0 %v406
    %2851 = vmatprep.subr.mxu0 %v411
    %2852 = vmatpush1.msra.mxu0 %v410
    %2853 = vmatprep.subr.mxu0 %v415
    %2854 = vmatpush1.msra.mxu0 %v414
    %2855 = vmatprep.subr.mxu0 0.0
    %2856 = vmatpush1.msra.mxu0 0.0
    %2857 = vmatprep.subr.mxu0 0.0
    %2858 = vmatpush1.msra.mxu0 0.0
    %2859 = vmatprep.subr.mxu0 0.0
    %2860 = vmatpush1.msra.mxu0 0.0
    %2861 = vmatprep.subr.mxu0 0.0
    %2862 = vmatpush1.msra.mxu0 0.0
    %2863 = vmatprep.subr.mxu0 0.0
    %2864 = vmatpush1.msra.mxu0 0.0
    %2865 = vmatprep.subr.mxu0 0.0
    %2866 = vmatpush1.msra.mxu0 0.0
    %2867 = vmatprep.subr.mxu0 0.0
    %2868 = vmatpush1.msra.mxu0 0.0
    %2869 = vmatprep.subr.mxu0 0.0
    %2870 = vmatpush1.msra.mxu0 0.0
    %2871 = vmatprep.subr.mxu0 0.0
    %2872 = vmatpush1.msra.mxu0 0.0
    %2873 = vmatprep.subr.mxu0 0.0
    %2874 = vmatpush1.msra.mxu0 0.0
    %2875 = vmatprep.subr.mxu0 0.0
    %2876 = vmatpush1.msra.mxu0 0.0
    %2877 = vmatprep.subr.mxu0 0.0
    %2878 = vmatpush1.msra.mxu0 0.0
    %2879 = vmatprep.subr.mxu0 0.0
    %2880 = vmatpush1.msra.mxu0 0.0
    %2881 = vmatprep.subr.mxu0 0.0
    %2882 = vmatpush1.msra.mxu0 0.0
    %2883 = vmatprep.subr.mxu0 0.0
    %2884 = vmatpush1.msra.mxu0 0.0
    %2885 = vmatprep.subr.mxu0 0.0
    %2886 = vmatpush1.msra.mxu0 0.0
    %2887 = vmatprep.mubr.f32.mxu0 0.0
    %2888 = vmatmul.mubr.f32.gmra.mrb[0].mxu0 %v2652
    %v2889 = vpop.f32.mrb[0].mxu0
    %v2890 = vadd.f32 0.0, %v2889
    %v2891 = vpop.f32.mrb[0].mxu0
    %v2892 = vadd.f32 0.0, %v2891
    %2893 = vdwg.mxu0
    %2894 = vmatprep.subr.mxu0 %v357
    %2895 = vmatpush1.msra.mxu0 %v356
    %2896 = vmatprep.subr.mxu0 %v361
    %2897 = vmatpush1.msra.mxu0 %v360
    %2898 = vmatprep.subr.mxu0 %v365
    %2899 = vmatpush1.msra.mxu0 %v364
    %2900 = vmatprep.subr.mxu0 %v369
    %2901 = vmatpush1.msra.mxu0 %v368
    %2902 = vmatprep.subr.mxu0 %v373
    %2903 = vmatpush1.msra.mxu0 %v372
    %2904 = vmatprep.subr.mxu0 %v377
    %2905 = vmatpush1.msra.mxu0 %v376
    %2906 = vmatprep.subr.mxu0 %v381
    %2907 = vmatpush1.msra.mxu0 %v380
    %2908 = vmatprep.subr.mxu0 %v385
    %2909 = vmatpush1.msra.mxu0 %v384
    %2910 = vmatprep.subr.mxu0 %v389
    %2911 = vmatpush1.msra.mxu0 %v388
    %2912 = vmatprep.subr.mxu0 %v393
    %2913 = vmatpush1.msra.mxu0 %v392
    %2914 = vmatprep.subr.mxu0 %v397
    %2915 = vmatpush1.msra.mxu0 %v396
    %2916 = vmatprep.subr.mxu0 %v401
    %2917 = vmatpush1.msra.mxu0 %v400
    %2918 = vmatprep.subr.mxu0 %v405
    %2919 = vmatpush1.msra.mxu0 %v404
    %2920 = vmatprep.subr.mxu0 %v409
    %2921 = vmatpush1.msra.mxu0 %v408
    %2922 = vmatprep.subr.mxu0 %v413
    %2923 = vmatpush1.msra.mxu0 %v412
    %2924 = vmatprep.subr.mxu0 %v417
    %2925 = vmatpush1.msra.mxu0 %v416
    %2926 = vmatprep.subr.mxu0 0.0
    %2927 = vmatpush1.msra.mxu0 0.0
    %2928 = vmatprep.subr.mxu0 0.0
    %2929 = vmatpush1.msra.mxu0 0.0
    %2930 = vmatprep.subr.mxu0 0.0
    %2931 = vmatpush1.msra.mxu0 0.0
    %2932 = vmatprep.subr.mxu0 0.0
    %2933 = vmatpush1.msra.mxu0 0.0
    %2934 = vmatprep.subr.mxu0 0.0
    %2935 = vmatpush1.msra.mxu0 0.0
    %2936 = vmatprep.subr.mxu0 0.0
    %2937 = vmatpush1.msra.mxu0 0.0
    %2938 = vmatprep.subr.mxu0 0.0
    %2939 = vmatpush1.msra.mxu0 0.0
    %2940 = vmatprep.subr.mxu0 0.0
    %2941 = vmatpush1.msra.mxu0 0.0
    %2942 = vmatprep.subr.mxu0 0.0
    %2943 = vmatpush1.msra.mxu0 0.0
    %2944 = vmatprep.subr.mxu0 0.0
    %2945 = vmatpush1.msra.mxu0 0.0
    %2946 = vmatprep.subr.mxu0 0.0
    %2947 = vmatpush1.msra.mxu0 0.0
    %2948 = vmatprep.subr.mxu0 0.0
    %2949 = vmatpush1.msra.mxu0 0.0
    %2950 = vmatprep.subr.mxu0 0.0
    %2951 = vmatpush1.msra.mxu0 0.0
    %2952 = vmatprep.subr.mxu0 0.0
    %2953 = vmatpush1.msra.mxu0 0.0
    %2954 = vmatprep.subr.mxu0 0.0
    %2955 = vmatpush1.msra.mxu0 0.0
    %2956 = vmatprep.subr.mxu0 0.0
    %2957 = vmatpush1.msra.mxu0 0.0
    %2958 = vmatprep.mubr.f32.mxu0 0.0
    %2959 = vmatmul.mubr.f32.gmra.mrb[0].mxu0 %v2652
    %v2960 = vpop.f32.mrb[0].mxu0
    %v2961 = vadd.f32 0.0, %v2960
    %v2962 = vpop.f32.mrb[0].mxu0
    %v2963 = vadd.f32 0.0, %v2962
    %2964 = vdwg.mxu0
    %2965 = vmatprep.subr.mxu0 %v291
    %2966 = vmatpush1.msra.mxu0 %v290
    %2967 = vmatprep.subr.mxu0 %v295
    %2968 = vmatpush1.msra.mxu0 %v294
    %2969 = vmatprep.subr.mxu0 %v299
    %2970 = vmatpush1.msra.mxu0 %v298
    %2971 = vmatprep.subr.mxu0 %v303
    %2972 = vmatpush1.msra.mxu0 %v302
    %2973 = vmatprep.subr.mxu0 %v307
    %2974 = vmatpush1.msra.mxu0 %v306
    %2975 = vmatprep.subr.mxu0 %v311
    %2976 = vmatpush1.msra.mxu0 %v310
    %2977 = vmatprep.subr.mxu0 %v315
    %2978 = vmatpush1.msra.mxu0 %v314
    %2979 = vmatprep.subr.mxu0 %v319
    %2980 = vmatpush1.msra.mxu0 %v318
    %2981 = vmatprep.subr.mxu0 %v323
    %2982 = vmatpush1.msra.mxu0 %v322
    %2983 = vmatprep.subr.mxu0 %v327
    %2984 = vmatpush1.msra.mxu0 %v326
    %2985 = vmatprep.subr.mxu0 %v331
    %2986 = vmatpush1.msra.mxu0 %v330
    %2987 = vmatprep.subr.mxu0 %v335
    %2988 = vmatpush1.msra.mxu0 %v334
    %2989 = vmatprep.subr.mxu0 %v339
    %2990 = vmatpush1.msra.mxu0 %v338
    %2991 = vmatprep.subr.mxu0 %v343
    %2992 = vmatpush1.msra.mxu0 %v342
    %2993 = vmatprep.subr.mxu0 %v347
    %2994 = vmatpush1.msra.mxu0 %v346
    %2995 = vmatprep.subr.mxu0 %v351
    %2996 = vmatpush1.msra.mxu0 %v350
    %2997 = vmatprep.subr.mxu0 0.0
    %2998 = vmatpush1.msra.mxu0 0.0
    %2999 = vmatprep.subr.mxu0 0.0
    %3000 = vmatpush1.msra.mxu0 0.0
    %3001 = vmatprep.subr.mxu0 0.0
    %3002 = vmatpush1.msra.mxu0 0.0
    %3003 = vmatprep.subr.mxu0 0.0
    %3004 = vmatpush1.msra.mxu0 0.0
    %3005 = vmatprep.subr.mxu0 0.0
    %3006 = vmatpush1.msra.mxu0 0.0
    %3007 = vmatprep.subr.mxu0 0.0
    %3008 = vmatpush1.msra.mxu0 0.0
    %3009 = vmatprep.subr.mxu0 0.0
    %3010 = vmatpush1.msra.mxu0 0.0
    %3011 = vmatprep.subr.mxu0 0.0
    %3012 = vmatpush1.msra.mxu0 0.0
    %3013 = vmatprep.subr.mxu0 0.0
    %3014 = vmatpush1.msra.mxu0 0.0
    %3015 = vmatprep.subr.mxu0 0.0
    %3016 = vmatpush1.msra.mxu0 0.0
    %3017 = vmatprep.subr.mxu0 0.0
    %3018 = vmatpush1.msra.mxu0 0.0
    %3019 = vmatprep.subr.mxu0 0.0
    %3020 = vmatpush1.msra.mxu0 0.0
    %3021 = vmatprep.subr.mxu0 0.0
    %3022 = vmatpush1.msra.mxu0 0.0
    %3023 = vmatprep.subr.mxu0 0.0
    %3024 = vmatpush1.msra.mxu0 0.0
    %3025 = vmatprep.subr.mxu0 0.0
    %3026 = vmatpush1.msra.mxu0 0.0
    %3027 = vmatprep.subr.mxu0 0.0
    %3028 = vmatpush1.msra.mxu0 0.0
    %3029 = vmatprep.mubr.f32.mxu0 0.0
    %3030 = vmatmul.mubr.f32.gmra.mrb[0].mxu0 %v2822
    %v3031 = vpop.f32.mrb[0].mxu0
    %v3032 = vadd.f32 %v2890, %v3031
    %v3033 = vpop.f32.mrb[0].mxu0
    %v3034 = vadd.f32 %v2892, %v3033
    %3035 = vdwg.mxu0
    %3036 = vmatprep.subr.mxu0 %v293
    %3037 = vmatpush1.msra.mxu0 %v292
    %3038 = vmatprep.subr.mxu0 %v297
    %3039 = vmatpush1.msra.mxu0 %v296
    %3040 = vmatprep.subr.mxu0 %v301
    %3041 = vmatpush1.msra.mxu0 %v300
    %3042 = vmatprep.subr.mxu0 %v305
    %3043 = vmatpush1.msra.mxu0 %v304
    %3044 = vmatprep.subr.mxu0 %v309
    %3045 = vmatpush1.msra.mxu0 %v308
    %3046 = vmatprep.subr.mxu0 %v313
    %3047 = vmatpush1.msra.mxu0 %v312
    %3048 = vmatprep.subr.mxu0 %v317
    %3049 = vmatpush1.msra.mxu0 %v316
    %3050 = vmatprep.subr.mxu0 %v321
    %3051 = vmatpush1.msra.mxu0 %v320
    %3052 = vmatprep.subr.mxu0 %v325
    %3053 = vmatpush1.msra.mxu0 %v324
    %3054 = vmatprep.subr.mxu0 %v329
    %3055 = vmatpush1.msra.mxu0 %v328
    %3056 = vmatprep.subr.mxu0 %v333
    %3057 = vmatpush1.msra.mxu0 %v332
    %3058 = vmatprep.subr.mxu0 %v337
    %3059 = vmatpush1.msra.mxu0 %v336
    %3060 = vmatprep.subr.mxu0 %v341
    %3061 = vmatpush1.msra.mxu0 %v340
    %3062 = vmatprep.subr.mxu0 %v345
    %3063 = vmatpush1.msra.mxu0 %v344
    %3064 = vmatprep.subr.mxu0 %v349
    %3065 = vmatpush1.msra.mxu0 %v348
    %3066 = vmatprep.subr.mxu0 %v353
    %3067 = vmatpush1.msra.mxu0 %v352
    %3068 = vmatprep.subr.mxu0 0.0
    %3069 = vmatpush1.msra.mxu0 0.0
    %3070 = vmatprep.subr.mxu0 0.0
    %3071 = vmatpush1.msra.mxu0 0.0
    %3072 = vmatprep.subr.mxu0 0.0
    %3073 = vmatpush1.msra.mxu0 0.0
    %3074 = vmatprep.subr.mxu0 0.0
    %3075 = vmatpush1.msra.mxu0 0.0
    %3076 = vmatprep.subr.mxu0 0.0
    %3077 = vmatpush1.msra.mxu0 0.0
    %3078 = vmatprep.subr.mxu0 0.0
    %3079 = vmatpush1.msra.mxu0 0.0
    %3080 = vmatprep.subr.mxu0 0.0
    %3081 = vmatpush1.msra.mxu0 0.0
    %3082 = vmatprep.subr.mxu0 0.0
    %3083 = vmatpush1.msra.mxu0 0.0
    %3084 = vmatprep.subr.mxu0 0.0
    %3085 = vmatpush1.msra.mxu0 0.0
    %3086 = vmatprep.subr.mxu0 0.0
    %3087 = vmatpush1.msra.mxu0 0.0
    %3088 = vmatprep.subr.mxu0 0.0
    %3089 = vmatpush1.msra.mxu0 0.0
    %3090 = vmatprep.subr.mxu0 0.0
    %3091 = vmatpush1.msra.mxu0 0.0
    %3092 = vmatprep.subr.mxu0 0.0
    %3093 = vmatpush1.msra.mxu0 0.0
    %3094 = vmatprep.subr.mxu0 0.0
    %3095 = vmatpush1.msra.mxu0 0.0
    %3096 = vmatprep.subr.mxu0 0.0
    %3097 = vmatpush1.msra.mxu0 0.0
    %3098 = vmatprep.subr.mxu0 0.0
    %3099 = vmatpush1.msra.mxu0 0.0
    %3100 = vmatprep.mubr.f32.mxu0 0.0
    %3101 = vmatmul.mubr.f32.gmra.mrb[0].mxu0 %v2822
    %v3102 = vpop.f32.mrb[0].mxu0
    %v3103 = vadd.f32 %v2961, %v3102
    %v3104 = vpop.f32.mrb[0].mxu0
    %v3105 = vadd.f32 %v2963, %v3104
    %3106 = vdwg.mxu0
    %v3107 = vadd.f32 %v3032, %v708
    %v3108 = vadd.f32 %v3034, %v712
    %v3109 = vadd.f32 %v3103, %v716
    %v3110 = vadd.f32 %v3105, %v720
    %v3111 = vxor.u32 %v3107, 2147483648
    %v3112 = vmul.f32 %v3111, 1.442695
    %v3113 = vpow.pop %v3112
    %v3114 = vadd.f32 %v3113, 1.0
    %v3115 = vrcp.pop %v3114
    %v3116 = vmul.f32 1.0, %v3115
    %v3117 = vxor.u32 %v3108, 2147483648
    %v3118 = vmul.f32 %v3117, 1.442695
    %v3119 = vpow.pop %v3118
    %v3120 = vadd.f32 %v3119, 1.0
    %v3121 = vrcp.pop %v3120
    %v3122 = vmul.f32 1.0, %v3121
    %v3123 = vtanh.pop %v3109
    %v3124 = vxor.u32 %v3110, 2147483648
    %v3125 = vmul.f32 %v3124, 1.442695
    %v3126 = vpow.pop %v3125
    %v3127 = vadd.f32 %v3126, 1.0
    %v3128 = vrcp.pop %v3127
    %v3129 = vmul.f32 1.0, %v3128
    %v3130 = vmul.f32 %v3122, %v2650
    %v3131 = vmul.f32 %v3116, %v3123
    %v3132 = vadd.f32 %v3130, %v3131
    %v3133 = vtanh.pop %v3132
    %v3134 = vmul.f32 %v3129, %v3133
    %3135 = vmatprep.subr.mxu0 %v227
    %3136 = vmatpush1.msra.mxu0 %v226
    %3137 = vmatprep.subr.mxu0 %v231
    %3138 = vmatpush1.msra.mxu0 %v230
    %3139 = vmatprep.subr.mxu0 %v235
    %3140 = vmatpush1.msra.mxu0 %v234
    %3141 = vmatprep.subr.mxu0 %v239
    %3142 = vmatpush1.msra.mxu0 %v238
    %3143 = vmatprep.subr.mxu0 %v243
    %3144 = vmatpush1.msra.mxu0 %v242
    %3145 = vmatprep.subr.mxu0 %v247
    %3146 = vmatpush1.msra.mxu0 %v246
    %3147 = vmatprep.subr.mxu0 %v251
    %3148 = vmatpush1.msra.mxu0 %v250
    %3149 = vmatprep.subr.mxu0 %v255
    %3150 = vmatpush1.msra.mxu0 %v254
    %3151 = vmatprep.subr.mxu0 %v259
    %3152 = vmatpush1.msra.mxu0 %v258
    %3153 = vmatprep.subr.mxu0 %v263
    %3154 = vmatpush1.msra.mxu0 %v262
    %3155 = vmatprep.subr.mxu0 %v267
    %3156 = vmatpush1.msra.mxu0 %v266
    %3157 = vmatprep.subr.mxu0 %v271
    %3158 = vmatpush1.msra.mxu0 %v270
    %3159 = vmatprep.subr.mxu0 %v275
    %3160 = vmatpush1.msra.mxu0 %v274
    %3161 = vmatprep.subr.mxu0 %v279
    %3162 = vmatpush1.msra.mxu0 %v278
    %3163 = vmatprep.subr.mxu0 %v283
    %3164 = vmatpush1.msra.mxu0 %v282
    %3165 = vmatprep.subr.mxu0 %v287
    %3166 = vmatpush1.msra.mxu0 %v286
    %3167 = vmatprep.subr.mxu0 0.0
    %3168 = vmatpush1.msra.mxu0 0.0
    %3169 = vmatprep.subr.mxu0 0.0
    %3170 = vmatpush1.msra.mxu0 0.0
    %3171 = vmatprep.subr.mxu0 0.0
    %3172 = vmatpush1.msra.mxu0 0.0
    %3173 = vmatprep.subr.mxu0 0.0
    %3174 = vmatpush1.msra.mxu0 0.0
    %3175 = vmatprep.subr.mxu0 0.0
    %3176 = vmatpush1.msra.mxu0 0.0
    %3177 = vmatprep.subr.mxu0 0.0
    %3178 = vmatpush1.msra.mxu0 0.0
    %3179 = vmatprep.subr.mxu0 0.0
    %3180 = vmatpush1.msra.mxu0 0.0
    %3181 = vmatprep.subr.mxu0 0.0
    %3182 = vmatpush1.msra.mxu0 0.0
    %3183 = vmatprep.subr.mxu0 0.0
    %3184 = vmatpush1.msra.mxu0 0.0
    %3185 = vmatprep.subr.mxu0 0.0
    %3186 = vmatpush1.msra.mxu0 0.0
    %3187 = vmatprep.subr.mxu0 0.0
    %3188 = vmatpush1.msra.mxu0 0.0
    %3189 = vmatprep.subr.mxu0 0.0
    %3190 = vmatpush1.msra.mxu0 0.0
    %3191 = vmatprep.subr.mxu0 0.0
    %3192 = vmatpush1.msra.mxu0 0.0
    %3193 = vmatprep.subr.mxu0 0.0
    %3194 = vmatpush1.msra.mxu0 0.0
    %3195 = vmatprep.subr.mxu0 0.0
    %3196 = vmatpush1.msra.mxu0 0.0
    %3197 = vmatprep.subr.mxu0 0.0
    %3198 = vmatpush1.msra.mxu0 0.0
    %3199 = vmatprep.mubr.f32.mxu0 0.0
    %3200 = vmatmul.mubr.f32.gmra.mrb[0].mxu0 %v2822
    %v3201 = vpop.f32.mrb[0].mxu0
    %v3202 = vadd.f32 0.0, %v3201
    %v3203 = vpop.f32.mrb[0].mxu0
    %v3204 = vadd.f32 0.0, %v3203
    %3205 = vdwg.mxu0
    %3206 = vmatprep.subr.mxu0 %v229
    %3207 = vmatpush1.msra.mxu0 %v228
    %3208 = vmatprep.subr.mxu0 %v233
    %3209 = vmatpush1.msra.mxu0 %v232
    %3210 = vmatprep.subr.mxu0 %v237
    %3211 = vmatpush1.msra.mxu0 %v236
    %3212 = vmatprep.subr.mxu0 %v241
    %3213 = vmatpush1.msra.mxu0 %v240
    %3214 = vmatprep.subr.mxu0 %v245
    %3215 = vmatpush1.msra.mxu0 %v244
    %3216 = vmatprep.subr.mxu0 %v249
    %3217 = vmatpush1.msra.mxu0 %v248
    %3218 = vmatprep.subr.mxu0 %v253
    %3219 = vmatpush1.msra.mxu0 %v252
    %3220 = vmatprep.subr.mxu0 %v257
    %3221 = vmatpush1.msra.mxu0 %v256
    %3222 = vmatprep.subr.mxu0 %v261
    %3223 = vmatpush1.msra.mxu0 %v260
    %3224 = vmatprep.subr.mxu0 %v265
    %3225 = vmatpush1.msra.mxu0 %v264
    %3226 = vmatprep.subr.mxu0 %v269
    %3227 = vmatpush1.msra.mxu0 %v268
    %3228 = vmatprep.subr.mxu0 %v273
    %3229 = vmatpush1.msra.mxu0 %v272
    %3230 = vmatprep.subr.mxu0 %v277
    %3231 = vmatpush1.msra.mxu0 %v276
    %3232 = vmatprep.subr.mxu0 %v281
    %3233 = vmatpush1.msra.mxu0 %v280
    %3234 = vmatprep.subr.mxu0 %v285
    %3235 = vmatpush1.msra.mxu0 %v284
    %3236 = vmatprep.subr.mxu0 %v289
    %3237 = vmatpush1.msra.mxu0 %v288
    %3238 = vmatprep.subr.mxu0 0.0
    %3239 = vmatpush1.msra.mxu0 0.0
    %3240 = vmatprep.subr.mxu0 0.0
    %3241 = vmatpush1.msra.mxu0 0.0
    %3242 = vmatprep.subr.mxu0 0.0
    %3243 = vmatpush1.msra.mxu0 0.0
    %3244 = vmatprep.subr.mxu0 0.0
    %3245 = vmatpush1.msra.mxu0 0.0
    %3246 = vmatprep.subr.mxu0 0.0
    %3247 = vmatpush1.msra.mxu0 0.0
    %3248 = vmatprep.subr.mxu0 0.0
    %3249 = vmatpush1.msra.mxu0 0.0
    %3250 = vmatprep.subr.mxu0 0.0
    %3251 = vmatpush1.msra.mxu0 0.0
    %3252 = vmatprep.subr.mxu0 0.0
    %3253 = vmatpush1.msra.mxu0 0.0
    %3254 = vmatprep.subr.mxu0 0.0
    %3255 = vmatpush1.msra.mxu0 0.0
    %3256 = vmatprep.subr.mxu0 0.0
    %3257 = vmatpush1.msra.mxu0 0.0
    %3258 = vmatprep.subr.mxu0 0.0
    %3259 = vmatpush1.msra.mxu0 0.0
    %3260 = vmatprep.subr.mxu0 0.0
    %3261 = vmatpush1.msra.mxu0 0.0
    %3262 = vmatprep.subr.mxu0 0.0
    %3263 = vmatpush1.msra.mxu0 0.0
    %3264 = vmatprep.subr.mxu0 0.0
    %3265 = vmatpush1.msra.mxu0 0.0
    %3266 = vmatprep.subr.mxu0 0.0
    %3267 = vmatpush1.msra.mxu0 0.0
    %3268 = vmatprep.subr.mxu0 0.0
    %3269 = vmatpush1.msra.mxu0 0.0
    %3270 = vmatprep.mubr.f32.mxu0 0.0
    %3271 = vmatmul.mubr.f32.gmra.mrb[0].mxu0 %v2822
    %v3272 = vpop.f32.mrb[0].mxu0
    %v3273 = vadd.f32 0.0, %v3272
    %v3274 = vpop.f32.mrb[0].mxu0
    %v3275 = vadd.f32 0.0, %v3274
    %3276 = vdwg.mxu0
    %v3277 = vadd.f32 %v574, %v3202
    %v3278 = vadd.f32 %v576, %v3204
    %v3279 = vadd.f32 %v687, %v3273
    %v3280 = vadd.f32 %v689, %v3275
    %v3281 = vxor.u32 %v3277, 2147483648
    %v3282 = vmul.f32 %v3281, 1.442695
    %v3283 = vpow.pop %v3282
    %v3284 = vadd.f32 %v3283, 1.0
    %v3285 = vrcp.pop %v3284
    %v3286 = vmul.f32 1.0, %v3285
    %v3287 = vxor.u32 %v3278, 2147483648
    %v3288 = vmul.f32 %v3287, 1.442695
    %v3289 = vpow.pop %v3288
    %v3290 = vadd.f32 %v3289, 1.0
    %v3291 = vrcp.pop %v3290
    %v3292 = vmul.f32 1.0, %v3291
    %v3293 = vtanh.pop %v3279
    %v3294 = vxor.u32 %v3280, 2147483648
    %v3295 = vmul.f32 %v3294, 1.442695
    %v3296 = vpow.pop %v3295
    %v3297 = vadd.f32 %v3296, 1.0
    %v3298 = vrcp.pop %v3297
    %v3299 = vmul.f32 1.0, %v3298
    %v3300 = vmul.f32 %v3292, %v2820
    %v3301 = vmul.f32 %v3286, %v3293
    %v3302 = vadd.f32 %v3300, %v3301
    %v3303 = vtanh.pop %v3302
    %v3304 = vmul.f32 %v3299, %v3303
    %3305 = vmatprep.subr.mxu0 %v355
    %3306 = vmatpush1.msra.mxu0 %v354
    %3307 = vmatprep.subr.mxu0 %v359
    %3308 = vmatpush1.msra.mxu0 %v358
    %3309 = vmatprep.subr.mxu0 %v363
    %3310 = vmatpush1.msra.mxu0 %v362
    %3311 = vmatprep.subr.mxu0 %v367
    %3312 = vmatpush1.msra.mxu0 %v366
    %3313 = vmatprep.subr.mxu0 %v371
    %3314 = vmatpush1.msra.mxu0 %v370
    %3315 = vmatprep.subr.mxu0 %v375
    %3316 = vmatpush1.msra.mxu0 %v374
    %3317 = vmatprep.subr.mxu0 %v379
    %3318 = vmatpush1.msra.mxu0 %v378
    %3319 = vmatprep.subr.mxu0 %v383
    %3320 = vmatpush1.msra.mxu0 %v382
    %3321 = vmatprep.subr.mxu0 %v387
    %3322 = vmatpush1.msra.mxu0 %v386
    %3323 = vmatprep.subr.mxu0 %v391
    %3324 = vmatpush1.msra.mxu0 %v390
    %3325 = vmatprep.subr.mxu0 %v395
    %3326 = vmatpush1.msra.mxu0 %v394
    %3327 = vmatprep.subr.mxu0 %v399
    %3328 = vmatpush1.msra.mxu0 %v398
    %3329 = vmatprep.subr.mxu0 %v403
    %3330 = vmatpush1.msra.mxu0 %v402
    %3331 = vmatprep.subr.mxu0 %v407
    %3332 = vmatpush1.msra.mxu0 %v406
    %3333 = vmatprep.subr.mxu0 %v411
    %3334 = vmatpush1.msra.mxu0 %v410
    %3335 = vmatprep.subr.mxu0 %v415
    %3336 = vmatpush1.msra.mxu0 %v414
    %3337 = vmatprep.subr.mxu0 0.0
    %3338 = vmatpush1.msra.mxu0 0.0
    %3339 = vmatprep.subr.mxu0 0.0
    %3340 = vmatpush1.msra.mxu0 0.0
    %3341 = vmatprep.subr.mxu0 0.0
    %3342 = vmatpush1.msra.mxu0 0.0
    %3343 = vmatprep.subr.mxu0 0.0
    %3344 = vmatpush1.msra.mxu0 0.0
    %3345 = vmatprep.subr.mxu0 0.0
    %3346 = vmatpush1.msra.mxu0 0.0
    %3347 = vmatprep.subr.mxu0 0.0
    %3348 = vmatpush1.msra.mxu0 0.0
    %3349 = vmatprep.subr.mxu0 0.0
    %3350 = vmatpush1.msra.mxu0 0.0
    %3351 = vmatprep.subr.mxu0 0.0
    %3352 = vmatpush1.msra.mxu0 0.0
    %3353 = vmatprep.subr.mxu0 0.0
    %3354 = vmatpush1.msra.mxu0 0.0
    %3355 = vmatprep.subr.mxu0 0.0
    %3356 = vmatpush1.msra.mxu0 0.0
    %3357 = vmatprep.subr.mxu0 0.0
    %3358 = vmatpush1.msra.mxu0 0.0
    %3359 = vmatprep.subr.mxu0 0.0
    %3360 = vmatpush1.msra.mxu0 0.0
    %3361 = vmatprep.subr.mxu0 0.0
    %3362 = vmatpush1.msra.mxu0 0.0
    %3363 = vmatprep.subr.mxu0 0.0
    %3364 = vmatpush1.msra.mxu0 0.0
    %3365 = vmatprep.subr.mxu0 0.0
    %3366 = vmatpush1.msra.mxu0 0.0
    %3367 = vmatprep.subr.mxu0 0.0
    %3368 = vmatpush1.msra.mxu0 0.0
    %3369 = vmatprep.mubr.f32.mxu0 0.0
    %3370 = vmatmul.mubr.f32.gmra.mrb[0].mxu0 %v3134
    %v3371 = vpop.f32.mrb[0].mxu0
    %v3372 = vadd.f32 0.0, %v3371
    %v3373 = vpop.f32.mrb[0].mxu0
    %v3374 = vadd.f32 0.0, %v3373
    %3375 = vdwg.mxu0
    %3376 = vmatprep.subr.mxu0 %v357
    %3377 = vmatpush1.msra.mxu0 %v356
    %3378 = vmatprep.subr.mxu0 %v361
    %3379 = vmatpush1.msra.mxu0 %v360
    %3380 = vmatprep.subr.mxu0 %v365
    %3381 = vmatpush1.msra.mxu0 %v364
    %3382 = vmatprep.subr.mxu0 %v369
    %3383 = vmatpush1.msra.mxu0 %v368
    %3384 = vmatprep.subr.mxu0 %v373
    %3385 = vmatpush1.msra.mxu0 %v372
    %3386 = vmatprep.subr.mxu0 %v377
    %3387 = vmatpush1.msra.mxu0 %v376
    %3388 = vmatprep.subr.mxu0 %v381
    %3389 = vmatpush1.msra.mxu0 %v380
    %3390 = vmatprep.subr.mxu0 %v385
    %3391 = vmatpush1.msra.mxu0 %v384
    %3392 = vmatprep.subr.mxu0 %v389
    %3393 = vmatpush1.msra.mxu0 %v388
    %3394 = vmatprep.subr.mxu0 %v393
    %3395 = vmatpush1.msra.mxu0 %v392
    %3396 = vmatprep.subr.mxu0 %v397
    %3397 = vmatpush1.msra.mxu0 %v396
    %3398 = vmatprep.subr.mxu0 %v401
    %3399 = vmatpush1.msra.mxu0 %v400
    %3400 = vmatprep.subr.mxu0 %v405
    %3401 = vmatpush1.msra.mxu0 %v404
    %3402 = vmatprep.subr.mxu0 %v409
    %3403 = vmatpush1.msra.mxu0 %v408
    %3404 = vmatprep.subr.mxu0 %v413
    %3405 = vmatpush1.msra.mxu0 %v412
    %3406 = vmatprep.subr.mxu0 %v417
    %3407 = vmatpush1.msra.mxu0 %v416
    %3408 = vmatprep.subr.mxu0 0.0
    %3409 = vmatpush1.msra.mxu0 0.0
    %3410 = vmatprep.subr.mxu0 0.0
    %3411 = vmatpush1.msra.mxu0 0.0
    %3412 = vmatprep.subr.mxu0 0.0
    %3413 = vmatpush1.msra.mxu0 0.0
    %3414 = vmatprep.subr.mxu0 0.0
    %3415 = vmatpush1.msra.mxu0 0.0
    %3416 = vmatprep.subr.mxu0 0.0
    %3417 = vmatpush1.msra.mxu0 0.0
    %3418 = vmatprep.subr.mxu0 0.0
    %3419 = vmatpush1.msra.mxu0 0.0
    %3420 = vmatprep.subr.mxu0 0.0
    %3421 = vmatpush1.msra.mxu0 0.0
    %3422 = vmatprep.subr.mxu0 0.0
    %3423 = vmatpush1.msra.mxu0 0.0
    %3424 = vmatprep.subr.mxu0 0.0
    %3425 = vmatpush1.msra.mxu0 0.0
    %3426 = vmatprep.subr.mxu0 0.0
    %3427 = vmatpush1.msra.mxu0 0.0
    %3428 = vmatprep.subr.mxu0 0.0
    %3429 = vmatpush1.msra.mxu0 0.0
    %3430 = vmatprep.subr.mxu0 0.0
    %3431 = vmatpush1.msra.mxu0 0.0
    %3432 = vmatprep.subr.mxu0 0.0
    %3433 = vmatpush1.msra.mxu0 0.0
    %3434 = vmatprep.subr.mxu0 0.0
    %3435 = vmatpush1.msra.mxu0 0.0
    %3436 = vmatprep.subr.mxu0 0.0
    %3437 = vmatpush1.msra.mxu0 0.0
    %3438 = vmatprep.subr.mxu0 0.0
    %3439 = vmatpush1.msra.mxu0 0.0
    %3440 = vmatprep.mubr.f32.mxu0 0.0
    %3441 = vmatmul.mubr.f32.gmra.mrb[0].mxu0 %v3134
    %v3442 = vpop.f32.mrb[0].mxu0
    %v3443 = vadd.f32 0.0, %v3442
    %v3444 = vpop.f32.mrb[0].mxu0
    %v3445 = vadd.f32 0.0, %v3444
    %3446 = vdwg.mxu0
    %3447 = vmatprep.subr.mxu0 %v291
    %3448 = vmatpush1.msra.mxu0 %v290
    %3449 = vmatprep.subr.mxu0 %v295
    %3450 = vmatpush1.msra.mxu0 %v294
    %3451 = vmatprep.subr.mxu0 %v299
    %3452 = vmatpush1.msra.mxu0 %v298
    %3453 = vmatprep.subr.mxu0 %v303
    %3454 = vmatpush1.msra.mxu0 %v302
    %3455 = vmatprep.subr.mxu0 %v307
    %3456 = vmatpush1.msra.mxu0 %v306
    %3457 = vmatprep.subr.mxu0 %v311
    %3458 = vmatpush1.msra.mxu0 %v310
    %3459 = vmatprep.subr.mxu0 %v315
    %3460 = vmatpush1.msra.mxu0 %v314
    %3461 = vmatprep.subr.mxu0 %v319
    %3462 = vmatpush1.msra.mxu0 %v318
    %3463 = vmatprep.subr.mxu0 %v323
    %3464 = vmatpush1.msra.mxu0 %v322
    %3465 = vmatprep.subr.mxu0 %v327
    %3466 = vmatpush1.msra.mxu0 %v326
    %3467 = vmatprep.subr.mxu0 %v331
    %3468 = vmatpush1.msra.mxu0 %v330
    %3469 = vmatprep.subr.mxu0 %v335
    %3470 = vmatpush1.msra.mxu0 %v334
    %3471 = vmatprep.subr.mxu0 %v339
    %3472 = vmatpush1.msra.mxu0 %v338
    %3473 = vmatprep.subr.mxu0 %v343
    %3474 = vmatpush1.msra.mxu0 %v342
    %3475 = vmatprep.subr.mxu0 %v347
    %3476 = vmatpush1.msra.mxu0 %v346
    %3477 = vmatprep.subr.mxu0 %v351
    %3478 = vmatpush1.msra.mxu0 %v350
    %3479 = vmatprep.subr.mxu0 0.0
    %3480 = vmatpush1.msra.mxu0 0.0
    %3481 = vmatprep.subr.mxu0 0.0
    %3482 = vmatpush1.msra.mxu0 0.0
    %3483 = vmatprep.subr.mxu0 0.0
    %3484 = vmatpush1.msra.mxu0 0.0
    %3485 = vmatprep.subr.mxu0 0.0
    %3486 = vmatpush1.msra.mxu0 0.0
    %3487 = vmatprep.subr.mxu0 0.0
    %3488 = vmatpush1.msra.mxu0 0.0
    %3489 = vmatprep.subr.mxu0 0.0
    %3490 = vmatpush1.msra.mxu0 0.0
    %3491 = vmatprep.subr.mxu0 0.0
    %3492 = vmatpush1.msra.mxu0 0.0
    %3493 = vmatprep.subr.mxu0 0.0
    %3494 = vmatpush1.msra.mxu0 0.0
    %3495 = vmatprep.subr.mxu0 0.0
    %3496 = vmatpush1.msra.mxu0 0.0
    %3497 = vmatprep.subr.mxu0 0.0
    %3498 = vmatpush1.msra.mxu0 0.0
    %3499 = vmatprep.subr.mxu0 0.0
    %3500 = vmatpush1.msra.mxu0 0.0
    %3501 = vmatprep.subr.mxu0 0.0
    %3502 = vmatpush1.msra.mxu0 0.0
    %3503 = vmatprep.subr.mxu0 0.0
    %3504 = vmatpush1.msra.mxu0 0.0
    %3505 = vmatprep.subr.mxu0 0.0
    %3506 = vmatpush1.msra.mxu0 0.0
    %3507 = vmatprep.subr.mxu0 0.0
    %3508 = vmatpush1.msra.mxu0 0.0
    %3509 = vmatprep.subr.mxu0 0.0
    %3510 = vmatpush1.msra.mxu0 0.0
    %3511 = vmatprep.mubr.f32.mxu0 0.0
    %3512 = vmatmul.mubr.f32.gmra.mrb[0].mxu0 %v3304
    %v3513 = vpop.f32.mrb[0].mxu0
    %v3514 = vadd.f32 %v3372, %v3513
    %v3515 = vpop.f32.mrb[0].mxu0
    %v3516 = vadd.f32 %v3374, %v3515
    %3517 = vdwg.mxu0
    %3518 = vmatprep.subr.mxu0 %v293
    %3519 = vmatpush1.msra.mxu0 %v292
    %3520 = vmatprep.subr.mxu0 %v297
    %3521 = vmatpush1.msra.mxu0 %v296
    %3522 = vmatprep.subr.mxu0 %v301
    %3523 = vmatpush1.msra.mxu0 %v300
    %3524 = vmatprep.subr.mxu0 %v305
    %3525 = vmatpush1.msra.mxu0 %v304
    %3526 = vmatprep.subr.mxu0 %v309
    %3527 = vmatpush1.msra.mxu0 %v308
    %3528 = vmatprep.subr.mxu0 %v313
    %3529 = vmatpush1.msra.mxu0 %v312
    %3530 = vmatprep.subr.mxu0 %v317
    %3531 = vmatpush1.msra.mxu0 %v316
    %3532 = vmatprep.subr.mxu0 %v321
    %3533 = vmatpush1.msra.mxu0 %v320
    %3534 = vmatprep.subr.mxu0 %v325
    %3535 = vmatpush1.msra.mxu0 %v324
    %3536 = vmatprep.subr.mxu0 %v329
    %3537 = vmatpush1.msra.mxu0 %v328
    %3538 = vmatprep.subr.mxu0 %v333
    %3539 = vmatpush1.msra.mxu0 %v332
    %3540 = vmatprep.subr.mxu0 %v337
    %3541 = vmatpush1.msra.mxu0 %v336
    %3542 = vmatprep.subr.mxu0 %v341
    %3543 = vmatpush1.msra.mxu0 %v340
    %3544 = vmatprep.subr.mxu0 %v345
    %3545 = vmatpush1.msra.mxu0 %v344
    %3546 = vmatprep.subr.mxu0 %v349
    %3547 = vmatpush1.msra.mxu0 %v348
    %3548 = vmatprep.subr.mxu0 %v353
    %3549 = vmatpush1.msra.mxu0 %v352
    %3550 = vmatprep.subr.mxu0 0.0
    %3551 = vmatpush1.msra.mxu0 0.0
    %3552 = vmatprep.subr.mxu0 0.0
    %3553 = vmatpush1.msra.mxu0 0.0
    %3554 = vmatprep.subr.mxu0 0.0
    %3555 = vmatpush1.msra.mxu0 0.0
    %3556 = vmatprep.subr.mxu0 0.0
    %3557 = vmatpush1.msra.mxu0 0.0
    %3558 = vmatprep.subr.mxu0 0.0
    %3559 = vmatpush1.msra.mxu0 0.0
    %3560 = vmatprep.subr.mxu0 0.0
    %3561 = vmatpush1.msra.mxu0 0.0
    %3562 = vmatprep.subr.mxu0 0.0
    %3563 = vmatpush1.msra.mxu0 0.0
    %3564 = vmatprep.subr.mxu0 0.0
    %3565 = vmatpush1.msra.mxu0 0.0
    %3566 = vmatprep.subr.mxu0 0.0
    %3567 = vmatpush1.msra.mxu0 0.0
    %3568 = vmatprep.subr.mxu0 0.0
    %3569 = vmatpush1.msra.mxu0 0.0
    %3570 = vmatprep.subr.mxu0 0.0
    %3571 = vmatpush1.msra.mxu0 0.0
    %3572 = vmatprep.subr.mxu0 0.0
    %3573 = vmatpush1.msra.mxu0 0.0
    %3574 = vmatprep.subr.mxu0 0.0
    %3575 = vmatpush1.msra.mxu0 0.0
    %3576 = vmatprep.subr.mxu0 0.0
    %3577 = vmatpush1.msra.mxu0 0.0
    %3578 = vmatprep.subr.mxu0 0.0
    %3579 = vmatpush1.msra.mxu0 0.0
    %3580 = vmatprep.subr.mxu0 0.0
    %3581 = vmatpush1.msra.mxu0 0.0
    %3582 = vmatprep.mubr.f32.mxu0 0.0
    %3583 = vmatmul.mubr.f32.gmra.mrb[0].mxu0 %v3304
    %v3584 = vpop.f32.mrb[0].mxu0
    %v3585 = vadd.f32 %v3443, %v3584
    %v3586 = vpop.f32.mrb[0].mxu0
    %v3587 = vadd.f32 %v3445, %v3586
    %3588 = vdwg.mxu0
    %v3589 = vadd.f32 %v3514, %v708
    %v3590 = vadd.f32 %v3516, %v712
    %v3591 = vadd.f32 %v3585, %v716
    %v3592 = vadd.f32 %v3587, %v720
    %v3593 = vxor.u32 %v3589, 2147483648
    %v3594 = vmul.f32 %v3593, 1.442695
    %v3595 = vpow.pop %v3594
    %v3596 = vadd.f32 %v3595, 1.0
    %v3597 = vrcp.pop %v3596
    %v3598 = vmul.f32 1.0, %v3597
    %v3599 = vxor.u32 %v3590, 2147483648
    %v3600 = vmul.f32 %v3599, 1.442695
    %v3601 = vpow.pop %v3600
    %v3602 = vadd.f32 %v3601, 1.0
    %v3603 = vrcp.pop %v3602
    %v3604 = vmul.f32 1.0, %v3603
    %v3605 = vtanh.pop %v3591
    %v3606 = vxor.u32 %v3592, 2147483648
    %v3607 = vmul.f32 %v3606, 1.442695
    %v3608 = vpow.pop %v3607
    %v3609 = vadd.f32 %v3608, 1.0
    %v3610 = vrcp.pop %v3609
    %v3611 = vmul.f32 1.0, %v3610
    %v3612 = vmul.f32 %v3604, %v3132
    %v3613 = vmul.f32 %v3598, %v3605
    %v3614 = vadd.f32 %v3612, %v3613
    %v3615 = vtanh.pop %v3614
    %v3616 = vmul.f32 %v3611, %v3615
    %3617 = vmatprep.subr.mxu0 %v227
    %3618 = vmatpush1.msra.mxu0 %v226
    %3619 = vmatprep.subr.mxu0 %v231
    %3620 = vmatpush1.msra.mxu0 %v230
    %3621 = vmatprep.subr.mxu0 %v235
    %3622 = vmatpush1.msra.mxu0 %v234
    %3623 = vmatprep.subr.mxu0 %v239
    %3624 = vmatpush1.msra.mxu0 %v238
    %3625 = vmatprep.subr.mxu0 %v243
    %3626 = vmatpush1.msra.mxu0 %v242
    %3627 = vmatprep.subr.mxu0 %v247
    %3628 = vmatpush1.msra.mxu0 %v246
    %3629 = vmatprep.subr.mxu0 %v251
    %3630 = vmatpush1.msra.mxu0 %v250
    %3631 = vmatprep.subr.mxu0 %v255
    %3632 = vmatpush1.msra.mxu0 %v254
    %3633 = vmatprep.subr.mxu0 %v259
    %3634 = vmatpush1.msra.mxu0 %v258
    %3635 = vmatprep.subr.mxu0 %v263
    %3636 = vmatpush1.msra.mxu0 %v262
    %3637 = vmatprep.subr.mxu0 %v267
    %3638 = vmatpush1.msra.mxu0 %v266
    %3639 = vmatprep.subr.mxu0 %v271
    %3640 = vmatpush1.msra.mxu0 %v270
    %3641 = vmatprep.subr.mxu0 %v275
    %3642 = vmatpush1.msra.mxu0 %v274
    %3643 = vmatprep.subr.mxu0 %v279
    %3644 = vmatpush1.msra.mxu0 %v278
    %3645 = vmatprep.subr.mxu0 %v283
    %3646 = vmatpush1.msra.mxu0 %v282
    %3647 = vmatprep.subr.mxu0 %v287
    %3648 = vmatpush1.msra.mxu0 %v286
    %3649 = vmatprep.subr.mxu0 0.0
    %3650 = vmatpush1.msra.mxu0 0.0
    %3651 = vmatprep.subr.mxu0 0.0
    %3652 = vmatpush1.msra.mxu0 0.0
    %3653 = vmatprep.subr.mxu0 0.0
    %3654 = vmatpush1.msra.mxu0 0.0
    %3655 = vmatprep.subr.mxu0 0.0
    %3656 = vmatpush1.msra.mxu0 0.0
    %3657 = vmatprep.subr.mxu0 0.0
    %3658 = vmatpush1.msra.mxu0 0.0
    %3659 = vmatprep.subr.mxu0 0.0
    %3660 = vmatpush1.msra.mxu0 0.0
    %3661 = vmatprep.subr.mxu0 0.0
    %3662 = vmatpush1.msra.mxu0 0.0
    %3663 = vmatprep.subr.mxu0 0.0
    %3664 = vmatpush1.msra.mxu0 0.0
    %3665 = vmatprep.subr.mxu0 0.0
    %3666 = vmatpush1.msra.mxu0 0.0
    %3667 = vmatprep.subr.mxu0 0.0
    %3668 = vmatpush1.msra.mxu0 0.0
    %3669 = vmatprep.subr.mxu0 0.0
    %3670 = vmatpush1.msra.mxu0 0.0
    %3671 = vmatprep.subr.mxu0 0.0
    %3672 = vmatpush1.msra.mxu0 0.0
    %3673 = vmatprep.subr.mxu0 0.0
    %3674 = vmatpush1.msra.mxu0 0.0
    %3675 = vmatprep.subr.mxu0 0.0
    %3676 = vmatpush1.msra.mxu0 0.0
    %3677 = vmatprep.subr.mxu0 0.0
    %3678 = vmatpush1.msra.mxu0 0.0
    %3679 = vmatprep.subr.mxu0 0.0
    %3680 = vmatpush1.msra.mxu0 0.0
    %3681 = vmatprep.mubr.f32.mxu0 0.0
    %3682 = vmatmul.mubr.f32.gmra.mrb[0].mxu0 %v3304
    %v3683 = vpop.f32.mrb[0].mxu0
    %v3684 = vadd.f32 0.0, %v3683
    %v3685 = vpop.f32.mrb[0].mxu0
    %v3686 = vadd.f32 0.0, %v3685
    %3687 = vdwg.mxu0
    %3688 = vmatprep.subr.mxu0 %v229
    %3689 = vmatpush1.msra.mxu0 %v228
    %3690 = vmatprep.subr.mxu0 %v233
    %3691 = vmatpush1.msra.mxu0 %v232
    %3692 = vmatprep.subr.mxu0 %v237
    %3693 = vmatpush1.msra.mxu0 %v236
    %3694 = vmatprep.subr.mxu0 %v241
    %3695 = vmatpush1.msra.mxu0 %v240
    %3696 = vmatprep.subr.mxu0 %v245
    %3697 = vmatpush1.msra.mxu0 %v244
    %3698 = vmatprep.subr.mxu0 %v249
    %3699 = vmatpush1.msra.mxu0 %v248
    %3700 = vmatprep.subr.mxu0 %v253
    %3701 = vmatpush1.msra.mxu0 %v252
    %3702 = vmatprep.subr.mxu0 %v257
    %3703 = vmatpush1.msra.mxu0 %v256
    %3704 = vmatprep.subr.mxu0 %v261
    %3705 = vmatpush1.msra.mxu0 %v260
    %3706 = vmatprep.subr.mxu0 %v265
    %3707 = vmatpush1.msra.mxu0 %v264
    %3708 = vmatprep.subr.mxu0 %v269
    %3709 = vmatpush1.msra.mxu0 %v268
    %3710 = vmatprep.subr.mxu0 %v273
    %3711 = vmatpush1.msra.mxu0 %v272
    %3712 = vmatprep.subr.mxu0 %v277
    %3713 = vmatpush1.msra.mxu0 %v276
    %3714 = vmatprep.subr.mxu0 %v281
    %3715 = vmatpush1.msra.mxu0 %v280
    %3716 = vmatprep.subr.mxu0 %v285
    %3717 = vmatpush1.msra.mxu0 %v284
    %3718 = vmatprep.subr.mxu0 %v289
    %3719 = vmatpush1.msra.mxu0 %v288
    %3720 = vmatprep.subr.mxu0 0.0
    %3721 = vmatpush1.msra.mxu0 0.0
    %3722 = vmatprep.subr.mxu0 0.0
    %3723 = vmatpush1.msra.mxu0 0.0
    %3724 = vmatprep.subr.mxu0 0.0
    %3725 = vmatpush1.msra.mxu0 0.0
    %3726 = vmatprep.subr.mxu0 0.0
    %3727 = vmatpush1.msra.mxu0 0.0
    %3728 = vmatprep.subr.mxu0 0.0
    %3729 = vmatpush1.msra.mxu0 0.0
    %3730 = vmatprep.subr.mxu0 0.0
    %3731 = vmatpush1.msra.mxu0 0.0
    %3732 = vmatprep.subr.mxu0 0.0
    %3733 = vmatpush1.msra.mxu0 0.0
    %3734 = vmatprep.subr.mxu0 0.0
    %3735 = vmatpush1.msra.mxu0 0.0
    %3736 = vmatprep.subr.mxu0 0.0
    %3737 = vmatpush1.msra.mxu0 0.0
    %3738 = vmatprep.subr.mxu0 0.0
    %3739 = vmatpush1.msra.mxu0 0.0
    %3740 = vmatprep.subr.mxu0 0.0
    %3741 = vmatpush1.msra.mxu0 0.0
    %3742 = vmatprep.subr.mxu0 0.0
    %3743 = vmatpush1.msra.mxu0 0.0
    %3744 = vmatprep.subr.mxu0 0.0
    %3745 = vmatpush1.msra.mxu0 0.0
    %3746 = vmatprep.subr.mxu0 0.0
    %3747 = vmatpush1.msra.mxu0 0.0
    %3748 = vmatprep.subr.mxu0 0.0
    %3749 = vmatpush1.msra.mxu0 0.0
    %3750 = vmatprep.subr.mxu0 0.0
    %3751 = vmatpush1.msra.mxu0 0.0
    %3752 = vmatprep.mubr.f32.mxu0 0.0
    %3753 = vmatmul.mubr.f32.gmra.mrb[0].mxu0 %v3304
    %v3754 = vpop.f32.mrb[0].mxu0
    %v3755 = vadd.f32 0.0, %v3754
    %v3756 = vpop.f32.mrb[0].mxu0
    %v3757 = vadd.f32 0.0, %v3756
    %3758 = vdwg.mxu0
    %v3759 = vadd.f32 %v580, %v3684
    %v3760 = vadd.f32 %v582, %v3686
    %v3761 = vadd.f32 %v693, %v3755
    %v3762 = vadd.f32 %v695, %v3757
    %v3763 = vxor.u32 %v3759, 2147483648
    %v3764 = vmul.f32 %v3763, 1.442695
    %v3765 = vpow.pop %v3764
    %v3766 = vadd.f32 %v3765, 1.0
    %v3767 = vrcp.pop %v3766
    %v3768 = vmul.f32 1.0, %v3767
    %v3769 = vxor.u32 %v3760, 2147483648
    %v3770 = vmul.f32 %v3769, 1.442695
    %v3771 = vpow.pop %v3770
    %v3772 = vadd.f32 %v3771, 1.0
    %v3773 = vrcp.pop %v3772
    %v3774 = vmul.f32 1.0, %v3773
    %v3775 = vtanh.pop %v3761
    %v3776 = vxor.u32 %v3762, 2147483648
    %v3777 = vmul.f32 %v3776, 1.442695
    %v3778 = vpow.pop %v3777
    %v3779 = vadd.f32 %v3778, 1.0
    %v3780 = vrcp.pop %v3779
    %v3781 = vmul.f32 1.0, %v3780
    %v3782 = vmul.f32 %v3774, %v3302
    %v3783 = vmul.f32 %v3768, %v3775
    %v3784 = vadd.f32 %v3782, %v3783
    %v3785 = vtanh.pop %v3784
    %v3786 = vmul.f32 %v3781, %v3785
    %3787 = vmatprep.subr.mxu0 %v355
    %3788 = vmatpush1.msra.mxu0 %v354
    %3789 = vmatprep.subr.mxu0 %v359
    %3790 = vmatpush1.msra.mxu0 %v358
    %3791 = vmatprep.subr.mxu0 %v363
    %3792 = vmatpush1.msra.mxu0 %v362
    %3793 = vmatprep.subr.mxu0 %v367
    %3794 = vmatpush1.msra.mxu0 %v366
    %3795 = vmatprep.subr.mxu0 %v371
    %3796 = vmatpush1.msra.mxu0 %v370
    %3797 = vmatprep.subr.mxu0 %v375
    %3798 = vmatpush1.msra.mxu0 %v374
    %3799 = vmatprep.subr.mxu0 %v379
    %3800 = vmatpush1.msra.mxu0 %v378
    %3801 = vmatprep.subr.mxu0 %v383
    %3802 = vmatpush1.msra.mxu0 %v382
    %3803 = vmatprep.subr.mxu0 %v387
    %3804 = vmatpush1.msra.mxu0 %v386
    %3805 = vmatprep.subr.mxu0 %v391
    %3806 = vmatpush1.msra.mxu0 %v390
    %3807 = vmatprep.subr.mxu0 %v395
    %3808 = vmatpush1.msra.mxu0 %v394
    %3809 = vmatprep.subr.mxu0 %v399
    %3810 = vmatpush1.msra.mxu0 %v398
    %3811 = vmatprep.subr.mxu0 %v403
    %3812 = vmatpush1.msra.mxu0 %v402
    %3813 = vmatprep.subr.mxu0 %v407
    %3814 = vmatpush1.msra.mxu0 %v406
    %3815 = vmatprep.subr.mxu0 %v411
    %3816 = vmatpush1.msra.mxu0 %v410
    %3817 = vmatprep.subr.mxu0 %v415
    %3818 = vmatpush1.msra.mxu0 %v414
    %3819 = vmatprep.subr.mxu0 0.0
    %3820 = vmatpush1.msra.mxu0 0.0
    %3821 = vmatprep.subr.mxu0 0.0
    %3822 = vmatpush1.msra.mxu0 0.0
    %3823 = vmatprep.subr.mxu0 0.0
    %3824 = vmatpush1.msra.mxu0 0.0
    %3825 = vmatprep.subr.mxu0 0.0
    %3826 = vmatpush1.msra.mxu0 0.0
    %3827 = vmatprep.subr.mxu0 0.0
    %3828 = vmatpush1.msra.mxu0 0.0
    %3829 = vmatprep.subr.mxu0 0.0
    %3830 = vmatpush1.msra.mxu0 0.0
    %3831 = vmatprep.subr.mxu0 0.0
    %3832 = vmatpush1.msra.mxu0 0.0
    %3833 = vmatprep.subr.mxu0 0.0
    %3834 = vmatpush1.msra.mxu0 0.0
    %3835 = vmatprep.subr.mxu0 0.0
    %3836 = vmatpush1.msra.mxu0 0.0
    %3837 = vmatprep.subr.mxu0 0.0
    %3838 = vmatpush1.msra.mxu0 0.0
    %3839 = vmatprep.subr.mxu0 0.0
    %3840 = vmatpush1.msra.mxu0 0.0
    %3841 = vmatprep.subr.mxu0 0.0
    %3842 = vmatpush1.msra.mxu0 0.0
    %3843 = vmatprep.subr.mxu0 0.0
    %3844 = vmatpush1.msra.mxu0 0.0
    %3845 = vmatprep.subr.mxu0 0.0
    %3846 = vmatpush1.msra.mxu0 0.0
    %3847 = vmatprep.subr.mxu0 0.0
    %3848 = vmatpush1.msra.mxu0 0.0
    %3849 = vmatprep.subr.mxu0 0.0
    %3850 = vmatpush1.msra.mxu0 0.0
    %3851 = vmatprep.mubr.f32.mxu0 0.0
    %3852 = vmatmul.mubr.f32.gmra.mrb[0].mxu0 %v3616
    %v3853 = vpop.f32.mrb[0].mxu0
    %v3854 = vadd.f32 0.0, %v3853
    %v3855 = vpop.f32.mrb[0].mxu0
    %v3856 = vadd.f32 0.0, %v3855
    %3857 = vdwg.mxu0
    %3858 = vmatprep.subr.mxu0 %v357
    %3859 = vmatpush1.msra.mxu0 %v356
    %3860 = vmatprep.subr.mxu0 %v361
    %3861 = vmatpush1.msra.mxu0 %v360
    %3862 = vmatprep.subr.mxu0 %v365
    %3863 = vmatpush1.msra.mxu0 %v364
    %3864 = vmatprep.subr.mxu0 %v369
    %3865 = vmatpush1.msra.mxu0 %v368
    %3866 = vmatprep.subr.mxu0 %v373
    %3867 = vmatpush1.msra.mxu0 %v372
    %3868 = vmatprep.subr.mxu0 %v377
    %3869 = vmatpush1.msra.mxu0 %v376
    %3870 = vmatprep.subr.mxu0 %v381
    %3871 = vmatpush1.msra.mxu0 %v380
    %3872 = vmatprep.subr.mxu0 %v385
    %3873 = vmatpush1.msra.mxu0 %v384
    %3874 = vmatprep.subr.mxu0 %v389
    %3875 = vmatpush1.msra.mxu0 %v388
    %3876 = vmatprep.subr.mxu0 %v393
    %3877 = vmatpush1.msra.mxu0 %v392
    %3878 = vmatprep.subr.mxu0 %v397
    %3879 = vmatpush1.msra.mxu0 %v396
    %3880 = vmatprep.subr.mxu0 %v401
    %3881 = vmatpush1.msra.mxu0 %v400
    %3882 = vmatprep.subr.mxu0 %v405
    %3883 = vmatpush1.msra.mxu0 %v404
    %3884 = vmatprep.subr.mxu0 %v409
    %3885 = vmatpush1.msra.mxu0 %v408
    %3886 = vmatprep.subr.mxu0 %v413
    %3887 = vmatpush1.msra.mxu0 %v412
    %3888 = vmatprep.subr.mxu0 %v417
    %3889 = vmatpush1.msra.mxu0 %v416
    %3890 = vmatprep.subr.mxu0 0.0
    %3891 = vmatpush1.msra.mxu0 0.0
    %3892 = vmatprep.subr.mxu0 0.0
    %3893 = vmatpush1.msra.mxu0 0.0
    %3894 = vmatprep.subr.mxu0 0.0
    %3895 = vmatpush1.msra.mxu0 0.0
    %3896 = vmatprep.subr.mxu0 0.0
    %3897 = vmatpush1.msra.mxu0 0.0
    %3898 = vmatprep.subr.mxu0 0.0
    %3899 = vmatpush1.msra.mxu0 0.0
    %3900 = vmatprep.subr.mxu0 0.0
    %3901 = vmatpush1.msra.mxu0 0.0
    %3902 = vmatprep.subr.mxu0 0.0
    %3903 = vmatpush1.msra.mxu0 0.0
    %3904 = vmatprep.subr.mxu0 0.0
    %3905 = vmatpush1.msra.mxu0 0.0
    %3906 = vmatprep.subr.mxu0 0.0
    %3907 = vmatpush1.msra.mxu0 0.0
    %3908 = vmatprep.subr.mxu0 0.0
    %3909 = vmatpush1.msra.mxu0 0.0
    %3910 = vmatprep.subr.mxu0 0.0
    %3911 = vmatpush1.msra.mxu0 0.0
    %3912 = vmatprep.subr.mxu0 0.0
    %3913 = vmatpush1.msra.mxu0 0.0
    %3914 = vmatprep.subr.mxu0 0.0
    %3915 = vmatpush1.msra.mxu0 0.0
    %3916 = vmatprep.subr.mxu0 0.0
    %3917 = vmatpush1.msra.mxu0 0.0
    %3918 = vmatprep.subr.mxu0 0.0
    %3919 = vmatpush1.msra.mxu0 0.0
    %3920 = vmatprep.subr.mxu0 0.0
    %3921 = vmatpush1.msra.mxu0 0.0
    %3922 = vmatprep.mubr.f32.mxu0 0.0
    %3923 = vmatmul.mubr.f32.gmra.mrb[0].mxu0 %v3616
    %v3924 = vpop.f32.mrb[0].mxu0
    %v3925 = vadd.f32 0.0, %v3924
    %v3926 = vpop.f32.mrb[0].mxu0
    %v3927 = vadd.f32 0.0, %v3926
    %3928 = vdwg.mxu0
    %3929 = vmatprep.subr.mxu0 %v291
    %3930 = vmatpush1.msra.mxu0 %v290
    %3931 = vmatprep.subr.mxu0 %v295
    %3932 = vmatpush1.msra.mxu0 %v294
    %3933 = vmatprep.subr.mxu0 %v299
    %3934 = vmatpush1.msra.mxu0 %v298
    %3935 = vmatprep.subr.mxu0 %v303
    %3936 = vmatpush1.msra.mxu0 %v302
    %3937 = vmatprep.subr.mxu0 %v307
    %3938 = vmatpush1.msra.mxu0 %v306
    %3939 = vmatprep.subr.mxu0 %v311
    %3940 = vmatpush1.msra.mxu0 %v310
    %3941 = vmatprep.subr.mxu0 %v315
    %3942 = vmatpush1.msra.mxu0 %v314
    %3943 = vmatprep.subr.mxu0 %v319
    %3944 = vmatpush1.msra.mxu0 %v318
    %3945 = vmatprep.subr.mxu0 %v323
    %3946 = vmatpush1.msra.mxu0 %v322
    %3947 = vmatprep.subr.mxu0 %v327
    %3948 = vmatpush1.msra.mxu0 %v326
    %3949 = vmatprep.subr.mxu0 %v331
    %3950 = vmatpush1.msra.mxu0 %v330
    %3951 = vmatprep.subr.mxu0 %v335
    %3952 = vmatpush1.msra.mxu0 %v334
    %3953 = vmatprep.subr.mxu0 %v339
    %3954 = vmatpush1.msra.mxu0 %v338
    %3955 = vmatprep.subr.mxu0 %v343
    %3956 = vmatpush1.msra.mxu0 %v342
    %3957 = vmatprep.subr.mxu0 %v347
    %3958 = vmatpush1.msra.mxu0 %v346
    %3959 = vmatprep.subr.mxu0 %v351
    %3960 = vmatpush1.msra.mxu0 %v350
    %3961 = vmatprep.subr.mxu0 0.0
    %3962 = vmatpush1.msra.mxu0 0.0
    %3963 = vmatprep.subr.mxu0 0.0
    %3964 = vmatpush1.msra.mxu0 0.0
    %3965 = vmatprep.subr.mxu0 0.0
    %3966 = vmatpush1.msra.mxu0 0.0
    %3967 = vmatprep.subr.mxu0 0.0
    %3968 = vmatpush1.msra.mxu0 0.0
    %3969 = vmatprep.subr.mxu0 0.0
    %3970 = vmatpush1.msra.mxu0 0.0
    %3971 = vmatprep.subr.mxu0 0.0
    %3972 = vmatpush1.msra.mxu0 0.0
    %3973 = vmatprep.subr.mxu0 0.0
    %3974 = vmatpush1.msra.mxu0 0.0
    %3975 = vmatprep.subr.mxu0 0.0
    %3976 = vmatpush1.msra.mxu0 0.0
    %3977 = vmatprep.subr.mxu0 0.0
    %3978 = vmatpush1.msra.mxu0 0.0
    %3979 = vmatprep.subr.mxu0 0.0
    %3980 = vmatpush1.msra.mxu0 0.0
    %3981 = vmatprep.subr.mxu0 0.0
    %3982 = vmatpush1.msra.mxu0 0.0
    %3983 = vmatprep.subr.mxu0 0.0
    %3984 = vmatpush1.msra.mxu0 0.0
    %3985 = vmatprep.subr.mxu0 0.0
    %3986 = vmatpush1.msra.mxu0 0.0
    %3987 = vmatprep.subr.mxu0 0.0
    %3988 = vmatpush1.msra.mxu0 0.0
    %3989 = vmatprep.subr.mxu0 0.0
    %3990 = vmatpush1.msra.mxu0 0.0
    %3991 = vmatprep.subr.mxu0 0.0
    %3992 = vmatpush1.msra.mxu0 0.0
    %3993 = vmatprep.mubr.f32.mxu0 0.0
    %3994 = vmatmul.mubr.f32.gmra.mrb[0].mxu0 %v3786
    %v3995 = vpop.f32.mrb[0].mxu0
    %v3996 = vadd.f32 %v3854, %v3995
    %v3997 = vpop.f32.mrb[0].mxu0
    %v3998 = vadd.f32 %v3856, %v3997
    %3999 = vdwg.mxu0
    %4000 = vmatprep.subr.mxu0 %v293
    %4001 = vmatpush1.msra.mxu0 %v292
    %4002 = vmatprep.subr.mxu0 %v297
    %4003 = vmatpush1.msra.mxu0 %v296
    %4004 = vmatprep.subr.mxu0 %v301
    %4005 = vmatpush1.msra.mxu0 %v300
    %4006 = vmatprep.subr.mxu0 %v305
    %4007 = vmatpush1.msra.mxu0 %v304
    %4008 = vmatprep.subr.mxu0 %v309
    %4009 = vmatpush1.msra.mxu0 %v308
    %4010 = vmatprep.subr.mxu0 %v313
    %4011 = vmatpush1.msra.mxu0 %v312
    %4012 = vmatprep.subr.mxu0 %v317
    %4013 = vmatpush1.msra.mxu0 %v316
    %4014 = vmatprep.subr.mxu0 %v321
    %4015 = vmatpush1.msra.mxu0 %v320
    %4016 = vmatprep.subr.mxu0 %v325
    %4017 = vmatpush1.msra.mxu0 %v324
    %4018 = vmatprep.subr.mxu0 %v329
    %4019 = vmatpush1.msra.mxu0 %v328
    %4020 = vmatprep.subr.mxu0 %v333
    %4021 = vmatpush1.msra.mxu0 %v332
    %4022 = vmatprep.subr.mxu0 %v337
    %4023 = vmatpush1.msra.mxu0 %v336
    %4024 = vmatprep.subr.mxu0 %v341
    %4025 = vmatpush1.msra.mxu0 %v340
    %4026 = vmatprep.subr.mxu0 %v345
    %4027 = vmatpush1.msra.mxu0 %v344
    %4028 = vmatprep.subr.mxu0 %v349
    %4029 = vmatpush1.msra.mxu0 %v348
    %4030 = vmatprep.subr.mxu0 %v353
    %4031 = vmatpush1.msra.mxu0 %v352
    %4032 = vmatprep.subr.mxu0 0.0
    %4033 = vmatpush1.msra.mxu0 0.0
    %4034 = vmatprep.subr.mxu0 0.0
    %4035 = vmatpush1.msra.mxu0 0.0
    %4036 = vmatprep.subr.mxu0 0.0
    %4037 = vmatpush1.msra.mxu0 0.0
    %4038 = vmatprep.subr.mxu0 0.0
    %4039 = vmatpush1.msra.mxu0 0.0
    %4040 = vmatprep.subr.mxu0 0.0
    %4041 = vmatpush1.msra.mxu0 0.0
    %4042 = vmatprep.subr.mxu0 0.0
    %4043 = vmatpush1.msra.mxu0 0.0
    %4044 = vmatprep.subr.mxu0 0.0
    %4045 = vmatpush1.msra.mxu0 0.0
    %4046 = vmatprep.subr.mxu0 0.0
    %4047 = vmatpush1.msra.mxu0 0.0
    %4048 = vmatprep.subr.mxu0 0.0
    %4049 = vmatpush1.msra.mxu0 0.0
    %4050 = vmatprep.subr.mxu0 0.0
    %4051 = vmatpush1.msra.mxu0 0.0
    %4052 = vmatprep.subr.mxu0 0.0
    %4053 = vmatpush1.msra.mxu0 0.0
    %4054 = vmatprep.subr.mxu0 0.0
    %4055 = vmatpush1.msra.mxu0 0.0
    %4056 = vmatprep.subr.mxu0 0.0
    %4057 = vmatpush1.msra.mxu0 0.0
    %4058 = vmatprep.subr.mxu0 0.0
    %4059 = vmatpush1.msra.mxu0 0.0
    %4060 = vmatprep.subr.mxu0 0.0
    %4061 = vmatpush1.msra.mxu0 0.0
    %4062 = vmatprep.subr.mxu0 0.0
    %4063 = vmatpush1.msra.mxu0 0.0
    %4064 = vmatprep.mubr.f32.mxu0 0.0
    %4065 = vmatmul.mubr.f32.gmra.mrb[0].mxu0 %v3786
    %v4066 = vpop.f32.mrb[0].mxu0
    %v4067 = vadd.f32 %v3925, %v4066
    %v4068 = vpop.f32.mrb[0].mxu0
    %v4069 = vadd.f32 %v3927, %v4068
    %4070 = vdwg.mxu0
    %v4071 = vadd.f32 %v3996, %v708
    %v4072 = vadd.f32 %v3998, %v712
    %v4073 = vadd.f32 %v4067, %v716
    %v4074 = vadd.f32 %v4069, %v720
    %v4075 = vxor.u32 %v4071, 2147483648
    %v4076 = vmul.f32 %v4075, 1.442695
    %v4077 = vpow.pop %v4076
    %v4078 = vadd.f32 %v4077, 1.0
    %v4079 = vrcp.pop %v4078
    %v4080 = vmul.f32 1.0, %v4079
    %v4081 = vxor.u32 %v4072, 2147483648
    %v4082 = vmul.f32 %v4081, 1.442695
    %v4083 = vpow.pop %v4082
    %v4084 = vadd.f32 %v4083, 1.0
    %v4085 = vrcp.pop %v4084
    %v4086 = vmul.f32 1.0, %v4085
    %v4087 = vtanh.pop %v4073
    %v4088 = vxor.u32 %v4074, 2147483648
    %v4089 = vmul.f32 %v4088, 1.442695
    %v4090 = vpow.pop %v4089
    %v4091 = vadd.f32 %v4090, 1.0
    %v4092 = vrcp.pop %v4091
    %v4093 = vmul.f32 1.0, %v4092
    %v4094 = vmul.f32 %v4086, %v3614
    %v4095 = vmul.f32 %v4080, %v4087
    %v4096 = vadd.f32 %v4094, %v4095
    %v4097 = vtanh.pop %v4096
    %v4098 = vmul.f32 %v4093, %v4097
    %4099 = vmatprep.subr.mxu0 %v227
    %4100 = vmatpush1.msra.mxu0 %v226
    %4101 = vmatprep.subr.mxu0 %v231
    %4102 = vmatpush1.msra.mxu0 %v230
    %4103 = vmatprep.subr.mxu0 %v235
    %4104 = vmatpush1.msra.mxu0 %v234
    %4105 = vmatprep.subr.mxu0 %v239
    %4106 = vmatpush1.msra.mxu0 %v238
    %4107 = vmatprep.subr.mxu0 %v243
    %4108 = vmatpush1.msra.mxu0 %v242
    %4109 = vmatprep.subr.mxu0 %v247
    %4110 = vmatpush1.msra.mxu0 %v246
    %4111 = vmatprep.subr.mxu0 %v251
    %4112 = vmatpush1.msra.mxu0 %v250
    %4113 = vmatprep.subr.mxu0 %v255
    %4114 = vmatpush1.msra.mxu0 %v254
    %4115 = vmatprep.subr.mxu0 %v259
    %4116 = vmatpush1.msra.mxu0 %v258
    %4117 = vmatprep.subr.mxu0 %v263
    %4118 = vmatpush1.msra.mxu0 %v262
    %4119 = vmatprep.subr.mxu0 %v267
    %4120 = vmatpush1.msra.mxu0 %v266
    %4121 = vmatprep.subr.mxu0 %v271
    %4122 = vmatpush1.msra.mxu0 %v270
    %4123 = vmatprep.subr.mxu0 %v275
    %4124 = vmatpush1.msra.mxu0 %v274
    %4125 = vmatprep.subr.mxu0 %v279
    %4126 = vmatpush1.msra.mxu0 %v278
    %4127 = vmatprep.subr.mxu0 %v283
    %4128 = vmatpush1.msra.mxu0 %v282
    %4129 = vmatprep.subr.mxu0 %v287
    %4130 = vmatpush1.msra.mxu0 %v286
    %4131 = vmatprep.subr.mxu0 0.0
    %4132 = vmatpush1.msra.mxu0 0.0
    %4133 = vmatprep.subr.mxu0 0.0
    %4134 = vmatpush1.msra.mxu0 0.0
    %4135 = vmatprep.subr.mxu0 0.0
    %4136 = vmatpush1.msra.mxu0 0.0
    %4137 = vmatprep.subr.mxu0 0.0
    %4138 = vmatpush1.msra.mxu0 0.0
    %4139 = vmatprep.subr.mxu0 0.0
    %4140 = vmatpush1.msra.mxu0 0.0
    %4141 = vmatprep.subr.mxu0 0.0
    %4142 = vmatpush1.msra.mxu0 0.0
    %4143 = vmatprep.subr.mxu0 0.0
    %4144 = vmatpush1.msra.mxu0 0.0
    %4145 = vmatprep.subr.mxu0 0.0
    %4146 = vmatpush1.msra.mxu0 0.0
    %4147 = vmatprep.subr.mxu0 0.0
    %4148 = vmatpush1.msra.mxu0 0.0
    %4149 = vmatprep.subr.mxu0 0.0
    %4150 = vmatpush1.msra.mxu0 0.0
    %4151 = vmatprep.subr.mxu0 0.0
    %4152 = vmatpush1.msra.mxu0 0.0
    %4153 = vmatprep.subr.mxu0 0.0
    %4154 = vmatpush1.msra.mxu0 0.0
    %4155 = vmatprep.subr.mxu0 0.0
    %4156 = vmatpush1.msra.mxu0 0.0
    %4157 = vmatprep.subr.mxu0 0.0
    %4158 = vmatpush1.msra.mxu0 0.0
    %4159 = vmatprep.subr.mxu0 0.0
    %4160 = vmatpush1.msra.mxu0 0.0
    %4161 = vmatprep.subr.mxu0 0.0
    %4162 = vmatpush1.msra.mxu0 0.0
    %4163 = vmatprep.mubr.f32.mxu0 0.0
    %4164 = vmatmul.mubr.f32.gmra.mrb[0].mxu0 %v3786
    %v4165 = vpop.f32.mrb[0].mxu0
    %v4166 = vadd.f32 0.0, %v4165
    %v4167 = vpop.f32.mrb[0].mxu0
    %v4168 = vadd.f32 0.0, %v4167
    %4169 = vdwg.mxu0
    %4170 = vmatprep.subr.mxu0 %v229
    %4171 = vmatpush1.msra.mxu0 %v228
    %4172 = vmatprep.subr.mxu0 %v233
    %4173 = vmatpush1.msra.mxu0 %v232
    %4174 = vmatprep.subr.mxu0 %v237
    %4175 = vmatpush1.msra.mxu0 %v236
    %4176 = vmatprep.subr.mxu0 %v241
    %4177 = vmatpush1.msra.mxu0 %v240
    %4178 = vmatprep.subr.mxu0 %v245
    %4179 = vmatpush1.msra.mxu0 %v244
    %4180 = vmatprep.subr.mxu0 %v249
    %4181 = vmatpush1.msra.mxu0 %v248
    %4182 = vmatprep.subr.mxu0 %v253
    %4183 = vmatpush1.msra.mxu0 %v252
    %4184 = vmatprep.subr.mxu0 %v257
    %4185 = vmatpush1.msra.mxu0 %v256
    %4186 = vmatprep.subr.mxu0 %v261
    %4187 = vmatpush1.msra.mxu0 %v260
    %4188 = vmatprep.subr.mxu0 %v265
    %4189 = vmatpush1.msra.mxu0 %v264
    %4190 = vmatprep.subr.mxu0 %v269
    %4191 = vmatpush1.msra.mxu0 %v268
    %4192 = vmatprep.subr.mxu0 %v273
    %4193 = vmatpush1.msra.mxu0 %v272
    %4194 = vmatprep.subr.mxu0 %v277
    %4195 = vmatpush1.msra.mxu0 %v276
    %4196 = vmatprep.subr.mxu0 %v281
    %4197 = vmatpush1.msra.mxu0 %v280
    %4198 = vmatprep.subr.mxu0 %v285
    %4199 = vmatpush1.msra.mxu0 %v284
    %4200 = vmatprep.subr.mxu0 %v289
    %4201 = vmatpush1.msra.mxu0 %v288
    %4202 = vmatprep.subr.mxu0 0.0
    %4203 = vmatpush1.msra.mxu0 0.0
    %4204 = vmatprep.subr.mxu0 0.0
    %4205 = vmatpush1.msra.mxu0 0.0
    %4206 = vmatprep.subr.mxu0 0.0
    %4207 = vmatpush1.msra.mxu0 0.0
    %4208 = vmatprep.subr.mxu0 0.0
    %4209 = vmatpush1.msra.mxu0 0.0
    %4210 = vmatprep.subr.mxu0 0.0
    %4211 = vmatpush1.msra.mxu0 0.0
    %4212 = vmatprep.subr.mxu0 0.0
    %4213 = vmatpush1.msra.mxu0 0.0
    %4214 = vmatprep.subr.mxu0 0.0
    %4215 = vmatpush1.msra.mxu0 0.0
    %4216 = vmatprep.subr.mxu0 0.0
    %4217 = vmatpush1.msra.mxu0 0.0
    %4218 = vmatprep.subr.mxu0 0.0
    %4219 = vmatpush1.msra.mxu0 0.0
    %4220 = vmatprep.subr.mxu0 0.0
    %4221 = vmatpush1.msra.mxu0 0.0
    %4222 = vmatprep.subr.mxu0 0.0
    %4223 = vmatpush1.msra.mxu0 0.0
    %4224 = vmatprep.subr.mxu0 0.0
    %4225 = vmatpush1.msra.mxu0 0.0
    %4226 = vmatprep.subr.mxu0 0.0
    %4227 = vmatpush1.msra.mxu0 0.0
    %4228 = vmatprep.subr.mxu0 0.0
    %4229 = vmatpush1.msra.mxu0 0.0
    %4230 = vmatprep.subr.mxu0 0.0
    %4231 = vmatpush1.msra.mxu0 0.0
    %4232 = vmatprep.subr.mxu0 0.0
    %4233 = vmatpush1.msra.mxu0 0.0
    %4234 = vmatprep.mubr.f32.mxu0 0.0
    %4235 = vmatmul.mubr.f32.gmra.mrb[0].mxu0 %v3786
    %v4236 = vpop.f32.mrb[0].mxu0
    %v4237 = vadd.f32 0.0, %v4236
    %v4238 = vpop.f32.mrb[0].mxu0
    %v4239 = vadd.f32 0.0, %v4238
    %4240 = vdwg.mxu0
    %v4241 = vadd.f32 %v586, %v4166
    %v4242 = vadd.f32 %v588, %v4168
    %v4243 = vadd.f32 %v699, %v4237
    %v4244 = vadd.f32 %v701, %v4239
    %v4245 = vxor.u32 %v4241, 2147483648
    %v4246 = vmul.f32 %v4245, 1.442695
    %v4247 = vpow.pop %v4246
    %v4248 = vadd.f32 %v4247, 1.0
    %v4249 = vrcp.pop %v4248
    %v4250 = vmul.f32 1.0, %v4249
    %v4251 = vxor.u32 %v4242, 2147483648
    %v4252 = vmul.f32 %v4251, 1.442695
    %v4253 = vpow.pop %v4252
    %v4254 = vadd.f32 %v4253, 1.0
    %v4255 = vrcp.pop %v4254
    %v4256 = vmul.f32 1.0, %v4255
    %v4257 = vtanh.pop %v4243
    %v4258 = vxor.u32 %v4244, 2147483648
    %v4259 = vmul.f32 %v4258, 1.442695
    %v4260 = vpow.pop %v4259
    %v4261 = vadd.f32 %v4260, 1.0
    %v4262 = vrcp.pop %v4261
    %v4263 = vmul.f32 1.0, %v4262
    %v4264 = vmul.f32 %v4256, %v3784
    %v4265 = vmul.f32 %v4250, %v4257
    %v4266 = vadd.f32 %v4264, %v4265
    %v4267 = vtanh.pop %v4266
    %v4268 = vmul.f32 %v4263, %v4267
    %4269 = vmatprep.subr.mxu0 %v355
    %4270 = vmatpush1.msra.mxu0 %v354
    %4271 = vmatprep.subr.mxu0 %v359
    %4272 = vmatpush1.msra.mxu0 %v358
    %4273 = vmatprep.subr.mxu0 %v363
    %4274 = vmatpush1.msra.mxu0 %v362
    %4275 = vmatprep.subr.mxu0 %v367
    %4276 = vmatpush1.msra.mxu0 %v366
    %4277 = vmatprep.subr.mxu0 %v371
    %4278 = vmatpush1.msra.mxu0 %v370
    %4279 = vmatprep.subr.mxu0 %v375
    %4280 = vmatpush1.msra.mxu0 %v374
    %4281 = vmatprep.subr.mxu0 %v379
    %4282 = vmatpush1.msra.mxu0 %v378
    %4283 = vmatprep.subr.mxu0 %v383
    %4284 = vmatpush1.msra.mxu0 %v382
    %4285 = vmatprep.subr.mxu0 %v387
    %4286 = vmatpush1.msra.mxu0 %v386
    %4287 = vmatprep.subr.mxu0 %v391
    %4288 = vmatpush1.msra.mxu0 %v390
    %4289 = vmatprep.subr.mxu0 %v395
    %4290 = vmatpush1.msra.mxu0 %v394
    %4291 = vmatprep.subr.mxu0 %v399
    %4292 = vmatpush1.msra.mxu0 %v398
    %4293 = vmatprep.subr.mxu0 %v403
    %4294 = vmatpush1.msra.mxu0 %v402
    %4295 = vmatprep.subr.mxu0 %v407
    %4296 = vmatpush1.msra.mxu0 %v406
    %4297 = vmatprep.subr.mxu0 %v411
    %4298 = vmatpush1.msra.mxu0 %v410
    %4299 = vmatprep.subr.mxu0 %v415
    %4300 = vmatpush1.msra.mxu0 %v414
    %4301 = vmatprep.subr.mxu0 0.0
    %4302 = vmatpush1.msra.mxu0 0.0
    %4303 = vmatprep.subr.mxu0 0.0
    %4304 = vmatpush1.msra.mxu0 0.0
    %4305 = vmatprep.subr.mxu0 0.0
    %4306 = vmatpush1.msra.mxu0 0.0
    %4307 = vmatprep.subr.mxu0 0.0
    %4308 = vmatpush1.msra.mxu0 0.0
    %4309 = vmatprep.subr.mxu0 0.0
    %4310 = vmatpush1.msra.mxu0 0.0
    %4311 = vmatprep.subr.mxu0 0.0
    %4312 = vmatpush1.msra.mxu0 0.0
    %4313 = vmatprep.subr.mxu0 0.0
    %4314 = vmatpush1.msra.mxu0 0.0
    %4315 = vmatprep.subr.mxu0 0.0
    %4316 = vmatpush1.msra.mxu0 0.0
    %4317 = vmatprep.subr.mxu0 0.0
    %4318 = vmatpush1.msra.mxu0 0.0
    %4319 = vmatprep.subr.mxu0 0.0
    %4320 = vmatpush1.msra.mxu0 0.0
    %4321 = vmatprep.subr.mxu0 0.0
    %4322 = vmatpush1.msra.mxu0 0.0
    %4323 = vmatprep.subr.mxu0 0.0
    %4324 = vmatpush1.msra.mxu0 0.0
    %4325 = vmatprep.subr.mxu0 0.0
    %4326 = vmatpush1.msra.mxu0 0.0
    %4327 = vmatprep.subr.mxu0 0.0
    %4328 = vmatpush1.msra.mxu0 0.0
    %4329 = vmatprep.subr.mxu0 0.0
    %4330 = vmatpush1.msra.mxu0 0.0
    %4331 = vmatprep.subr.mxu0 0.0
    %4332 = vmatpush1.msra.mxu0 0.0
    %4333 = vmatprep.mubr.f32.mxu0 0.0
    %4334 = vmatmul.mubr.f32.gmra.mrb[0].mxu0 %v4098
    %v4335 = vpop.f32.mrb[0].mxu0
    %v4336 = vadd.f32 0.0, %v4335
    %v4337 = vpop.f32.mrb[0].mxu0
    %v4338 = vadd.f32 0.0, %v4337
    %4339 = vdwg.mxu0
    %4340 = vmatprep.subr.mxu0 %v357
    %4341 = vmatpush1.msra.mxu0 %v356
    %4342 = vmatprep.subr.mxu0 %v361
    %4343 = vmatpush1.msra.mxu0 %v360
    %4344 = vmatprep.subr.mxu0 %v365
    %4345 = vmatpush1.msra.mxu0 %v364
    %4346 = vmatprep.subr.mxu0 %v369
    %4347 = vmatpush1.msra.mxu0 %v368
    %4348 = vmatprep.subr.mxu0 %v373
    %4349 = vmatpush1.msra.mxu0 %v372
    %4350 = vmatprep.subr.mxu0 %v377
    %4351 = vmatpush1.msra.mxu0 %v376
    %4352 = vmatprep.subr.mxu0 %v381
    %4353 = vmatpush1.msra.mxu0 %v380
    %4354 = vmatprep.subr.mxu0 %v385
    %4355 = vmatpush1.msra.mxu0 %v384
    %4356 = vmatprep.subr.mxu0 %v389
    %4357 = vmatpush1.msra.mxu0 %v388
    %4358 = vmatprep.subr.mxu0 %v393
    %4359 = vmatpush1.msra.mxu0 %v392
    %4360 = vmatprep.subr.mxu0 %v397
    %4361 = vmatpush1.msra.mxu0 %v396
    %4362 = vmatprep.subr.mxu0 %v401
    %4363 = vmatpush1.msra.mxu0 %v400
    %4364 = vmatprep.subr.mxu0 %v405
    %4365 = vmatpush1.msra.mxu0 %v404
    %4366 = vmatprep.subr.mxu0 %v409
    %4367 = vmatpush1.msra.mxu0 %v408
    %4368 = vmatprep.subr.mxu0 %v413
    %4369 = vmatpush1.msra.mxu0 %v412
    %4370 = vmatprep.subr.mxu0 %v417
    %4371 = vmatpush1.msra.mxu0 %v416
    %4372 = vmatprep.subr.mxu0 0.0
    %4373 = vmatpush1.msra.mxu0 0.0
    %4374 = vmatprep.subr.mxu0 0.0
    %4375 = vmatpush1.msra.mxu0 0.0
    %4376 = vmatprep.subr.mxu0 0.0
    %4377 = vmatpush1.msra.mxu0 0.0
    %4378 = vmatprep.subr.mxu0 0.0
    %4379 = vmatpush1.msra.mxu0 0.0
    %4380 = vmatprep.subr.mxu0 0.0
    %4381 = vmatpush1.msra.mxu0 0.0
    %4382 = vmatprep.subr.mxu0 0.0
    %4383 = vmatpush1.msra.mxu0 0.0
    %4384 = vmatprep.subr.mxu0 0.0
    %4385 = vmatpush1.msra.mxu0 0.0
    %4386 = vmatprep.subr.mxu0 0.0
    %4387 = vmatpush1.msra.mxu0 0.0
    %4388 = vmatprep.subr.mxu0 0.0
    %4389 = vmatpush1.msra.mxu0 0.0
    %4390 = vmatprep.subr.mxu0 0.0
    %4391 = vmatpush1.msra.mxu0 0.0
    %4392 = vmatprep.subr.mxu0 0.0
    %4393 = vmatpush1.msra.mxu0 0.0
    %4394 = vmatprep.subr.mxu0 0.0
    %4395 = vmatpush1.msra.mxu0 0.0
    %4396 = vmatprep.subr.mxu0 0.0
    %4397 = vmatpush1.msra.mxu0 0.0
    %4398 = vmatprep.subr.mxu0 0.0
    %4399 = vmatpush1.msra.mxu0 0.0
    %4400 = vmatprep.subr.mxu0 0.0
    %4401 = vmatpush1.msra.mxu0 0.0
    %4402 = vmatprep.subr.mxu0 0.0
    %4403 = vmatpush1.msra.mxu0 0.0
    %4404 = vmatprep.mubr.f32.mxu0 0.0
    %4405 = vmatmul.mubr.f32.gmra.mrb[0].mxu0 %v4098
    %v4406 = vpop.f32.mrb[0].mxu0
    %v4407 = vadd.f32 0.0, %v4406
    %v4408 = vpop.f32.mrb[0].mxu0
    %v4409 = vadd.f32 0.0, %v4408
    %4410 = vdwg.mxu0
    %4411 = vmatprep.subr.mxu0 %v291
    %4412 = vmatpush1.msra.mxu0 %v290
    %4413 = vmatprep.subr.mxu0 %v295
    %4414 = vmatpush1.msra.mxu0 %v294
    %4415 = vmatprep.subr.mxu0 %v299
    %4416 = vmatpush1.msra.mxu0 %v298
    %4417 = vmatprep.subr.mxu0 %v303
    %4418 = vmatpush1.msra.mxu0 %v302
    %4419 = vmatprep.subr.mxu0 %v307
    %4420 = vmatpush1.msra.mxu0 %v306
    %4421 = vmatprep.subr.mxu0 %v311
    %4422 = vmatpush1.msra.mxu0 %v310
    %4423 = vmatprep.subr.mxu0 %v315
    %4424 = vmatpush1.msra.mxu0 %v314
    %4425 = vmatprep.subr.mxu0 %v319
    %4426 = vmatpush1.msra.mxu0 %v318
    %4427 = vmatprep.subr.mxu0 %v323
    %4428 = vmatpush1.msra.mxu0 %v322
    %4429 = vmatprep.subr.mxu0 %v327
    %4430 = vmatpush1.msra.mxu0 %v326
    %4431 = vmatprep.subr.mxu0 %v331
    %4432 = vmatpush1.msra.mxu0 %v330
    %4433 = vmatprep.subr.mxu0 %v335
    %4434 = vmatpush1.msra.mxu0 %v334
    %4435 = vmatprep.subr.mxu0 %v339
    %4436 = vmatpush1.msra.mxu0 %v338
    %4437 = vmatprep.subr.mxu0 %v343
    %4438 = vmatpush1.msra.mxu0 %v342
    %4439 = vmatprep.subr.mxu0 %v347
    %4440 = vmatpush1.msra.mxu0 %v346
    %4441 = vmatprep.subr.mxu0 %v351
    %4442 = vmatpush1.msra.mxu0 %v350
    %4443 = vmatprep.subr.mxu0 0.0
    %4444 = vmatpush1.msra.mxu0 0.0
    %4445 = vmatprep.subr.mxu0 0.0
    %4446 = vmatpush1.msra.mxu0 0.0
    %4447 = vmatprep.subr.mxu0 0.0
    %4448 = vmatpush1.msra.mxu0 0.0
    %4449 = vmatprep.subr.mxu0 0.0
    %4450 = vmatpush1.msra.mxu0 0.0
    %4451 = vmatprep.subr.mxu0 0.0
    %4452 = vmatpush1.msra.mxu0 0.0
    %4453 = vmatprep.subr.mxu0 0.0
    %4454 = vmatpush1.msra.mxu0 0.0
    %4455 = vmatprep.subr.mxu0 0.0
    %4456 = vmatpush1.msra.mxu0 0.0
    %4457 = vmatprep.subr.mxu0 0.0
    %4458 = vmatpush1.msra.mxu0 0.0
    %4459 = vmatprep.subr.mxu0 0.0
    %4460 = vmatpush1.msra.mxu0 0.0
    %4461 = vmatprep.subr.mxu0 0.0
    %4462 = vmatpush1.msra.mxu0 0.0
    %4463 = vmatprep.subr.mxu0 0.0
    %4464 = vmatpush1.msra.mxu0 0.0
    %4465 = vmatprep.subr.mxu0 0.0
    %4466 = vmatpush1.msra.mxu0 0.0
    %4467 = vmatprep.subr.mxu0 0.0
    %4468 = vmatpush1.msra.mxu0 0.0
    %4469 = vmatprep.subr.mxu0 0.0
    %4470 = vmatpush1.msra.mxu0 0.0
    %4471 = vmatprep.subr.mxu0 0.0
    %4472 = vmatpush1.msra.mxu0 0.0
    %4473 = vmatprep.subr.mxu0 0.0
    %4474 = vmatpush1.msra.mxu0 0.0
    %4475 = vmatprep.mubr.f32.mxu0 0.0
    %4476 = vmatmul.mubr.f32.gmra.mrb[0].mxu0 %v4268
    %v4477 = vpop.f32.mrb[0].mxu0
    %v4478 = vadd.f32 %v4336, %v4477
    %v4479 = vpop.f32.mrb[0].mxu0
    %v4480 = vadd.f32 %v4338, %v4479
    %4481 = vdwg.mxu0
    %4482 = vmatprep.subr.mxu0 %v293
    %4483 = vmatpush1.msra.mxu0 %v292
    %4484 = vmatprep.subr.mxu0 %v297
    %4485 = vmatpush1.msra.mxu0 %v296
    %4486 = vmatprep.subr.mxu0 %v301
    %4487 = vmatpush1.msra.mxu0 %v300
    %4488 = vmatprep.subr.mxu0 %v305
    %4489 = vmatpush1.msra.mxu0 %v304
    %4490 = vmatprep.subr.mxu0 %v309
    %4491 = vmatpush1.msra.mxu0 %v308
    %4492 = vmatprep.subr.mxu0 %v313
    %4493 = vmatpush1.msra.mxu0 %v312
    %4494 = vmatprep.subr.mxu0 %v317
    %4495 = vmatpush1.msra.mxu0 %v316
    %4496 = vmatprep.subr.mxu0 %v321
    %4497 = vmatpush1.msra.mxu0 %v320
    %4498 = vmatprep.subr.mxu0 %v325
    %4499 = vmatpush1.msra.mxu0 %v324
    %4500 = vmatprep.subr.mxu0 %v329
    %4501 = vmatpush1.msra.mxu0 %v328
    %4502 = vmatprep.subr.mxu0 %v333
    %4503 = vmatpush1.msra.mxu0 %v332
    %4504 = vmatprep.subr.mxu0 %v337
    %4505 = vmatpush1.msra.mxu0 %v336
    %4506 = vmatprep.subr.mxu0 %v341
    %4507 = vmatpush1.msra.mxu0 %v340
    %4508 = vmatprep.subr.mxu0 %v345
    %4509 = vmatpush1.msra.mxu0 %v344
    %4510 = vmatprep.subr.mxu0 %v349
    %4511 = vmatpush1.msra.mxu0 %v348
    %4512 = vmatprep.subr.mxu0 %v353
    %4513 = vmatpush1.msra.mxu0 %v352
    %4514 = vmatprep.subr.mxu0 0.0
    %4515 = vmatpush1.msra.mxu0 0.0
    %4516 = vmatprep.subr.mxu0 0.0
    %4517 = vmatpush1.msra.mxu0 0.0
    %4518 = vmatprep.subr.mxu0 0.0
    %4519 = vmatpush1.msra.mxu0 0.0
    %4520 = vmatprep.subr.mxu0 0.0
    %4521 = vmatpush1.msra.mxu0 0.0
    %4522 = vmatprep.subr.mxu0 0.0
    %4523 = vmatpush1.msra.mxu0 0.0
    %4524 = vmatprep.subr.mxu0 0.0
    %4525 = vmatpush1.msra.mxu0 0.0
    %4526 = vmatprep.subr.mxu0 0.0
    %4527 = vmatpush1.msra.mxu0 0.0
    %4528 = vmatprep.subr.mxu0 0.0
    %4529 = vmatpush1.msra.mxu0 0.0
    %4530 = vmatprep.subr.mxu0 0.0
    %4531 = vmatpush1.msra.mxu0 0.0
    %4532 = vmatprep.subr.mxu0 0.0
    %4533 = vmatpush1.msra.mxu0 0.0
    %4534 = vmatprep.subr.mxu0 0.0
    %4535 = vmatpush1.msra.mxu0 0.0
    %4536 = vmatprep.subr.mxu0 0.0
    %4537 = vmatpush1.msra.mxu0 0.0
    %4538 = vmatprep.subr.mxu0 0.0
    %4539 = vmatpush1.msra.mxu0 0.0
    %4540 = vmatprep.subr.mxu0 0.0
    %4541 = vmatpush1.msra.mxu0 0.0
    %4542 = vmatprep.subr.mxu0 0.0
    %4543 = vmatpush1.msra.mxu0 0.0
    %4544 = vmatprep.subr.mxu0 0.0
    %4545 = vmatpush1.msra.mxu0 0.0
    %4546 = vmatprep.mubr.f32.mxu0 0.0
    %4547 = vmatmul.mubr.f32.gmra.mrb[0].mxu0 %v4268
    %v4548 = vpop.f32.mrb[0].mxu0
    %v4549 = vadd.f32 %v4407, %v4548
    %v4550 = vpop.f32.mrb[0].mxu0
    %v4551 = vadd.f32 %v4409, %v4550
    %4552 = vdwg.mxu0
    %v4553 = vadd.f32 %v4478, %v708
    %v4554 = vadd.f32 %v4480, %v712
    %v4555 = vadd.f32 %v4549, %v716
    %v4556 = vadd.f32 %v4551, %v720
    %v4557 = vxor.u32 %v4553, 2147483648
    %v4558 = vmul.f32 %v4557, 1.442695
    %v4559 = vpow.pop %v4558
    %v4560 = vadd.f32 %v4559, 1.0
    %v4561 = vrcp.pop %v4560
    %v4562 = vmul.f32 1.0, %v4561
    %v4563 = vxor.u32 %v4554, 2147483648
    %v4564 = vmul.f32 %v4563, 1.442695
    %v4565 = vpow.pop %v4564
    %v4566 = vadd.f32 %v4565, 1.0
    %v4567 = vrcp.pop %v4566
    %v4568 = vmul.f32 1.0, %v4567
    %v4569 = vtanh.pop %v4555
    %v4570 = vxor.u32 %v4556, 2147483648
    %v4571 = vmul.f32 %v4570, 1.442695
    %v4572 = vpow.pop %v4571
    %v4573 = vadd.f32 %v4572, 1.0
    %v4574 = vrcp.pop %v4573
    %v4575 = vmul.f32 1.0, %v4574
    %v4576 = vmul.f32 %v4568, %v4096
    %v4577 = vmul.f32 %v4562, %v4569
    %v4578 = vadd.f32 %v4576, %v4577
    %v4579 = vtanh.pop %v4578
    %v4580 = vmul.f32 %v4575, %v4579
    %v4581 = vld [vmem:[#allocation12] sm:$0xff]
    %v4582 = vld [vmem:[#allocation12 + $0x8] sm:$0xff]
    %v4583 = vld [vmem:[#allocation12 + $0x10] sm:$0xff]
    %v4584 = vld [vmem:[#allocation12 + $0x18] sm:$0xff]
    %v4585 = vld [vmem:[#allocation12 + $0x20] sm:$0xff]
    %v4586 = vld [vmem:[#allocation12 + $0x28] sm:$0xff]
    %v4587 = vld [vmem:[#allocation12 + $0x30] sm:$0xff]
    %v4588 = vld [vmem:[#allocation12 + $0x38] sm:$0xff]
    %v4589 = vld [vmem:[#allocation12 + $0x40] sm:$0xff]
    %v4590 = vld [vmem:[#allocation12 + $0x48] sm:$0xff]
    %v4591 = vld [vmem:[#allocation12 + $0x50] sm:$0xff]
    %v4592 = vld [vmem:[#allocation12 + $0x58] sm:$0xff]
    %v4593 = vld [vmem:[#allocation12 + $0x60] sm:$0xff]
    %v4594 = vld [vmem:[#allocation12 + $0x68] sm:$0xff]
    %v4595 = vld [vmem:[#allocation12 + $0x70] sm:$0xff]
    %v4596 = vld [vmem:[#allocation12 + $0x78] sm:$0xff]
    %v4597 = vld [vmem:[%s7] sm:$0x1]
    %v4599 = vlaneseq
    %v4600 = vshrl.u32 %v4599, 7
    %v4601 = vsub.s32 0, %v4600
    %v4602 = vrot.slane %v4597, %v4601
    %4604 = vmatprep.subr.mxu0 0.0
    %4605 = vmatpush1.msra.mxu0 %v4581
    %4606 = vmatprep.subr.mxu0 0.0
    %4607 = vmatpush1.msra.mxu0 %v4582
    %4608 = vmatprep.subr.mxu0 0.0
    %4609 = vmatpush1.msra.mxu0 %v4583
    %4610 = vmatprep.subr.mxu0 0.0
    %4611 = vmatpush1.msra.mxu0 %v4584
    %4612 = vmatprep.subr.mxu0 0.0
    %4613 = vmatpush1.msra.mxu0 %v4585
    %4614 = vmatprep.subr.mxu0 0.0
    %4615 = vmatpush1.msra.mxu0 %v4586
    %4616 = vmatprep.subr.mxu0 0.0
    %4617 = vmatpush1.msra.mxu0 %v4587
    %4618 = vmatprep.subr.mxu0 0.0
    %4619 = vmatpush1.msra.mxu0 %v4588
    %4620 = vmatprep.subr.mxu0 0.0
    %4621 = vmatpush1.msra.mxu0 %v4589
    %4622 = vmatprep.subr.mxu0 0.0
    %4623 = vmatpush1.msra.mxu0 %v4590
    %4624 = vmatprep.subr.mxu0 0.0
    %4625 = vmatpush1.msra.mxu0 %v4591
    %4626 = vmatprep.subr.mxu0 0.0
    %4627 = vmatpush1.msra.mxu0 %v4592
    %4628 = vmatprep.subr.mxu0 0.0
    %4629 = vmatpush1.msra.mxu0 %v4593
    %4630 = vmatprep.subr.mxu0 0.0
    %4631 = vmatpush1.msra.mxu0 %v4594
    %4632 = vmatprep.subr.mxu0 0.0
    %4633 = vmatpush1.msra.mxu0 %v4595
    %4634 = vmatprep.subr.mxu0 0.0
    %4635 = vmatpush1.msra.mxu0 %v4596
    %4636 = vmatprep.subr.mxu0 0.0
    %4637 = vmatpush1.msra.mxu0 0.0
    %4638 = vmatprep.subr.mxu0 0.0
    %4639 = vmatpush1.msra.mxu0 0.0
    %4640 = vmatprep.subr.mxu0 0.0
    %4641 = vmatpush1.msra.mxu0 0.0
    %4642 = vmatprep.subr.mxu0 0.0
    %4643 = vmatpush1.msra.mxu0 0.0
    %4644 = vmatprep.subr.mxu0 0.0
    %4645 = vmatpush1.msra.mxu0 0.0
    %4646 = vmatprep.subr.mxu0 0.0
    %4647 = vmatpush1.msra.mxu0 0.0
    %4648 = vmatprep.subr.mxu0 0.0
    %4649 = vmatpush1.msra.mxu0 0.0
    %4650 = vmatprep.subr.mxu0 0.0
    %4651 = vmatpush1.msra.mxu0 0.0
    %4652 = vmatprep.subr.mxu0 0.0
    %4653 = vmatpush1.msra.mxu0 0.0
    %4654 = vmatprep.subr.mxu0 0.0
    %4655 = vmatpush1.msra.mxu0 0.0
    %4656 = vmatprep.subr.mxu0 0.0
    %4657 = vmatpush1.msra.mxu0 0.0
    %4658 = vmatprep.subr.mxu0 0.0
    %4659 = vmatpush1.msra.mxu0 0.0
    %4660 = vmatprep.subr.mxu0 0.0
    %4661 = vmatpush1.msra.mxu0 0.0
    %4662 = vmatprep.subr.mxu0 0.0
    %4663 = vmatpush1.msra.mxu0 0.0
    %4664 = vmatprep.subr.mxu0 0.0
    %4665 = vmatpush1.msra.mxu0 0.0
    %4666 = vmatprep.subr.mxu0 0.0
    %4667 = vmatpush1.msra.mxu0 0.0
    %4668 = vmatprep.mubr.f32.mxu0 0.0
    %4669 = vmatmul.mubr.f32.gmra.mrb[0].mxu0 %v4580
    %v4670 = vpop.f32.mrb[0].mxu0
    %v4671 = vadd.f32 %v4602, %v4670
    %v4672 = vpop.f32.mrb[0].mxu0
    %4673 = vdwg.mxu0
    %v4674 = vmax.f32 %v4671, 0.0
    %v4675 = vld [vmem:[#allocation14] sm:$0xff]
    %v4676 = vld [vmem:[#allocation14 + $0x8] sm:$0xff]
    %v4677 = vld [vmem:[#allocation14 + $0x10] sm:$0xff]
    %v4678 = vld [vmem:[#allocation14 + $0x18] sm:$0xff]
    %v4679 = vld [vmem:[#allocation14 + $0x20] sm:$0xff]
    %v4680 = vld [vmem:[#allocation14 + $0x28] sm:$0xff]
    %v4681 = vld [vmem:[#allocation14 + $0x30] sm:$0xff]
    %v4682 = vld [vmem:[#allocation14 + $0x38] sm:$0xff]
    %v4683 = vld [vmem:[#allocation14 + $0x40] sm:$0xff]
    %v4684 = vld [vmem:[#allocation14 + $0x48] sm:$0xff]
    %v4685 = vld [vmem:[#allocation14 + $0x50] sm:$0xff]
    %v4686 = vld [vmem:[#allocation14 + $0x58] sm:$0xff]
    %v4687 = vld [vmem:[#allocation14 + $0x60] sm:$0xff]
    %v4688 = vld [vmem:[#allocation14 + $0x68] sm:$0xff]
    %v4689 = vld [vmem:[#allocation14 + $0x70] sm:$0xff]
    %v4690 = vld [vmem:[#allocation14 + $0x78] sm:$0xff]
    %v4691 = vld [vmem:[%s9] sm:$0x1]
    %v4693 = vlaneseq
    %v4694 = vshrl.u32 %v4693, 7
    %v4695 = vsub.s32 0, %v4694
    %v4696 = vrot.slane %v4691, %v4695
    %4698 = vmatprep.subr.mxu0 0.0
    %4699 = vmatpush1.msra.mxu0 %v4675
    %4700 = vmatprep.subr.mxu0 0.0
    %4701 = vmatpush1.msra.mxu0 %v4676
    %4702 = vmatprep.subr.mxu0 0.0
    %4703 = vmatpush1.msra.mxu0 %v4677
    %4704 = vmatprep.subr.mxu0 0.0
    %4705 = vmatpush1.msra.mxu0 %v4678
    %4706 = vmatprep.subr.mxu0 0.0
    %4707 = vmatpush1.msra.mxu0 %v4679
    %4708 = vmatprep.subr.mxu0 0.0
    %4709 = vmatpush1.msra.mxu0 %v4680
    %4710 = vmatprep.subr.mxu0 0.0
    %4711 = vmatpush1.msra.mxu0 %v4681
    %4712 = vmatprep.subr.mxu0 0.0
    %4713 = vmatpush1.msra.mxu0 %v4682
    %4714 = vmatprep.subr.mxu0 0.0
    %4715 = vmatpush1.msra.mxu0 %v4683
    %4716 = vmatprep.subr.mxu0 0.0
    %4717 = vmatpush1.msra.mxu0 %v4684
    %4718 = vmatprep.subr.mxu0 0.0
    %4719 = vmatpush1.msra.mxu0 %v4685
    %4720 = vmatprep.subr.mxu0 0.0
    %4721 = vmatpush1.msra.mxu0 %v4686
    %4722 = vmatprep.subr.mxu0 0.0
    %4723 = vmatpush1.msra.mxu0 %v4687
    %4724 = vmatprep.subr.mxu0 0.0
    %4725 = vmatpush1.msra.mxu0 %v4688
    %4726 = vmatprep.subr.mxu0 0.0
    %4727 = vmatpush1.msra.mxu0 %v4689
    %4728 = vmatprep.subr.mxu0 0.0
    %4729 = vmatpush1.msra.mxu0 %v4690
    %4730 = vmatprep.subr.mxu0 0.0
    %4731 = vmatpush1.msra.mxu0 0.0
    %4732 = vmatprep.subr.mxu0 0.0
    %4733 = vmatpush1.msra.mxu0 0.0
    %4734 = vmatprep.subr.mxu0 0.0
    %4735 = vmatpush1.msra.mxu0 0.0
    %4736 = vmatprep.subr.mxu0 0.0
    %4737 = vmatpush1.msra.mxu0 0.0
    %4738 = vmatprep.subr.mxu0 0.0
    %4739 = vmatpush1.msra.mxu0 0.0
    %4740 = vmatprep.subr.mxu0 0.0
    %4741 = vmatpush1.msra.mxu0 0.0
    %4742 = vmatprep.subr.mxu0 0.0
    %4743 = vmatpush1.msra.mxu0 0.0
    %4744 = vmatprep.subr.mxu0 0.0
    %4745 = vmatpush1.msra.mxu0 0.0
    %4746 = vmatprep.subr.mxu0 0.0
    %4747 = vmatpush1.msra.mxu0 0.0
    %4748 = vmatprep.subr.mxu0 0.0
    %4749 = vmatpush1.msra.mxu0 0.0
    %4750 = vmatprep.subr.mxu0 0.0
    %4751 = vmatpush1.msra.mxu0 0.0
    %4752 = vmatprep.subr.mxu0 0.0
    %4753 = vmatpush1.msra.mxu0 0.0
    %4754 = vmatprep.subr.mxu0 0.0
    %4755 = vmatpush1.msra.mxu0 0.0
    %4756 = vmatprep.subr.mxu0 0.0
    %4757 = vmatpush1.msra.mxu0 0.0
    %4758 = vmatprep.subr.mxu0 0.0
    %4759 = vmatpush1.msra.mxu0 0.0
    %4760 = vmatprep.subr.mxu0 0.0
    %4761 = vmatpush1.msra.mxu0 0.0
    %4762 = vmatprep.mubr.f32.mxu0 0.0
    %4763 = vmatmul.mubr.f32.gmra.mrb[0].mxu0 %v4674
    %v4764 = vpop.f32.mrb[0].mxu0
    %v4765 = vadd.f32 %v4696, %v4764
    %v4766 = vpop.f32.mrb[0].mxu0
    %4767 = vdwg.mxu0
    %4768 = vst [vmem:[%s12] sm:$0xff] %v4765
    // Predicated region
    $region66: #{ball_predictor_forward.2} parent=1 // pred_check
      _
    $region67: #{ball_predictor_forward.2} parent=1 // pred_check_branch
      %4770 = sbr.rel (0) target = $region69
    $region68: #{ball_predictor_forward.2} parent=1 // pred_region
      _
    $region69: #{ball_predictor_forward.2} parent=1 // pred_fallthru
      _
    // Predicated region
    $region70: #{ball_predictor_forward.2} parent=1 // pred_check
      _
    $region71: #{ball_predictor_forward.2} parent=1 // pred_check_branch
      %4772 = sbr.rel (0) target = $region73
    $region72: #{ball_predictor_forward.2} parent=1 // pred_region
      _
    $region73: #{ball_predictor_forward.2} parent=1 // pred_fallthru
      _
    %4773 = vsyncpa [#allocation8], 1
    %4774 = vsyncpa [#allocation10], 1
    %4775 = vsyncpa [#allocation13], 1

</llo_original>
